<compile_context>
chip_gen: v6e
topology: v6e:2x2x1
jax: 0.10.0
libtpu: 0.0.40
codegen_flags: <defaults>
</compile_context>

<pallas_src>
import functools
import math

import jax
import jax.numpy as jnp
from jax.experimental import pallas as pl
from jax.experimental.pallas import tpu as pltpu


def _round_up(v, m):
    return ((v + m - 1) // m) * m


# ----------------------------------------------------------------------------
# Stage 1: one-shot Kron precompute
#   s_flat[n*N + m, w] = sum_{d,e} x[n,d] * first[w,d,e] * x[m,e]
# ----------------------------------------------------------------------------
def _kron_precompute_kernel(x_ref, first_ref, s_ref):
    W0, D, _ = first_ref.shape
    N = x_ref.shape[0]
    x = x_ref[...].astype(jnp.float32)                      # (N, D)
    first = first_ref[...].astype(jnp.float32)              # (W0, D, D)
    # One-time tiny broadcast; this kernel runs once, off the B-stream path.
    xb = jnp.broadcast_to(x[None, :, :], (W0, N, D))
    # t[w, n, e] = sum_d x[n, d] * first[w, d, e]
    t = jnp.einsum('wnd,wde->wne', xb, first,
                   preferred_element_type=jnp.float32)      # (W0, N, D)
    # s3[w, n, m] = sum_e t[w, n, e] * x[m, e]     (y == x)
    s3 = jnp.einsum('wne,wme->wnm', t, xb,
                    preferred_element_type=jnp.float32)     # (W0, N, N)
    # flatten(1,2) then one-time 2-D transpose -> (N*N, W0), lane dim = W0.
    s_ref[...] = s3.reshape(W0, N * N).T.astype(s_ref.dtype)


# ----------------------------------------------------------------------------
# Stage 2: stream B row tiles against resident s_flat + fused MLP head
# ----------------------------------------------------------------------------
def _blend_mlp_kernel(b_ref, s_ref, w1_ref, b1_ref, w2_ref, b2_ref, o_ref, *,
                      compute_dtype):
    b_tile = b_ref[...]
    s_flat = s_ref[...]
    if compute_dtype is not None:
        # Cast in VMEM right before the MXU dot: B stays in its stored dtype in
        # HBM (no wrapper pre-copy); the cast hides under the B-tile DMA.
        b_tile = b_tile.astype(compute_dtype)
        s_flat = s_flat.astype(compute_dtype)
    # z = B_tile @ s_flat  -> (tm, W0); f32 MXU accumulation.
    z = jnp.dot(b_tile, s_flat, preferred_element_type=jnp.float32)
    # Fused MLP head: ReLU -> Linear -> ReLU -> Linear -> Sigmoid.
    h = jnp.maximum(z, 0.0)
    h = jnp.dot(h, w1_ref[...], preferred_element_type=jnp.float32) + b1_ref[...]
    h = jnp.maximum(h, 0.0)
    h = jnp.dot(h, w2_ref[...], preferred_element_type=jnp.float32) + b2_ref[...]
    o_ref[...] = jax.nn.sigmoid(h).astype(o_ref.dtype)      # (tm, out_dim)


# ----------------------------------------------------------------------------
# Wrapper
# ----------------------------------------------------------------------------
def blend_kron_mlp(B, x, first, w1, b1, w2, b2, *,
                   tm=None, tm_max=2048,
                   compute_dtype=jnp.bfloat16,
                   vmem_budget_bytes=40 * 1024 * 1024,
                   vmem_limit_bytes=None):
    """Fused Blend_Kron_MLP forward.

    compute_dtype: dtype both operands of the (tm, P) x (P, W0) dot are cast to
      inside the kernel (bf16 = fast MXU path). None keeps full f32 operands.
    vmem_budget_bytes / vmem_limit_bytes: defaults (40 / 48 MiB) fit v7x's
      64 MiB VMEM per TensorCore with headroom; on v5e/v6e (128 MiB physical)
      both may be raised for even larger B tiles.
    """
    M, P = B.shape
    N, D = x.shape
    W0 = first.shape[0]
    W = w1.shape[1]
    out_dim = w2.shape[1]
    assert P == N * N
    assert w1.shape[0] == W0 and w2.shape[0] == W
    assert b1.shape == (1, W) and b2.shape == (1, out_dim)

    if vmem_limit_bytes is None:
        vmem_limit_bytes = min(vmem_budget_bytes + (8 << 20), 112 << 20)

    # ---- Stage 1: Kron precompute (runs once, tiny, kept in f32) -------------
    s_flat = pl.pallas_call(
        _kron_precompute_kernel,
        out_shape=jax.ShapeDtypeStruct((P, W0), jnp.float32),
        grid_spec=pltpu.PrefetchScalarGridSpec(
            num_scalar_prefetch=0,
            grid=(1,),
            in_specs=[pl.BlockSpec((N, D), lambda i: (0, 0)),
                      pl.BlockSpec((W0, D, D), lambda i: (0, 0, 0))],
            out_specs=pl.BlockSpec((P, W0), lambda i: (0, 0)),
        ),
    )(x, first)
    # TODO(synk): for very small M this one-shot call (+ ~16 KB HBM round trip)
    # could be folded into stage 2, at the cost of the v7x-parallel grid axis.

    # ---- Tile-size selection (corrected VMEM estimate) -----------------------
    lane = 128
    w0_v = _round_up(W0, lane)
    w_v = _round_up(W, lane)
    out_v = _round_up(out_dim, lane)
    cd_bytes = jnp.dtype(compute_dtype).itemsize if compute_dtype is not None else 0
    bytes_per_row = (
        2 * P * B.dtype.itemsize          # double-buffered streamed B tile
        + P * cd_bytes                    # in-kernel low-precision copy of the tile
        + (w0_v + w_v + 2 * out_v) * 4    # z, h, logits, sigmoid (f32, lane-padded)
        + 2 * out_v * 4                   # double-buffered output tile (lane-padded in VMEM)
    )
    fixed_bytes = (
        2 * P * W0 * 4                                       # resident s_flat
        + 2 * (W0 * w_v + w_v + W * out_v + out_v) * 4       # W1 / b1 / W2 / b2
        + (4 << 20)                                          # Mosaic internal scratch headroom
    )
    if tm is not None:
        tm = max(16, _round_up(int(tm), 16))
        n_tiles = -(-M // tm)
    else:
        tm_cap = max(16, min(int(tm_max),
                             (vmem_budget_bytes - fixed_bytes) // bytes_per_row))
        tm_cap = (tm_cap // 128) * 128 if tm_cap >= 128 else _round_up(tm_cap, 16)
        n_tiles = -(-M // tm_cap)
        if M > 16:
            # v7x megacore: keep the "parallel" axis splittable 50/50 across
            # both TensorCores (costs at most one ~0.35us step on 1-TC chips).
            n_tiles = max(n_tiles, 2)
            if n_tiles % 2:
                n_tiles += 1
        tm = max(16, _round_up(-(-M // n_tiles), 16))
        n_tiles = -(-M // tm)

    w1f = jnp.asarray(w1, jnp.float32)
    b1f = jnp.asarray(b1, jnp.float32)
    w2f = jnp.asarray(w2, jnp.float32)
    b2f = jnp.asarray(b2, jnp.float32)

    kernel = functools.partial(_blend_mlp_kernel, compute_dtype=compute_dtype)

    # NOTE: B is streamed directly from HBM (no astype/pad copy); the tail tile
    # (when M % tm != 0) is handled by Pallas' boundary-block masking, so the
    # output is written only for the M valid rows. If B-tile DMA shows up as
    # exposed after profiling, add pipeline_mode=pl.Buffered(3) to in_specs[0].
    out = pl.pallas_call(
        kernel,
        out_shape=jax.ShapeDtypeStruct((M, out_dim), x.dtype),
        grid_spec=pltpu.PrefetchScalarGridSpec(
            num_scalar_prefetch=0,
            grid=(n_tiles,),
            in_specs=[
                pl.BlockSpec((tm, P), lambda i: (i, 0)),        # B row tiles (streamed)
                pl.BlockSpec((P, W0), lambda i: (0, 0)),        # s_flat (resident, f32)
                pl.BlockSpec((W0, W), lambda i: (0, 0)),        # W1 (in, out)
                pl.BlockSpec((1, W), lambda i: (0, 0)),         # b1
                pl.BlockSpec((W, out_dim), lambda i: (0, 0)),   # W2 (in, out)
                pl.BlockSpec((1, out_dim), lambda i: (0, 0)),   # b2
            ],
            out_specs=pl.BlockSpec((tm, out_dim), lambda i: (i, 0)),
        ),
        compiler_params=pltpu.CompilerParams(
            dimension_semantics=("parallel",),                  # megacore on v7x
            vmem_limit_bytes=int(vmem_limit_bytes),
        ),
    )(B, s_flat, w1f, b1f, w2f, b2f)

    return out


# ----------------------------------------------------------------------------
# Pure-JAX reference (PyTorch semantics)
# ----------------------------------------------------------------------------
def reference(B, x, first, w1, b1, w2, b2):
    t = jnp.einsum('nd,wde->wne', x, first)
    s = jnp.einsum('wne,me->wnm', t, x)
    z = B @ s.reshape(s.shape[0], -1).T
    h = jnp.maximum(z, 0.0)
    h = jnp.maximum(h @ w1 + b1, 0.0)
    return jax.nn.sigmoid(h @ w2 + b2)


if __name__ == "__main__":
    # Small shapes consistent with the module (depth=2, bias=True, sigmoid=True).
    D = 8        # input_dim
    N = 16       # number of sample points (rows of x); P = N*N = 256
    M = 600      # rows of blend matrix B (exercises tiling + masked tail tile)
    W0 = 32      # width0
    W = 32       # width
    OUT = 3      # output_dim

    key = jax.random.PRNGKey(0)
    kf, k1, kb1, k2, kb2, kx, kB = jax.random.split(key, 7)

    first = (2.0 / math.sqrt(W0)) * jax.random.uniform(
        kf, (W0, D, D), dtype=jnp.float32) - 1.0 / math.sqrt(W0)
    bound1 = 1.0 / math.sqrt(W0)
    w1 = jax.random.uniform(k1, (W0, W), minval=-bound1, maxval=bound1,
                            dtype=jnp.float32)          # (in, out) layout
    b1 = jax.random.uniform(kb1, (1, W), minval=-bound1, maxval=bound1,
                            dtype=jnp.float32)
    bound2 = 1.0 / math.sqrt(W)
    w2 = jax.random.uniform(k2, (W, OUT), minval=-bound2, maxval=bound2,
                            dtype=jnp.float32)
    b2 = jax.random.uniform(kb2, (1, OUT), minval=-bound2, maxval=bound2,
                            dtype=jnp.float32)

    x = jax.random.normal(kx, (N, D), dtype=jnp.float32)
    B = jax.random.normal(kB, (M, N * N), dtype=jnp.float32)

    ref = jax.block_until_ready(reference(B, x, first, w1, b1, w2, b2))

    # Exact-semantics path (f32 operands for the big dot).
    out_f32 = jax.block_until_ready(
        blend_kron_mlp(B, x, first, w1, b1, w2, b2, compute_dtype=None))
    assert out_f32.shape == (M, OUT)
    assert jnp.allclose(out_f32, ref, rtol=2e-3, atol=2e-3), "f32 kernel mismatch"

    # Performance path (in-kernel bf16 cast for the MXU, f32 accumulation).
    out_bf16 = jax.block_until_ready(blend_kron_mlp(B, x, first, w1, b1, w2, b2))
    assert out_bf16.shape == (M, OUT)
    assert jnp.allclose(out_bf16, ref, rtol=5e-2, atol=5e-2), "bf16 kernel mismatch"

    print("KERNEL_OK")
</pallas_src>

<mosaic_0001>
module attributes {stable_mosaic.version = 11 : i64} {
  func.func @_kron_precompute_kernel(%arg0: i32, %arg1: memref<16x8xf32, #tpu.memory_space<vmem>>, %arg2: memref<32x8x8xf32, #tpu.memory_space<vmem>>, %arg3: memref<256x32xf32, #tpu.memory_space<vmem>>) attributes {dimension_semantics = [#tpu.dimension_semantics<arbitrary>], iteration_bounds = array<i64: 1>, scalar_prefetch = 0 : i64, scratch_operands = 0 : i64, tpu.core_type = #tpu.core_type<tc>, window_params = [{pipeline_mode = #tpu.pipeline_mode<synchronous>, transform_indices = @transform_0, window_bounds = array<i64: 16, 8>}, {pipeline_mode = #tpu.pipeline_mode<synchronous>, transform_indices = @transform_1, window_bounds = array<i64: 32, 8, 8>}, {pipeline_mode = #tpu.pipeline_mode<synchronous>, transform_indices = @transform_2, window_bounds = array<i64: 256, 32>}]} {
    %c0 = arith.constant 0 : index
    %c0_0 = arith.constant 0 : index
    %0 = vector.load %arg1[%c0, %c0_0] : memref<16x8xf32, #tpu.memory_space<vmem>>, vector<16x8xf32>
    %c0_1 = arith.constant 0 : index
    %c0_2 = arith.constant 0 : index
    %c0_3 = arith.constant 0 : index
    %1 = vector.load %arg2[%c0_1, %c0_2, %c0_3] : memref<32x8x8xf32, #tpu.memory_space<vmem>>, vector<32x8x8xf32>
    %2 = vector.shape_cast %0 : vector<16x8xf32> to vector<1x16x8xf32>
    %3 = vector.shape_cast %2 : vector<1x16x8xf32> to vector<1x16x8xf32>
    %4 = vector.broadcast %3 : vector<1x16x8xf32> to vector<32x16x8xf32>
    "tpu.trace_start"() <{level = 10 : i32, message = "wnd,wde->wne"}> : () -> ()
    %cst = arith.constant dense<0.000000e+00> : vector<32x16x8xf32>
    %5 = tpu.matmul %4, %1, %cst {dimension_numbers = #tpu.dot_dimension_numbers<[2], [1], [1], [2], [0, 0, 0, 1, 1, 2], [0], [0]>} : vector<32x16x8xf32>, vector<32x8x8xf32>, vector<32x16x8xf32> -> vector<32x16x8xf32>
    "tpu.trace_stop"() : () -> ()
    "tpu.trace_start"() <{level = 10 : i32, message = "wne,wme->wnm"}> : () -> ()
    %cst_4 = arith.constant dense<0.000000e+00> : vector<32x16x16xf32>
    %6 = tpu.matmul %5, %4, %cst_4 {dimension_numbers = #tpu.dot_dimension_numbers<[2], [2], [1], [1], [0, 0, 0, 1, 1, 1], [0], [0]>} : vector<32x16x8xf32>, vector<32x16x8xf32>, vector<32x16x16xf32> -> vector<32x16x16xf32>
    "tpu.trace_stop"() : () -> ()
    %7 = vector.shape_cast %6 : vector<32x16x16xf32> to vector<32x256xf32>
    %8 = tpu.transpose %7, [1, 0] : vector<32x256xf32> -> vector<256x32xf32>
    %c0_5 = arith.constant 0 : index
    %c0_6 = arith.constant 0 : index
    %9 = vector.load %arg3[%c0_5, %c0_6] : memref<256x32xf32, #tpu.memory_space<vmem>>, vector<256x32xf32>
    tpu.vector_store %arg3[%c0_5, %c0_6], %8 {strides = array<i32>} : memref<256x32xf32, #tpu.memory_space<vmem>>, vector<256x32xf32>,
    return
  }
  func.func @transform_0(%arg0: i32) -> (i32, i32) {
    %c0_i32 = arith.constant 0 : i32
    %c0_i32_0 = arith.constant 0 : i32
    %c0_i32_1 = arith.constant 0 : i32
    return %c0_i32, %c0_i32_0 : i32, i32
  }
  func.func @transform_1(%arg0: i32) -> (i32, i32, i32) {
    %c0_i32 = arith.constant 0 : i32
    %c0_i32_0 = arith.constant 0 : i32
    %c0_i32_1 = arith.constant 0 : i32
    %c0_i32_2 = arith.constant 0 : i32
    return %c0_i32, %c0_i32_0, %c0_i32_1 : i32, i32, i32
  }
  func.func @transform_2(%arg0: i32) -> (i32, i32) {
    %c0_i32 = arith.constant 0 : i32
    %c0_i32_0 = arith.constant 0 : i32
    %c0_i32_1 = arith.constant 0 : i32
    return %c0_i32, %c0_i32_0 : i32, i32
  }
}

</mosaic_0001>

<llo_original>
// kernel: tpu_custom_call.1
$region0: #{tpu_custom_call.1}
  #allocation0 [shape = 'u32[]', space=smem, size = 0x4, offset = 0x4, fixed_abs, tag = 'smem constant byte address 0x4 - core index']
  #allocation1 [shape = 'u32[144,128]{1,0:T(1,128)}', space=vmem, size = 0x12000, scoped, tag = 'internal scratch']
  %s0 = inlined_call_operand.vmem [shape: f32[16,8], index: 0, kind: input, shape index: {}]
  %s1 = inlined_call_operand.vmem [shape: f32[32,8,8], index: 1, kind: input, shape index: {}]
  %s2 = inlined_call_operand.vmem [shape: f32[256,32], index: 2, kind: output, shape index: {}]
  %s3 = sld [smem:[#allocation0]]
  $region18: #{tpu_custom_call.1} parent=0
    _
  %s5 = ssub.s32 1, %s3
  %s6 = scalar_select 0, %s5, %s3
  // Predicated region
  $region2: #{tpu_custom_call.1} parent=0 // pred_check
    _
  $region3: #{tpu_custom_call.1} parent=0 // pred_check_branch
    %8 = sbr.rel (0) target = $region5
  $region4: #{tpu_custom_call.1} parent=0 // pred_region
    _
  $region5: #{tpu_custom_call.1} parent=0 // pred_fallthru
    _
  // Predicated region
  $region6: #{tpu_custom_call.1} parent=0 // pred_check
    _
  $region7: #{tpu_custom_call.1} parent=0 // pred_check_branch
    %10 = sbr.rel (0) target = $region9
  $region8: #{tpu_custom_call.1} parent=0 // pred_region
    _
  $region9: #{tpu_custom_call.1} parent=0 // pred_fallthru
    _
  %v11 = vld [vmem:[%s0] sm:$0xff]
  %v12 = vld [vmem:[%s0 + $0x8] sm:$0xff]
  %v13 = vld [vmem:[%s1] sm:$0xff]
  %v14 = vld [vmem:[%s1 + $0x8] sm:$0xff]
  %v15 = vld [vmem:[%s1 + $0x10] sm:$0xff]
  %v16 = vld [vmem:[%s1 + $0x18] sm:$0xff]
  %v17 = vld [vmem:[%s1 + $0x20] sm:$0xff]
  %v18 = vld [vmem:[%s1 + $0x28] sm:$0xff]
  %v19 = vld [vmem:[%s1 + $0x30] sm:$0xff]
  %v20 = vld [vmem:[%s1 + $0x38] sm:$0xff]
  %v21 = vld [vmem:[%s1 + $0x40] sm:$0xff]
  %v22 = vld [vmem:[%s1 + $0x48] sm:$0xff]
  %v23 = vld [vmem:[%s1 + $0x50] sm:$0xff]
  %v24 = vld [vmem:[%s1 + $0x58] sm:$0xff]
  %v25 = vld [vmem:[%s1 + $0x60] sm:$0xff]
  %v26 = vld [vmem:[%s1 + $0x68] sm:$0xff]
  %v27 = vld [vmem:[%s1 + $0x70] sm:$0xff]
  %v28 = vld [vmem:[%s1 + $0x78] sm:$0xff]
  %v29 = vld [vmem:[%s1 + $0x80] sm:$0xff]
  %v30 = vld [vmem:[%s1 + $0x88] sm:$0xff]
  %v31 = vld [vmem:[%s1 + $0x90] sm:$0xff]
  %v32 = vld [vmem:[%s1 + $0x98] sm:$0xff]
  %v33 = vld [vmem:[%s1 + $0xa0] sm:$0xff]
  %v34 = vld [vmem:[%s1 + $0xa8] sm:$0xff]
  %v35 = vld [vmem:[%s1 + $0xb0] sm:$0xff]
  %v36 = vld [vmem:[%s1 + $0xb8] sm:$0xff]
  %v37 = vld [vmem:[%s1 + $0xc0] sm:$0xff]
  %v38 = vld [vmem:[%s1 + $0xc8] sm:$0xff]
  %v39 = vld [vmem:[%s1 + $0xd0] sm:$0xff]
  %v40 = vld [vmem:[%s1 + $0xd8] sm:$0xff]
  %v41 = vld [vmem:[%s1 + $0xe0] sm:$0xff]
  %v42 = vld [vmem:[%s1 + $0xe8] sm:$0xff]
  %v43 = vld [vmem:[%s1 + $0xf0] sm:$0xff]
  %v44 = vld [vmem:[%s1 + $0xf8] sm:$0xff]
  %vm45 = vcmask 64512
  %v47 = vsel %vm45, %v11, 0
  %v50 = vsel %vm45, %v12, 0
  %52 = vmatprep.subr.mxu0 0.0
  %53 = vmatpush1.msra.mxu0 0.0
  %54 = vmatprep.subr.mxu0 0.0
  %55 = vmatpush1.msra.mxu0 0.0
  %56 = vmatprep.subr.mxu0 0.0
  %57 = vmatpush1.msra.mxu0 0.0
  %58 = vmatprep.subr.mxu0 0.0
  %59 = vmatpush1.msra.mxu0 0.0
  %60 = vmatprep.subr.mxu0 0.0
  %61 = vmatpush1.msra.mxu0 0.0
  %62 = vmatprep.subr.mxu0 0.0
  %63 = vmatpush1.msra.mxu0 0.0
  %64 = vmatprep.subr.mxu0 0.0
  %65 = vmatpush1.msra.mxu0 0.0
  %66 = vmatprep.subr.mxu0 0.0
  %67 = vmatpush1.msra.mxu0 0.0
  %68 = vmatprep.subr.mxu0 0.0
  %69 = vmatpush1.msra.mxu0 0.0
  %70 = vmatprep.subr.mxu0 0.0
  %71 = vmatpush1.msra.mxu0 0.0
  %72 = vmatprep.subr.mxu0 0.0
  %73 = vmatpush1.msra.mxu0 0.0
  %74 = vmatprep.subr.mxu0 0.0
  %75 = vmatpush1.msra.mxu0 0.0
  %76 = vmatprep.subr.mxu0 0.0
  %77 = vmatpush1.msra.mxu0 0.0
  %78 = vmatprep.subr.mxu0 0.0
  %79 = vmatpush1.msra.mxu0 0.0
  %80 = vmatprep.subr.mxu0 0.0
  %81 = vmatpush1.msra.mxu0 0.0
  %82 = vmatprep.subr.mxu0 0.0
  %83 = vmatpush1.msra.mxu0 %v13
  %84 = vmatprep.subr.mxu0 0.0
  %85 = vmatpush2.msra.mxu0 0.0
  %86 = vmatprep.subr.mxu0 0.0
  %87 = vmatpush2.msra.mxu0 0.0
  %88 = vmatprep.subr.mxu0 0.0
  %89 = vmatpush2.msra.mxu0 0.0
  %90 = vmatprep.subr.mxu0 0.0
  %91 = vmatpush2.msra.mxu0 0.0
  %92 = vmatprep.subr.mxu0 0.0
  %93 = vmatpush2.msra.mxu0 0.0
  %94 = vmatprep.subr.mxu0 0.0
  %95 = vmatpush2.msra.mxu0 0.0
  %96 = vmatprep.subr.mxu0 0.0
  %97 = vmatpush2.msra.mxu0 0.0
  %98 = vmatprep.subr.mxu0 0.0
  %99 = vmatpush2.msra.mxu0 0.0
  %100 = vmatprep.subr.mxu0 0.0
  %101 = vmatpush2.msra.mxu0 0.0
  %102 = vmatprep.subr.mxu0 0.0
  %103 = vmatpush2.msra.mxu0 0.0
  %104 = vmatprep.subr.mxu0 0.0
  %105 = vmatpush2.msra.mxu0 0.0
  %106 = vmatprep.subr.mxu0 0.0
  %107 = vmatpush2.msra.mxu0 0.0
  %108 = vmatprep.subr.mxu0 0.0
  %109 = vmatpush2.msra.mxu0 0.0
  %110 = vmatprep.subr.mxu0 0.0
  %111 = vmatpush2.msra.mxu0 0.0
  %112 = vmatprep.subr.mxu0 0.0
  %113 = vmatpush2.msra.mxu0 0.0
  %114 = vmatprep.subr.mxu0 0.0
  %115 = vmatpush2.msra.mxu0 0.0
  %116 = vmatprep.mubr.f32.mxu0 0.0
  %117 = vmatmul.mubr.f32.gmra.mxu0 %v47
  %v118 = vpop.f32.mrf.mxu0
  %v119 = vadd.f32 0.0, %v118
  %v120 = vpop.f32.mrf.mxu0
  %121 = vmatprep.mubr.f32.mxu0 0.0
  %122 = vmatmul.mubr.f32.gmra.mxu0 %v50
  %v123 = vpop.f32.mrf.mxu0
  %v124 = vadd.f32 0.0, %v123
  %v125 = vpop.f32.mrf.mxu0
  %126 = vdwg.mxu0
  %127 = vmatprep.subr.mxu0 0.0
  %128 = vmatpush1.msra.mxu0 0.0
  %129 = vmatprep.subr.mxu0 0.0
  %130 = vmatpush1.msra.mxu0 0.0
  %131 = vmatprep.subr.mxu0 0.0
  %132 = vmatpush1.msra.mxu0 0.0
  %133 = vmatprep.subr.mxu0 0.0
  %134 = vmatpush1.msra.mxu0 0.0
  %135 = vmatprep.subr.mxu0 0.0
  %136 = vmatpush1.msra.mxu0 0.0
  %137 = vmatprep.subr.mxu0 0.0
  %138 = vmatpush1.msra.mxu0 0.0
  %139 = vmatprep.subr.mxu0 0.0
  %140 = vmatpush1.msra.mxu0 0.0
  %141 = vmatprep.subr.mxu0 0.0
  %142 = vmatpush1.msra.mxu0 0.0
  %143 = vmatprep.subr.mxu0 0.0
  %144 = vmatpush1.msra.mxu0 0.0
  %145 = vmatprep.subr.mxu0 0.0
  %146 = vmatpush1.msra.mxu0 0.0
  %147 = vmatprep.subr.mxu0 0.0
  %148 = vmatpush1.msra.mxu0 0.0
  %149 = vmatprep.subr.mxu0 0.0
  %150 = vmatpush1.msra.mxu0 0.0
  %151 = vmatprep.subr.mxu0 0.0
  %152 = vmatpush1.msra.mxu0 0.0
  %153 = vmatprep.subr.mxu0 0.0
  %154 = vmatpush1.msra.mxu0 0.0
  %155 = vmatprep.subr.mxu0 0.0
  %156 = vmatpush1.msra.mxu0 0.0
  %157 = vmatprep.subr.mxu0 0.0
  %158 = vmatpush1.msra.mxu0 %v14
  %159 = vmatprep.subr.mxu0 0.0
  %160 = vmatpush2.msra.mxu0 0.0
  %161 = vmatprep.subr.mxu0 0.0
  %162 = vmatpush2.msra.mxu0 0.0
  %163 = vmatprep.subr.mxu0 0.0
  %164 = vmatpush2.msra.mxu0 0.0
  %165 = vmatprep.subr.mxu0 0.0
  %166 = vmatpush2.msra.mxu0 0.0
  %167 = vmatprep.subr.mxu0 0.0
  %168 = vmatpush2.msra.mxu0 0.0
  %169 = vmatprep.subr.mxu0 0.0
  %170 = vmatpush2.msra.mxu0 0.0
  %171 = vmatprep.subr.mxu0 0.0
  %172 = vmatpush2.msra.mxu0 0.0
  %173 = vmatprep.subr.mxu0 0.0
  %174 = vmatpush2.msra.mxu0 0.0
  %175 = vmatprep.subr.mxu0 0.0
  %176 = vmatpush2.msra.mxu0 0.0
  %177 = vmatprep.subr.mxu0 0.0
  %178 = vmatpush2.msra.mxu0 0.0
  %179 = vmatprep.subr.mxu0 0.0
  %180 = vmatpush2.msra.mxu0 0.0
  %181 = vmatprep.subr.mxu0 0.0
  %182 = vmatpush2.msra.mxu0 0.0
  %183 = vmatprep.subr.mxu0 0.0
  %184 = vmatpush2.msra.mxu0 0.0
  %185 = vmatprep.subr.mxu0 0.0
  %186 = vmatpush2.msra.mxu0 0.0
  %187 = vmatprep.subr.mxu0 0.0
  %188 = vmatpush2.msra.mxu0 0.0
  %189 = vmatprep.subr.mxu0 0.0
  %190 = vmatpush2.msra.mxu0 0.0
  %191 = vmatprep.mubr.f32.mxu0 0.0
  %192 = vmatmul.mubr.f32.gmra.mxu0 %v47
  %v193 = vpop.f32.mrf.mxu0
  %v194 = vadd.f32 0.0, %v193
  %v195 = vpop.f32.mrf.mxu0
  %196 = vmatprep.mubr.f32.mxu0 0.0
  %197 = vmatmul.mubr.f32.gmra.mxu0 %v50
  %v198 = vpop.f32.mrf.mxu0
  %v199 = vadd.f32 0.0, %v198
  %v200 = vpop.f32.mrf.mxu0
  %201 = vdwg.mxu0
  %202 = vmatprep.subr.mxu0 0.0
  %203 = vmatpush1.msra.mxu0 0.0
  %204 = vmatprep.subr.mxu0 0.0
  %205 = vmatpush1.msra.mxu0 0.0
  %206 = vmatprep.subr.mxu0 0.0
  %207 = vmatpush1.msra.mxu0 0.0
  %208 = vmatprep.subr.mxu0 0.0
  %209 = vmatpush1.msra.mxu0 0.0
  %210 = vmatprep.subr.mxu0 0.0
  %211 = vmatpush1.msra.mxu0 0.0
  %212 = vmatprep.subr.mxu0 0.0
  %213 = vmatpush1.msra.mxu0 0.0
  %214 = vmatprep.subr.mxu0 0.0
  %215 = vmatpush1.msra.mxu0 0.0
  %216 = vmatprep.subr.mxu0 0.0
  %217 = vmatpush1.msra.mxu0 0.0
  %218 = vmatprep.subr.mxu0 0.0
  %219 = vmatpush1.msra.mxu0 0.0
  %220 = vmatprep.subr.mxu0 0.0
  %221 = vmatpush1.msra.mxu0 0.0
  %222 = vmatprep.subr.mxu0 0.0
  %223 = vmatpush1.msra.mxu0 0.0
  %224 = vmatprep.subr.mxu0 0.0
  %225 = vmatpush1.msra.mxu0 0.0
  %226 = vmatprep.subr.mxu0 0.0
  %227 = vmatpush1.msra.mxu0 0.0
  %228 = vmatprep.subr.mxu0 0.0
  %229 = vmatpush1.msra.mxu0 0.0
  %230 = vmatprep.subr.mxu0 0.0
  %231 = vmatpush1.msra.mxu0 0.0
  %232 = vmatprep.subr.mxu0 0.0
  %233 = vmatpush1.msra.mxu0 %v15
  %234 = vmatprep.subr.mxu0 0.0
  %235 = vmatpush2.msra.mxu0 0.0
  %236 = vmatprep.subr.mxu0 0.0
  %237 = vmatpush2.msra.mxu0 0.0
  %238 = vmatprep.subr.mxu0 0.0
  %239 = vmatpush2.msra.mxu0 0.0
  %240 = vmatprep.subr.mxu0 0.0
  %241 = vmatpush2.msra.mxu0 0.0
  %242 = vmatprep.subr.mxu0 0.0
  %243 = vmatpush2.msra.mxu0 0.0
  %244 = vmatprep.subr.mxu0 0.0
  %245 = vmatpush2.msra.mxu0 0.0
  %246 = vmatprep.subr.mxu0 0.0
  %247 = vmatpush2.msra.mxu0 0.0
  %248 = vmatprep.subr.mxu0 0.0
  %249 = vmatpush2.msra.mxu0 0.0
  %250 = vmatprep.subr.mxu0 0.0
  %251 = vmatpush2.msra.mxu0 0.0
  %252 = vmatprep.subr.mxu0 0.0
  %253 = vmatpush2.msra.mxu0 0.0
  %254 = vmatprep.subr.mxu0 0.0
  %255 = vmatpush2.msra.mxu0 0.0
  %256 = vmatprep.subr.mxu0 0.0
  %257 = vmatpush2.msra.mxu0 0.0
  %258 = vmatprep.subr.mxu0 0.0
  %259 = vmatpush2.msra.mxu0 0.0
  %260 = vmatprep.subr.mxu0 0.0
  %261 = vmatpush2.msra.mxu0 0.0
  %262 = vmatprep.subr.mxu0 0.0
  %263 = vmatpush2.msra.mxu0 0.0
  %264 = vmatprep.subr.mxu0 0.0
  %265 = vmatpush2.msra.mxu0 0.0
  %266 = vmatprep.mubr.f32.mxu0 0.0
  %267 = vmatmul.mubr.f32.gmra.mxu0 %v47
  %v268 = vpop.f32.mrf.mxu0
  %v269 = vadd.f32 0.0, %v268
  %v270 = vpop.f32.mrf.mxu0
  %271 = vmatprep.mubr.f32.mxu0 0.0
  %272 = vmatmul.mubr.f32.gmra.mxu0 %v50
  %v273 = vpop.f32.mrf.mxu0
  %v274 = vadd.f32 0.0, %v273
  %v275 = vpop.f32.mrf.mxu0
  %276 = vdwg.mxu0
  %277 = vmatprep.subr.mxu0 0.0
  %278 = vmatpush1.msra.mxu0 0.0
  %279 = vmatprep.subr.mxu0 0.0
  %280 = vmatpush1.msra.mxu0 0.0
  %281 = vmatprep.subr.mxu0 0.0
  %282 = vmatpush1.msra.mxu0 0.0
  %283 = vmatprep.subr.mxu0 0.0
  %284 = vmatpush1.msra.mxu0 0.0
  %285 = vmatprep.subr.mxu0 0.0
  %286 = vmatpush1.msra.mxu0 0.0
  %287 = vmatprep.subr.mxu0 0.0
  %288 = vmatpush1.msra.mxu0 0.0
  %289 = vmatprep.subr.mxu0 0.0
  %290 = vmatpush1.msra.mxu0 0.0
  %291 = vmatprep.subr.mxu0 0.0
  %292 = vmatpush1.msra.mxu0 0.0
  %293 = vmatprep.subr.mxu0 0.0
  %294 = vmatpush1.msra.mxu0 0.0
  %295 = vmatprep.subr.mxu0 0.0
  %296 = vmatpush1.msra.mxu0 0.0
  %297 = vmatprep.subr.mxu0 0.0
  %298 = vmatpush1.msra.mxu0 0.0
  %299 = vmatprep.subr.mxu0 0.0
  %300 = vmatpush1.msra.mxu0 0.0
  %301 = vmatprep.subr.mxu0 0.0
  %302 = vmatpush1.msra.mxu0 0.0
  %303 = vmatprep.subr.mxu0 0.0
  %304 = vmatpush1.msra.mxu0 0.0
  %305 = vmatprep.subr.mxu0 0.0
  %306 = vmatpush1.msra.mxu0 0.0
  %307 = vmatprep.subr.mxu0 0.0
  %308 = vmatpush1.msra.mxu0 %v16
  %309 = vmatprep.subr.mxu0 0.0
  %310 = vmatpush2.msra.mxu0 0.0
  %311 = vmatprep.subr.mxu0 0.0
  %312 = vmatpush2.msra.mxu0 0.0
  %313 = vmatprep.subr.mxu0 0.0
  %314 = vmatpush2.msra.mxu0 0.0
  %315 = vmatprep.subr.mxu0 0.0
  %316 = vmatpush2.msra.mxu0 0.0
  %317 = vmatprep.subr.mxu0 0.0
  %318 = vmatpush2.msra.mxu0 0.0
  %319 = vmatprep.subr.mxu0 0.0
  %320 = vmatpush2.msra.mxu0 0.0
  %321 = vmatprep.subr.mxu0 0.0
  %322 = vmatpush2.msra.mxu0 0.0
  %323 = vmatprep.subr.mxu0 0.0
  %324 = vmatpush2.msra.mxu0 0.0
  %325 = vmatprep.subr.mxu0 0.0
  %326 = vmatpush2.msra.mxu0 0.0
  %327 = vmatprep.subr.mxu0 0.0
  %328 = vmatpush2.msra.mxu0 0.0
  %329 = vmatprep.subr.mxu0 0.0
  %330 = vmatpush2.msra.mxu0 0.0
  %331 = vmatprep.subr.mxu0 0.0
  %332 = vmatpush2.msra.mxu0 0.0
  %333 = vmatprep.subr.mxu0 0.0
  %334 = vmatpush2.msra.mxu0 0.0
  %335 = vmatprep.subr.mxu0 0.0
  %336 = vmatpush2.msra.mxu0 0.0
  %337 = vmatprep.subr.mxu0 0.0
  %338 = vmatpush2.msra.mxu0 0.0
  %339 = vmatprep.subr.mxu0 0.0
  %340 = vmatpush2.msra.mxu0 0.0
  %341 = vmatprep.mubr.f32.mxu0 0.0
  %342 = vmatmul.mubr.f32.gmra.mxu0 %v47
  %v343 = vpop.f32.mrf.mxu0
  %v344 = vadd.f32 0.0, %v343
  %v345 = vpop.f32.mrf.mxu0
  %346 = vmatprep.mubr.f32.mxu0 0.0
  %347 = vmatmul.mubr.f32.gmra.mxu0 %v50
  %v348 = vpop.f32.mrf.mxu0
  %v349 = vadd.f32 0.0, %v348
  %v350 = vpop.f32.mrf.mxu0
  %351 = vdwg.mxu0
  %352 = vmatprep.subr.mxu0 0.0
  %353 = vmatpush1.msra.mxu0 0.0
  %354 = vmatprep.subr.mxu0 0.0
  %355 = vmatpush1.msra.mxu0 0.0
  %356 = vmatprep.subr.mxu0 0.0
  %357 = vmatpush1.msra.mxu0 0.0
  %358 = vmatprep.subr.mxu0 0.0
  %359 = vmatpush1.msra.mxu0 0.0
  %360 = vmatprep.subr.mxu0 0.0
  %361 = vmatpush1.msra.mxu0 0.0
  %362 = vmatprep.subr.mxu0 0.0
  %363 = vmatpush1.msra.mxu0 0.0
  %364 = vmatprep.subr.mxu0 0.0
  %365 = vmatpush1.msra.mxu0 0.0
  %366 = vmatprep.subr.mxu0 0.0
  %367 = vmatpush1.msra.mxu0 0.0
  %368 = vmatprep.subr.mxu0 0.0
  %369 = vmatpush1.msra.mxu0 0.0
  %370 = vmatprep.subr.mxu0 0.0
  %371 = vmatpush1.msra.mxu0 0.0
  %372 = vmatprep.subr.mxu0 0.0
  %373 = vmatpush1.msra.mxu0 0.0
  %374 = vmatprep.subr.mxu0 0.0
  %375 = vmatpush1.msra.mxu0 0.0
  %376 = vmatprep.subr.mxu0 0.0
  %377 = vmatpush1.msra.mxu0 0.0
  %378 = vmatprep.subr.mxu0 0.0
  %379 = vmatpush1.msra.mxu0 0.0
  %380 = vmatprep.subr.mxu0 0.0
  %381 = vmatpush1.msra.mxu0 0.0
  %382 = vmatprep.subr.mxu0 0.0
  %383 = vmatpush1.msra.mxu0 %v17
  %384 = vmatprep.subr.mxu0 0.0
  %385 = vmatpush2.msra.mxu0 0.0
  %386 = vmatprep.subr.mxu0 0.0
  %387 = vmatpush2.msra.mxu0 0.0
  %388 = vmatprep.subr.mxu0 0.0
  %389 = vmatpush2.msra.mxu0 0.0
  %390 = vmatprep.subr.mxu0 0.0
  %391 = vmatpush2.msra.mxu0 0.0
  %392 = vmatprep.subr.mxu0 0.0
  %393 = vmatpush2.msra.mxu0 0.0
  %394 = vmatprep.subr.mxu0 0.0
  %395 = vmatpush2.msra.mxu0 0.0
  %396 = vmatprep.subr.mxu0 0.0
  %397 = vmatpush2.msra.mxu0 0.0
  %398 = vmatprep.subr.mxu0 0.0
  %399 = vmatpush2.msra.mxu0 0.0
  %400 = vmatprep.subr.mxu0 0.0
  %401 = vmatpush2.msra.mxu0 0.0
  %402 = vmatprep.subr.mxu0 0.0
  %403 = vmatpush2.msra.mxu0 0.0
  %404 = vmatprep.subr.mxu0 0.0
  %405 = vmatpush2.msra.mxu0 0.0
  %406 = vmatprep.subr.mxu0 0.0
  %407 = vmatpush2.msra.mxu0 0.0
  %408 = vmatprep.subr.mxu0 0.0
  %409 = vmatpush2.msra.mxu0 0.0
  %410 = vmatprep.subr.mxu0 0.0
  %411 = vmatpush2.msra.mxu0 0.0
  %412 = vmatprep.subr.mxu0 0.0
  %413 = vmatpush2.msra.mxu0 0.0
  %414 = vmatprep.subr.mxu0 0.0
  %415 = vmatpush2.msra.mxu0 0.0
  %416 = vmatprep.mubr.f32.mxu0 0.0
  %417 = vmatmul.mubr.f32.gmra.mxu0 %v47
  %v418 = vpop.f32.mrf.mxu0
  %v419 = vadd.f32 0.0, %v418
  %v420 = vpop.f32.mrf.mxu0
  %421 = vmatprep.mubr.f32.mxu0 0.0
  %422 = vmatmul.mubr.f32.gmra.mxu0 %v50
  %v423 = vpop.f32.mrf.mxu0
  %v424 = vadd.f32 0.0, %v423
  %v425 = vpop.f32.mrf.mxu0
  %426 = vdwg.mxu0
  %427 = vmatprep.subr.mxu0 0.0
  %428 = vmatpush1.msra.mxu0 0.0
  %429 = vmatprep.subr.mxu0 0.0
  %430 = vmatpush1.msra.mxu0 0.0
  %431 = vmatprep.subr.mxu0 0.0
  %432 = vmatpush1.msra.mxu0 0.0
  %433 = vmatprep.subr.mxu0 0.0
  %434 = vmatpush1.msra.mxu0 0.0
  %435 = vmatprep.subr.mxu0 0.0
  %436 = vmatpush1.msra.mxu0 0.0
  %437 = vmatprep.subr.mxu0 0.0
  %438 = vmatpush1.msra.mxu0 0.0
  %439 = vmatprep.subr.mxu0 0.0
  %440 = vmatpush1.msra.mxu0 0.0
  %441 = vmatprep.subr.mxu0 0.0
  %442 = vmatpush1.msra.mxu0 0.0
  %443 = vmatprep.subr.mxu0 0.0
  %444 = vmatpush1.msra.mxu0 0.0
  %445 = vmatprep.subr.mxu0 0.0
  %446 = vmatpush1.msra.mxu0 0.0
  %447 = vmatprep.subr.mxu0 0.0
  %448 = vmatpush1.msra.mxu0 0.0
  %449 = vmatprep.subr.mxu0 0.0
  %450 = vmatpush1.msra.mxu0 0.0
  %451 = vmatprep.subr.mxu0 0.0
  %452 = vmatpush1.msra.mxu0 0.0
  %453 = vmatprep.subr.mxu0 0.0
  %454 = vmatpush1.msra.mxu0 0.0
  %455 = vmatprep.subr.mxu0 0.0
  %456 = vmatpush1.msra.mxu0 0.0
  %457 = vmatprep.subr.mxu0 0.0
  %458 = vmatpush1.msra.mxu0 %v18
  %459 = vmatprep.subr.mxu0 0.0
  %460 = vmatpush2.msra.mxu0 0.0
  %461 = vmatprep.subr.mxu0 0.0
  %462 = vmatpush2.msra.mxu0 0.0
  %463 = vmatprep.subr.mxu0 0.0
  %464 = vmatpush2.msra.mxu0 0.0
  %465 = vmatprep.subr.mxu0 0.0
  %466 = vmatpush2.msra.mxu0 0.0
  %467 = vmatprep.subr.mxu0 0.0
  %468 = vmatpush2.msra.mxu0 0.0
  %469 = vmatprep.subr.mxu0 0.0
  %470 = vmatpush2.msra.mxu0 0.0
  %471 = vmatprep.subr.mxu0 0.0
  %472 = vmatpush2.msra.mxu0 0.0
  %473 = vmatprep.subr.mxu0 0.0
  %474 = vmatpush2.msra.mxu0 0.0
  %475 = vmatprep.subr.mxu0 0.0
  %476 = vmatpush2.msra.mxu0 0.0
  %477 = vmatprep.subr.mxu0 0.0
  %478 = vmatpush2.msra.mxu0 0.0
  %479 = vmatprep.subr.mxu0 0.0
  %480 = vmatpush2.msra.mxu0 0.0
  %481 = vmatprep.subr.mxu0 0.0
  %482 = vmatpush2.msra.mxu0 0.0
  %483 = vmatprep.subr.mxu0 0.0
  %484 = vmatpush2.msra.mxu0 0.0
  %485 = vmatprep.subr.mxu0 0.0
  %486 = vmatpush2.msra.mxu0 0.0
  %487 = vmatprep.subr.mxu0 0.0
  %488 = vmatpush2.msra.mxu0 0.0
  %489 = vmatprep.subr.mxu0 0.0
  %490 = vmatpush2.msra.mxu0 0.0
  %491 = vmatprep.mubr.f32.mxu0 0.0
  %492 = vmatmul.mubr.f32.gmra.mxu0 %v47
  %v493 = vpop.f32.mrf.mxu0
  %v494 = vadd.f32 0.0, %v493
  %v495 = vpop.f32.mrf.mxu0
  %496 = vmatprep.mubr.f32.mxu0 0.0
  %497 = vmatmul.mubr.f32.gmra.mxu0 %v50
  %v498 = vpop.f32.mrf.mxu0
  %v499 = vadd.f32 0.0, %v498
  %v500 = vpop.f32.mrf.mxu0
  %501 = vdwg.mxu0
  %502 = vmatprep.subr.mxu0 0.0
  %503 = vmatpush1.msra.mxu0 0.0
  %504 = vmatprep.subr.mxu0 0.0
  %505 = vmatpush1.msra.mxu0 0.0
  %506 = vmatprep.subr.mxu0 0.0
  %507 = vmatpush1.msra.mxu0 0.0
  %508 = vmatprep.subr.mxu0 0.0
  %509 = vmatpush1.msra.mxu0 0.0
  %510 = vmatprep.subr.mxu0 0.0
  %511 = vmatpush1.msra.mxu0 0.0
  %512 = vmatprep.subr.mxu0 0.0
  %513 = vmatpush1.msra.mxu0 0.0
  %514 = vmatprep.subr.mxu0 0.0
  %515 = vmatpush1.msra.mxu0 0.0
  %516 = vmatprep.subr.mxu0 0.0
  %517 = vmatpush1.msra.mxu0 0.0
  %518 = vmatprep.subr.mxu0 0.0
  %519 = vmatpush1.msra.mxu0 0.0
  %520 = vmatprep.subr.mxu0 0.0
  %521 = vmatpush1.msra.mxu0 0.0
  %522 = vmatprep.subr.mxu0 0.0
  %523 = vmatpush1.msra.mxu0 0.0
  %524 = vmatprep.subr.mxu0 0.0
  %525 = vmatpush1.msra.mxu0 0.0
  %526 = vmatprep.subr.mxu0 0.0
  %527 = vmatpush1.msra.mxu0 0.0
  %528 = vmatprep.subr.mxu0 0.0
  %529 = vmatpush1.msra.mxu0 0.0
  %530 = vmatprep.subr.mxu0 0.0
  %531 = vmatpush1.msra.mxu0 0.0
  %532 = vmatprep.subr.mxu0 0.0
  %533 = vmatpush1.msra.mxu0 %v19
  %534 = vmatprep.subr.mxu0 0.0
  %535 = vmatpush2.msra.mxu0 0.0
  %536 = vmatprep.subr.mxu0 0.0
  %537 = vmatpush2.msra.mxu0 0.0
  %538 = vmatprep.subr.mxu0 0.0
  %539 = vmatpush2.msra.mxu0 0.0
  %540 = vmatprep.subr.mxu0 0.0
  %541 = vmatpush2.msra.mxu0 0.0
  %542 = vmatprep.subr.mxu0 0.0
  %543 = vmatpush2.msra.mxu0 0.0
  %544 = vmatprep.subr.mxu0 0.0
  %545 = vmatpush2.msra.mxu0 0.0
  %546 = vmatprep.subr.mxu0 0.0
  %547 = vmatpush2.msra.mxu0 0.0
  %548 = vmatprep.subr.mxu0 0.0
  %549 = vmatpush2.msra.mxu0 0.0
  %550 = vmatprep.subr.mxu0 0.0
  %551 = vmatpush2.msra.mxu0 0.0
  %552 = vmatprep.subr.mxu0 0.0
  %553 = vmatpush2.msra.mxu0 0.0
  %554 = vmatprep.subr.mxu0 0.0
  %555 = vmatpush2.msra.mxu0 0.0
  %556 = vmatprep.subr.mxu0 0.0
  %557 = vmatpush2.msra.mxu0 0.0
  %558 = vmatprep.subr.mxu0 0.0
  %559 = vmatpush2.msra.mxu0 0.0
  %560 = vmatprep.subr.mxu0 0.0
  %561 = vmatpush2.msra.mxu0 0.0
  %562 = vmatprep.subr.mxu0 0.0
  %563 = vmatpush2.msra.mxu0 0.0
  %564 = vmatprep.subr.mxu0 0.0
  %565 = vmatpush2.msra.mxu0 0.0
  %566 = vmatprep.mubr.f32.mxu0 0.0
  %567 = vmatmul.mubr.f32.gmra.mxu0 %v47
  %v568 = vpop.f32.mrf.mxu0
  %v569 = vadd.f32 0.0, %v568
  %v570 = vpop.f32.mrf.mxu0
  %571 = vmatprep.mubr.f32.mxu0 0.0
  %572 = vmatmul.mubr.f32.gmra.mxu0 %v50
  %v573 = vpop.f32.mrf.mxu0
  %v574 = vadd.f32 0.0, %v573
  %v575 = vpop.f32.mrf.mxu0
  %576 = vdwg.mxu0
  %577 = vmatprep.subr.mxu0 0.0
  %578 = vmatpush1.msra.mxu0 0.0
  %579 = vmatprep.subr.mxu0 0.0
  %580 = vmatpush1.msra.mxu0 0.0
  %581 = vmatprep.subr.mxu0 0.0
  %582 = vmatpush1.msra.mxu0 0.0
  %583 = vmatprep.subr.mxu0 0.0
  %584 = vmatpush1.msra.mxu0 0.0
  %585 = vmatprep.subr.mxu0 0.0
  %586 = vmatpush1.msra.mxu0 0.0
  %587 = vmatprep.subr.mxu0 0.0
  %588 = vmatpush1.msra.mxu0 0.0
  %589 = vmatprep.subr.mxu0 0.0
  %590 = vmatpush1.msra.mxu0 0.0
  %591 = vmatprep.subr.mxu0 0.0
  %592 = vmatpush1.msra.mxu0 0.0
  %593 = vmatprep.subr.mxu0 0.0
  %594 = vmatpush1.msra.mxu0 0.0
  %595 = vmatprep.subr.mxu0 0.0
  %596 = vmatpush1.msra.mxu0 0.0
  %597 = vmatprep.subr.mxu0 0.0
  %598 = vmatpush1.msra.mxu0 0.0
  %599 = vmatprep.subr.mxu0 0.0
  %600 = vmatpush1.msra.mxu0 0.0
  %601 = vmatprep.subr.mxu0 0.0
  %602 = vmatpush1.msra.mxu0 0.0
  %603 = vmatprep.subr.mxu0 0.0
  %604 = vmatpush1.msra.mxu0 0.0
  %605 = vmatprep.subr.mxu0 0.0
  %606 = vmatpush1.msra.mxu0 0.0
  %607 = vmatprep.subr.mxu0 0.0
  %608 = vmatpush1.msra.mxu0 %v20
  %609 = vmatprep.subr.mxu0 0.0
  %610 = vmatpush2.msra.mxu0 0.0
  %611 = vmatprep.subr.mxu0 0.0
  %612 = vmatpush2.msra.mxu0 0.0
  %613 = vmatprep.subr.mxu0 0.0
  %614 = vmatpush2.msra.mxu0 0.0
  %615 = vmatprep.subr.mxu0 0.0
  %616 = vmatpush2.msra.mxu0 0.0
  %617 = vmatprep.subr.mxu0 0.0
  %618 = vmatpush2.msra.mxu0 0.0
  %619 = vmatprep.subr.mxu0 0.0
  %620 = vmatpush2.msra.mxu0 0.0
  %621 = vmatprep.subr.mxu0 0.0
  %622 = vmatpush2.msra.mxu0 0.0
  %623 = vmatprep.subr.mxu0 0.0
  %624 = vmatpush2.msra.mxu0 0.0
  %625 = vmatprep.subr.mxu0 0.0
  %626 = vmatpush2.msra.mxu0 0.0
  %627 = vmatprep.subr.mxu0 0.0
  %628 = vmatpush2.msra.mxu0 0.0
  %629 = vmatprep.subr.mxu0 0.0
  %630 = vmatpush2.msra.mxu0 0.0
  %631 = vmatprep.subr.mxu0 0.0
  %632 = vmatpush2.msra.mxu0 0.0
  %633 = vmatprep.subr.mxu0 0.0
  %634 = vmatpush2.msra.mxu0 0.0
  %635 = vmatprep.subr.mxu0 0.0
  %636 = vmatpush2.msra.mxu0 0.0
  %637 = vmatprep.subr.mxu0 0.0
  %638 = vmatpush2.msra.mxu0 0.0
  %639 = vmatprep.subr.mxu0 0.0
  %640 = vmatpush2.msra.mxu0 0.0
  %641 = vmatprep.mubr.f32.mxu0 0.0
  %642 = vmatmul.mubr.f32.gmra.mxu0 %v47
  %v643 = vpop.f32.mrf.mxu0
  %v644 = vadd.f32 0.0, %v643
  %v645 = vpop.f32.mrf.mxu0
  %646 = vmatprep.mubr.f32.mxu0 0.0
  %647 = vmatmul.mubr.f32.gmra.mxu0 %v50
  %v648 = vpop.f32.mrf.mxu0
  %v649 = vadd.f32 0.0, %v648
  %v650 = vpop.f32.mrf.mxu0
  %651 = vdwg.mxu0
  %652 = vmatprep.subr.mxu0 0.0
  %653 = vmatpush1.msra.mxu0 0.0
  %654 = vmatprep.subr.mxu0 0.0
  %655 = vmatpush1.msra.mxu0 0.0
  %656 = vmatprep.subr.mxu0 0.0
  %657 = vmatpush1.msra.mxu0 0.0
  %658 = vmatprep.subr.mxu0 0.0
  %659 = vmatpush1.msra.mxu0 0.0
  %660 = vmatprep.subr.mxu0 0.0
  %661 = vmatpush1.msra.mxu0 0.0
  %662 = vmatprep.subr.mxu0 0.0
  %663 = vmatpush1.msra.mxu0 0.0
  %664 = vmatprep.subr.mxu0 0.0
  %665 = vmatpush1.msra.mxu0 0.0
  %666 = vmatprep.subr.mxu0 0.0
  %667 = vmatpush1.msra.mxu0 0.0
  %668 = vmatprep.subr.mxu0 0.0
  %669 = vmatpush1.msra.mxu0 0.0
  %670 = vmatprep.subr.mxu0 0.0
  %671 = vmatpush1.msra.mxu0 0.0
  %672 = vmatprep.subr.mxu0 0.0
  %673 = vmatpush1.msra.mxu0 0.0
  %674 = vmatprep.subr.mxu0 0.0
  %675 = vmatpush1.msra.mxu0 0.0
  %676 = vmatprep.subr.mxu0 0.0
  %677 = vmatpush1.msra.mxu0 0.0
  %678 = vmatprep.subr.mxu0 0.0
  %679 = vmatpush1.msra.mxu0 0.0
  %680 = vmatprep.subr.mxu0 0.0
  %681 = vmatpush1.msra.mxu0 0.0
  %682 = vmatprep.subr.mxu0 0.0
  %683 = vmatpush1.msra.mxu0 %v21
  %684 = vmatprep.subr.mxu0 0.0
  %685 = vmatpush2.msra.mxu0 0.0
  %686 = vmatprep.subr.mxu0 0.0
  %687 = vmatpush2.msra.mxu0 0.0
  %688 = vmatprep.subr.mxu0 0.0
  %689 = vmatpush2.msra.mxu0 0.0
  %690 = vmatprep.subr.mxu0 0.0
  %691 = vmatpush2.msra.mxu0 0.0
  %692 = vmatprep.subr.mxu0 0.0
  %693 = vmatpush2.msra.mxu0 0.0
  %694 = vmatprep.subr.mxu0 0.0
  %695 = vmatpush2.msra.mxu0 0.0
  %696 = vmatprep.subr.mxu0 0.0
  %697 = vmatpush2.msra.mxu0 0.0
  %698 = vmatprep.subr.mxu0 0.0
  %699 = vmatpush2.msra.mxu0 0.0
  %700 = vmatprep.subr.mxu0 0.0
  %701 = vmatpush2.msra.mxu0 0.0
  %702 = vmatprep.subr.mxu0 0.0
  %703 = vmatpush2.msra.mxu0 0.0
  %704 = vmatprep.subr.mxu0 0.0
  %705 = vmatpush2.msra.mxu0 0.0
  %706 = vmatprep.subr.mxu0 0.0
  %707 = vmatpush2.msra.mxu0 0.0
  %708 = vmatprep.subr.mxu0 0.0
  %709 = vmatpush2.msra.mxu0 0.0
  %710 = vmatprep.subr.mxu0 0.0
  %711 = vmatpush2.msra.mxu0 0.0
  %712 = vmatprep.subr.mxu0 0.0
  %713 = vmatpush2.msra.mxu0 0.0
  %714 = vmatprep.subr.mxu0 0.0
  %715 = vmatpush2.msra.mxu0 0.0
  %716 = vmatprep.mubr.f32.mxu0 0.0
  %717 = vmatmul.mubr.f32.gmra.mxu0 %v47
  %v718 = vpop.f32.mrf.mxu0
  %v719 = vadd.f32 0.0, %v718
  %v720 = vpop.f32.mrf.mxu0
  %721 = vmatprep.mubr.f32.mxu0 0.0
  %722 = vmatmul.mubr.f32.gmra.mxu0 %v50
  %v723 = vpop.f32.mrf.mxu0
  %v724 = vadd.f32 0.0, %v723
  %v725 = vpop.f32.mrf.mxu0
  %726 = vdwg.mxu0
  %727 = vmatprep.subr.mxu0 0.0
  %728 = vmatpush1.msra.mxu0 0.0
  %729 = vmatprep.subr.mxu0 0.0
  %730 = vmatpush1.msra.mxu0 0.0
  %731 = vmatprep.subr.mxu0 0.0
  %732 = vmatpush1.msra.mxu0 0.0
  %733 = vmatprep.subr.mxu0 0.0
  %734 = vmatpush1.msra.mxu0 0.0
  %735 = vmatprep.subr.mxu0 0.0
  %736 = vmatpush1.msra.mxu0 0.0
  %737 = vmatprep.subr.mxu0 0.0
  %738 = vmatpush1.msra.mxu0 0.0
  %739 = vmatprep.subr.mxu0 0.0
  %740 = vmatpush1.msra.mxu0 0.0
  %741 = vmatprep.subr.mxu0 0.0
  %742 = vmatpush1.msra.mxu0 0.0
  %743 = vmatprep.subr.mxu0 0.0
  %744 = vmatpush1.msra.mxu0 0.0
  %745 = vmatprep.subr.mxu0 0.0
  %746 = vmatpush1.msra.mxu0 0.0
  %747 = vmatprep.subr.mxu0 0.0
  %748 = vmatpush1.msra.mxu0 0.0
  %749 = vmatprep.subr.mxu0 0.0
  %750 = vmatpush1.msra.mxu0 0.0
  %751 = vmatprep.subr.mxu0 0.0
  %752 = vmatpush1.msra.mxu0 0.0
  %753 = vmatprep.subr.mxu0 0.0
  %754 = vmatpush1.msra.mxu0 0.0
  %755 = vmatprep.subr.mxu0 0.0
  %756 = vmatpush1.msra.mxu0 0.0
  %757 = vmatprep.subr.mxu0 0.0
  %758 = vmatpush1.msra.mxu0 %v22
  %759 = vmatprep.subr.mxu0 0.0
  %760 = vmatpush2.msra.mxu0 0.0
  %761 = vmatprep.subr.mxu0 0.0
  %762 = vmatpush2.msra.mxu0 0.0
  %763 = vmatprep.subr.mxu0 0.0
  %764 = vmatpush2.msra.mxu0 0.0
  %765 = vmatprep.subr.mxu0 0.0
  %766 = vmatpush2.msra.mxu0 0.0
  %767 = vmatprep.subr.mxu0 0.0
  %768 = vmatpush2.msra.mxu0 0.0
  %769 = vmatprep.subr.mxu0 0.0
  %770 = vmatpush2.msra.mxu0 0.0
  %771 = vmatprep.subr.mxu0 0.0
  %772 = vmatpush2.msra.mxu0 0.0
  %773 = vmatprep.subr.mxu0 0.0
  %774 = vmatpush2.msra.mxu0 0.0
  %775 = vmatprep.subr.mxu0 0.0
  %776 = vmatpush2.msra.mxu0 0.0
  %777 = vmatprep.subr.mxu0 0.0
  %778 = vmatpush2.msra.mxu0 0.0
  %779 = vmatprep.subr.mxu0 0.0
  %780 = vmatpush2.msra.mxu0 0.0
  %781 = vmatprep.subr.mxu0 0.0
  %782 = vmatpush2.msra.mxu0 0.0
  %783 = vmatprep.subr.mxu0 0.0
  %784 = vmatpush2.msra.mxu0 0.0
  %785 = vmatprep.subr.mxu0 0.0
  %786 = vmatpush2.msra.mxu0 0.0
  %787 = vmatprep.subr.mxu0 0.0
  %788 = vmatpush2.msra.mxu0 0.0
  %789 = vmatprep.subr.mxu0 0.0
  %790 = vmatpush2.msra.mxu0 0.0
  %791 = vmatprep.mubr.f32.mxu0 0.0
  %792 = vmatmul.mubr.f32.gmra.mxu0 %v47
  %v793 = vpop.f32.mrf.mxu0
  %v794 = vadd.f32 0.0, %v793
  %v795 = vpop.f32.mrf.mxu0
  %796 = vmatprep.mubr.f32.mxu0 0.0
  %797 = vmatmul.mubr.f32.gmra.mxu0 %v50
  %v798 = vpop.f32.mrf.mxu0
  %v799 = vadd.f32 0.0, %v798
  %v800 = vpop.f32.mrf.mxu0
  %801 = vdwg.mxu0
  %802 = vmatprep.subr.mxu0 0.0
  %803 = vmatpush1.msra.mxu0 0.0
  %804 = vmatprep.subr.mxu0 0.0
  %805 = vmatpush1.msra.mxu0 0.0
  %806 = vmatprep.subr.mxu0 0.0
  %807 = vmatpush1.msra.mxu0 0.0
  %808 = vmatprep.subr.mxu0 0.0
  %809 = vmatpush1.msra.mxu0 0.0
  %810 = vmatprep.subr.mxu0 0.0
  %811 = vmatpush1.msra.mxu0 0.0
  %812 = vmatprep.subr.mxu0 0.0
  %813 = vmatpush1.msra.mxu0 0.0
  %814 = vmatprep.subr.mxu0 0.0
  %815 = vmatpush1.msra.mxu0 0.0
  %816 = vmatprep.subr.mxu0 0.0
  %817 = vmatpush1.msra.mxu0 0.0
  %818 = vmatprep.subr.mxu0 0.0
  %819 = vmatpush1.msra.mxu0 0.0
  %820 = vmatprep.subr.mxu0 0.0
  %821 = vmatpush1.msra.mxu0 0.0
  %822 = vmatprep.subr.mxu0 0.0
  %823 = vmatpush1.msra.mxu0 0.0
  %824 = vmatprep.subr.mxu0 0.0
  %825 = vmatpush1.msra.mxu0 0.0
  %826 = vmatprep.subr.mxu0 0.0
  %827 = vmatpush1.msra.mxu0 0.0
  %828 = vmatprep.subr.mxu0 0.0
  %829 = vmatpush1.msra.mxu0 0.0
  %830 = vmatprep.subr.mxu0 0.0
  %831 = vmatpush1.msra.mxu0 0.0
  %832 = vmatprep.subr.mxu0 0.0
  %833 = vmatpush1.msra.mxu0 %v23
  %834 = vmatprep.subr.mxu0 0.0
  %835 = vmatpush2.msra.mxu0 0.0
  %836 = vmatprep.subr.mxu0 0.0
  %837 = vmatpush2.msra.mxu0 0.0
  %838 = vmatprep.subr.mxu0 0.0
  %839 = vmatpush2.msra.mxu0 0.0
  %840 = vmatprep.subr.mxu0 0.0
  %841 = vmatpush2.msra.mxu0 0.0
  %842 = vmatprep.subr.mxu0 0.0
  %843 = vmatpush2.msra.mxu0 0.0
  %844 = vmatprep.subr.mxu0 0.0
  %845 = vmatpush2.msra.mxu0 0.0
  %846 = vmatprep.subr.mxu0 0.0
  %847 = vmatpush2.msra.mxu0 0.0
  %848 = vmatprep.subr.mxu0 0.0
  %849 = vmatpush2.msra.mxu0 0.0
  %850 = vmatprep.subr.mxu0 0.0
  %851 = vmatpush2.msra.mxu0 0.0
  %852 = vmatprep.subr.mxu0 0.0
  %853 = vmatpush2.msra.mxu0 0.0
  %854 = vmatprep.subr.mxu0 0.0
  %855 = vmatpush2.msra.mxu0 0.0
  %856 = vmatprep.subr.mxu0 0.0
  %857 = vmatpush2.msra.mxu0 0.0
  %858 = vmatprep.subr.mxu0 0.0
  %859 = vmatpush2.msra.mxu0 0.0
  %860 = vmatprep.subr.mxu0 0.0
  %861 = vmatpush2.msra.mxu0 0.0
  %862 = vmatprep.subr.mxu0 0.0
  %863 = vmatpush2.msra.mxu0 0.0
  %864 = vmatprep.subr.mxu0 0.0
  %865 = vmatpush2.msra.mxu0 0.0
  %866 = vmatprep.mubr.f32.mxu0 0.0
  %867 = vmatmul.mubr.f32.gmra.mxu0 %v47
  %v868 = vpop.f32.mrf.mxu0
  %v869 = vadd.f32 0.0, %v868
  %v870 = vpop.f32.mrf.mxu0
  %871 = vmatprep.mubr.f32.mxu0 0.0
  %872 = vmatmul.mubr.f32.gmra.mxu0 %v50
  %v873 = vpop.f32.mrf.mxu0
  %v874 = vadd.f32 0.0, %v873
  %v875 = vpop.f32.mrf.mxu0
  %876 = vdwg.mxu0
  %877 = vmatprep.subr.mxu0 0.0
  %878 = vmatpush1.msra.mxu0 0.0
  %879 = vmatprep.subr.mxu0 0.0
  %880 = vmatpush1.msra.mxu0 0.0
  %881 = vmatprep.subr.mxu0 0.0
  %882 = vmatpush1.msra.mxu0 0.0
  %883 = vmatprep.subr.mxu0 0.0
  %884 = vmatpush1.msra.mxu0 0.0
  %885 = vmatprep.subr.mxu0 0.0
  %886 = vmatpush1.msra.mxu0 0.0
  %887 = vmatprep.subr.mxu0 0.0
  %888 = vmatpush1.msra.mxu0 0.0
  %889 = vmatprep.subr.mxu0 0.0
  %890 = vmatpush1.msra.mxu0 0.0
  %891 = vmatprep.subr.mxu0 0.0
  %892 = vmatpush1.msra.mxu0 0.0
  %893 = vmatprep.subr.mxu0 0.0
  %894 = vmatpush1.msra.mxu0 0.0
  %895 = vmatprep.subr.mxu0 0.0
  %896 = vmatpush1.msra.mxu0 0.0
  %897 = vmatprep.subr.mxu0 0.0
  %898 = vmatpush1.msra.mxu0 0.0
  %899 = vmatprep.subr.mxu0 0.0
  %900 = vmatpush1.msra.mxu0 0.0
  %901 = vmatprep.subr.mxu0 0.0
  %902 = vmatpush1.msra.mxu0 0.0
  %903 = vmatprep.subr.mxu0 0.0
  %904 = vmatpush1.msra.mxu0 0.0
  %905 = vmatprep.subr.mxu0 0.0
  %906 = vmatpush1.msra.mxu0 0.0
  %907 = vmatprep.subr.mxu0 0.0
  %908 = vmatpush1.msra.mxu0 %v24
  %909 = vmatprep.subr.mxu0 0.0
  %910 = vmatpush2.msra.mxu0 0.0
  %911 = vmatprep.subr.mxu0 0.0
  %912 = vmatpush2.msra.mxu0 0.0
  %913 = vmatprep.subr.mxu0 0.0
  %914 = vmatpush2.msra.mxu0 0.0
  %915 = vmatprep.subr.mxu0 0.0
  %916 = vmatpush2.msra.mxu0 0.0
  %917 = vmatprep.subr.mxu0 0.0
  %918 = vmatpush2.msra.mxu0 0.0
  %919 = vmatprep.subr.mxu0 0.0
  %920 = vmatpush2.msra.mxu0 0.0
  %921 = vmatprep.subr.mxu0 0.0
  %922 = vmatpush2.msra.mxu0 0.0
  %923 = vmatprep.subr.mxu0 0.0
  %924 = vmatpush2.msra.mxu0 0.0
  %925 = vmatprep.subr.mxu0 0.0
  %926 = vmatpush2.msra.mxu0 0.0
  %927 = vmatprep.subr.mxu0 0.0
  %928 = vmatpush2.msra.mxu0 0.0
  %929 = vmatprep.subr.mxu0 0.0
  %930 = vmatpush2.msra.mxu0 0.0
  %931 = vmatprep.subr.mxu0 0.0
  %932 = vmatpush2.msra.mxu0 0.0
  %933 = vmatprep.subr.mxu0 0.0
  %934 = vmatpush2.msra.mxu0 0.0
  %935 = vmatprep.subr.mxu0 0.0
  %936 = vmatpush2.msra.mxu0 0.0
  %937 = vmatprep.subr.mxu0 0.0
  %938 = vmatpush2.msra.mxu0 0.0
  %939 = vmatprep.subr.mxu0 0.0
  %940 = vmatpush2.msra.mxu0 0.0
  %941 = vmatprep.mubr.f32.mxu0 0.0
  %942 = vmatmul.mubr.f32.gmra.mxu0 %v47
  %v943 = vpop.f32.mrf.mxu0
  %v944 = vadd.f32 0.0, %v943
  %v945 = vpop.f32.mrf.mxu0
  %946 = vmatprep.mubr.f32.mxu0 0.0
  %947 = vmatmul.mubr.f32.gmra.mxu0 %v50
  %v948 = vpop.f32.mrf.mxu0
  %v949 = vadd.f32 0.0, %v948
  %v950 = vpop.f32.mrf.mxu0
  %951 = vdwg.mxu0
  %952 = vmatprep.subr.mxu0 0.0
  %953 = vmatpush1.msra.mxu0 0.0
  %954 = vmatprep.subr.mxu0 0.0
  %955 = vmatpush1.msra.mxu0 0.0
  %956 = vmatprep.subr.mxu0 0.0
  %957 = vmatpush1.msra.mxu0 0.0
  %958 = vmatprep.subr.mxu0 0.0
  %959 = vmatpush1.msra.mxu0 0.0
  %960 = vmatprep.subr.mxu0 0.0
  %961 = vmatpush1.msra.mxu0 0.0
  %962 = vmatprep.subr.mxu0 0.0
  %963 = vmatpush1.msra.mxu0 0.0
  %964 = vmatprep.subr.mxu0 0.0
  %965 = vmatpush1.msra.mxu0 0.0
  %966 = vmatprep.subr.mxu0 0.0
  %967 = vmatpush1.msra.mxu0 0.0
  %968 = vmatprep.subr.mxu0 0.0
  %969 = vmatpush1.msra.mxu0 0.0
  %970 = vmatprep.subr.mxu0 0.0
  %971 = vmatpush1.msra.mxu0 0.0
  %972 = vmatprep.subr.mxu0 0.0
  %973 = vmatpush1.msra.mxu0 0.0
  %974 = vmatprep.subr.mxu0 0.0
  %975 = vmatpush1.msra.mxu0 0.0
  %976 = vmatprep.subr.mxu0 0.0
  %977 = vmatpush1.msra.mxu0 0.0
  %978 = vmatprep.subr.mxu0 0.0
  %979 = vmatpush1.msra.mxu0 0.0
  %980 = vmatprep.subr.mxu0 0.0
  %981 = vmatpush1.msra.mxu0 0.0
  %982 = vmatprep.subr.mxu0 0.0
  %983 = vmatpush1.msra.mxu0 %v25
  %984 = vmatprep.subr.mxu0 0.0
  %985 = vmatpush2.msra.mxu0 0.0
  %986 = vmatprep.subr.mxu0 0.0
  %987 = vmatpush2.msra.mxu0 0.0
  %988 = vmatprep.subr.mxu0 0.0
  %989 = vmatpush2.msra.mxu0 0.0
  %990 = vmatprep.subr.mxu0 0.0
  %991 = vmatpush2.msra.mxu0 0.0
  %992 = vmatprep.subr.mxu0 0.0
  %993 = vmatpush2.msra.mxu0 0.0
  %994 = vmatprep.subr.mxu0 0.0
  %995 = vmatpush2.msra.mxu0 0.0
  %996 = vmatprep.subr.mxu0 0.0
  %997 = vmatpush2.msra.mxu0 0.0
  %998 = vmatprep.subr.mxu0 0.0
  %999 = vmatpush2.msra.mxu0 0.0
  %1000 = vmatprep.subr.mxu0 0.0
  %1001 = vmatpush2.msra.mxu0 0.0
  %1002 = vmatprep.subr.mxu0 0.0
  %1003 = vmatpush2.msra.mxu0 0.0
  %1004 = vmatprep.subr.mxu0 0.0
  %1005 = vmatpush2.msra.mxu0 0.0
  %1006 = vmatprep.subr.mxu0 0.0
  %1007 = vmatpush2.msra.mxu0 0.0
  %1008 = vmatprep.subr.mxu0 0.0
  %1009 = vmatpush2.msra.mxu0 0.0
  %1010 = vmatprep.subr.mxu0 0.0
  %1011 = vmatpush2.msra.mxu0 0.0
  %1012 = vmatprep.subr.mxu0 0.0
  %1013 = vmatpush2.msra.mxu0 0.0
  %1014 = vmatprep.subr.mxu0 0.0
  %1015 = vmatpush2.msra.mxu0 0.0
  %1016 = vmatprep.mubr.f32.mxu0 0.0
  %1017 = vmatmul.mubr.f32.gmra.mxu0 %v47
  %v1018 = vpop.f32.mrf.mxu0
  %v1019 = vadd.f32 0.0, %v1018
  %v1020 = vpop.f32.mrf.mxu0
  %1021 = vmatprep.mubr.f32.mxu0 0.0
  %1022 = vmatmul.mubr.f32.gmra.mxu0 %v50
  %v1023 = vpop.f32.mrf.mxu0
  %v1024 = vadd.f32 0.0, %v1023
  %v1025 = vpop.f32.mrf.mxu0
  %1026 = vdwg.mxu0
  %1027 = vmatprep.subr.mxu0 0.0
  %1028 = vmatpush1.msra.mxu0 0.0
  %1029 = vmatprep.subr.mxu0 0.0
  %1030 = vmatpush1.msra.mxu0 0.0
  %1031 = vmatprep.subr.mxu0 0.0
  %1032 = vmatpush1.msra.mxu0 0.0
  %1033 = vmatprep.subr.mxu0 0.0
  %1034 = vmatpush1.msra.mxu0 0.0
  %1035 = vmatprep.subr.mxu0 0.0
  %1036 = vmatpush1.msra.mxu0 0.0
  %1037 = vmatprep.subr.mxu0 0.0
  %1038 = vmatpush1.msra.mxu0 0.0
  %1039 = vmatprep.subr.mxu0 0.0
  %1040 = vmatpush1.msra.mxu0 0.0
  %1041 = vmatprep.subr.mxu0 0.0
  %1042 = vmatpush1.msra.mxu0 0.0
  %1043 = vmatprep.subr.mxu0 0.0
  %1044 = vmatpush1.msra.mxu0 0.0
  %1045 = vmatprep.subr.mxu0 0.0
  %1046 = vmatpush1.msra.mxu0 0.0
  %1047 = vmatprep.subr.mxu0 0.0
  %1048 = vmatpush1.msra.mxu0 0.0
  %1049 = vmatprep.subr.mxu0 0.0
  %1050 = vmatpush1.msra.mxu0 0.0
  %1051 = vmatprep.subr.mxu0 0.0
  %1052 = vmatpush1.msra.mxu0 0.0
  %1053 = vmatprep.subr.mxu0 0.0
  %1054 = vmatpush1.msra.mxu0 0.0
  %1055 = vmatprep.subr.mxu0 0.0
  %1056 = vmatpush1.msra.mxu0 0.0
  %1057 = vmatprep.subr.mxu0 0.0
  %1058 = vmatpush1.msra.mxu0 %v26
  %1059 = vmatprep.subr.mxu0 0.0
  %1060 = vmatpush2.msra.mxu0 0.0
  %1061 = vmatprep.subr.mxu0 0.0
  %1062 = vmatpush2.msra.mxu0 0.0
  %1063 = vmatprep.subr.mxu0 0.0
  %1064 = vmatpush2.msra.mxu0 0.0
  %1065 = vmatprep.subr.mxu0 0.0
  %1066 = vmatpush2.msra.mxu0 0.0
  %1067 = vmatprep.subr.mxu0 0.0
  %1068 = vmatpush2.msra.mxu0 0.0
  %1069 = vmatprep.subr.mxu0 0.0
  %1070 = vmatpush2.msra.mxu0 0.0
  %1071 = vmatprep.subr.mxu0 0.0
  %1072 = vmatpush2.msra.mxu0 0.0
  %1073 = vmatprep.subr.mxu0 0.0
  %1074 = vmatpush2.msra.mxu0 0.0
  %1075 = vmatprep.subr.mxu0 0.0
  %1076 = vmatpush2.msra.mxu0 0.0
  %1077 = vmatprep.subr.mxu0 0.0
  %1078 = vmatpush2.msra.mxu0 0.0
  %1079 = vmatprep.subr.mxu0 0.0
  %1080 = vmatpush2.msra.mxu0 0.0
  %1081 = vmatprep.subr.mxu0 0.0
  %1082 = vmatpush2.msra.mxu0 0.0
  %1083 = vmatprep.subr.mxu0 0.0
  %1084 = vmatpush2.msra.mxu0 0.0
  %1085 = vmatprep.subr.mxu0 0.0
  %1086 = vmatpush2.msra.mxu0 0.0
  %1087 = vmatprep.subr.mxu0 0.0
  %1088 = vmatpush2.msra.mxu0 0.0
  %1089 = vmatprep.subr.mxu0 0.0
  %1090 = vmatpush2.msra.mxu0 0.0
  %1091 = vmatprep.mubr.f32.mxu0 0.0
  %1092 = vmatmul.mubr.f32.gmra.mxu0 %v47
  %v1093 = vpop.f32.mrf.mxu0
  %v1094 = vadd.f32 0.0, %v1093
  %v1095 = vpop.f32.mrf.mxu0
  %1096 = vmatprep.mubr.f32.mxu0 0.0
  %1097 = vmatmul.mubr.f32.gmra.mxu0 %v50
  %v1098 = vpop.f32.mrf.mxu0
  %v1099 = vadd.f32 0.0, %v1098
  %v1100 = vpop.f32.mrf.mxu0
  %1101 = vdwg.mxu0
  %1102 = vmatprep.subr.mxu0 0.0
  %1103 = vmatpush1.msra.mxu0 0.0
  %1104 = vmatprep.subr.mxu0 0.0
  %1105 = vmatpush1.msra.mxu0 0.0
  %1106 = vmatprep.subr.mxu0 0.0
  %1107 = vmatpush1.msra.mxu0 0.0
  %1108 = vmatprep.subr.mxu0 0.0
  %1109 = vmatpush1.msra.mxu0 0.0
  %1110 = vmatprep.subr.mxu0 0.0
  %1111 = vmatpush1.msra.mxu0 0.0
  %1112 = vmatprep.subr.mxu0 0.0
  %1113 = vmatpush1.msra.mxu0 0.0
  %1114 = vmatprep.subr.mxu0 0.0
  %1115 = vmatpush1.msra.mxu0 0.0
  %1116 = vmatprep.subr.mxu0 0.0
  %1117 = vmatpush1.msra.mxu0 0.0
  %1118 = vmatprep.subr.mxu0 0.0
  %1119 = vmatpush1.msra.mxu0 0.0
  %1120 = vmatprep.subr.mxu0 0.0
  %1121 = vmatpush1.msra.mxu0 0.0
  %1122 = vmatprep.subr.mxu0 0.0
  %1123 = vmatpush1.msra.mxu0 0.0
  %1124 = vmatprep.subr.mxu0 0.0
  %1125 = vmatpush1.msra.mxu0 0.0
  %1126 = vmatprep.subr.mxu0 0.0
  %1127 = vmatpush1.msra.mxu0 0.0
  %1128 = vmatprep.subr.mxu0 0.0
  %1129 = vmatpush1.msra.mxu0 0.0
  %1130 = vmatprep.subr.mxu0 0.0
  %1131 = vmatpush1.msra.mxu0 0.0
  %1132 = vmatprep.subr.mxu0 0.0
  %1133 = vmatpush1.msra.mxu0 %v27
  %1134 = vmatprep.subr.mxu0 0.0
  %1135 = vmatpush2.msra.mxu0 0.0
  %1136 = vmatprep.subr.mxu0 0.0
  %1137 = vmatpush2.msra.mxu0 0.0
  %1138 = vmatprep.subr.mxu0 0.0
  %1139 = vmatpush2.msra.mxu0 0.0
  %1140 = vmatprep.subr.mxu0 0.0
  %1141 = vmatpush2.msra.mxu0 0.0
  %1142 = vmatprep.subr.mxu0 0.0
  %1143 = vmatpush2.msra.mxu0 0.0
  %1144 = vmatprep.subr.mxu0 0.0
  %1145 = vmatpush2.msra.mxu0 0.0
  %1146 = vmatprep.subr.mxu0 0.0
  %1147 = vmatpush2.msra.mxu0 0.0
  %1148 = vmatprep.subr.mxu0 0.0
  %1149 = vmatpush2.msra.mxu0 0.0
  %1150 = vmatprep.subr.mxu0 0.0
  %1151 = vmatpush2.msra.mxu0 0.0
  %1152 = vmatprep.subr.mxu0 0.0
  %1153 = vmatpush2.msra.mxu0 0.0
  %1154 = vmatprep.subr.mxu0 0.0
  %1155 = vmatpush2.msra.mxu0 0.0
  %1156 = vmatprep.subr.mxu0 0.0
  %1157 = vmatpush2.msra.mxu0 0.0
  %1158 = vmatprep.subr.mxu0 0.0
  %1159 = vmatpush2.msra.mxu0 0.0
  %1160 = vmatprep.subr.mxu0 0.0
  %1161 = vmatpush2.msra.mxu0 0.0
  %1162 = vmatprep.subr.mxu0 0.0
  %1163 = vmatpush2.msra.mxu0 0.0
  %1164 = vmatprep.subr.mxu0 0.0
  %1165 = vmatpush2.msra.mxu0 0.0
  %1166 = vmatprep.mubr.f32.mxu0 0.0
  %1167 = vmatmul.mubr.f32.gmra.mxu0 %v47
  %v1168 = vpop.f32.mrf.mxu0
  %v1169 = vadd.f32 0.0, %v1168
  %v1170 = vpop.f32.mrf.mxu0
  %1171 = vmatprep.mubr.f32.mxu0 0.0
  %1172 = vmatmul.mubr.f32.gmra.mxu0 %v50
  %v1173 = vpop.f32.mrf.mxu0
  %v1174 = vadd.f32 0.0, %v1173
  %v1175 = vpop.f32.mrf.mxu0
  %1176 = vdwg.mxu0
  %1177 = vmatprep.subr.mxu0 0.0
  %1178 = vmatpush1.msra.mxu0 0.0
  %1179 = vmatprep.subr.mxu0 0.0
  %1180 = vmatpush1.msra.mxu0 0.0
  %1181 = vmatprep.subr.mxu0 0.0
  %1182 = vmatpush1.msra.mxu0 0.0
  %1183 = vmatprep.subr.mxu0 0.0
  %1184 = vmatpush1.msra.mxu0 0.0
  %1185 = vmatprep.subr.mxu0 0.0
  %1186 = vmatpush1.msra.mxu0 0.0
  %1187 = vmatprep.subr.mxu0 0.0
  %1188 = vmatpush1.msra.mxu0 0.0
  %1189 = vmatprep.subr.mxu0 0.0
  %1190 = vmatpush1.msra.mxu0 0.0
  %1191 = vmatprep.subr.mxu0 0.0
  %1192 = vmatpush1.msra.mxu0 0.0
  %1193 = vmatprep.subr.mxu0 0.0
  %1194 = vmatpush1.msra.mxu0 0.0
  %1195 = vmatprep.subr.mxu0 0.0
  %1196 = vmatpush1.msra.mxu0 0.0
  %1197 = vmatprep.subr.mxu0 0.0
  %1198 = vmatpush1.msra.mxu0 0.0
  %1199 = vmatprep.subr.mxu0 0.0
  %1200 = vmatpush1.msra.mxu0 0.0
  %1201 = vmatprep.subr.mxu0 0.0
  %1202 = vmatpush1.msra.mxu0 0.0
  %1203 = vmatprep.subr.mxu0 0.0
  %1204 = vmatpush1.msra.mxu0 0.0
  %1205 = vmatprep.subr.mxu0 0.0
  %1206 = vmatpush1.msra.mxu0 0.0
  %1207 = vmatprep.subr.mxu0 0.0
  %1208 = vmatpush1.msra.mxu0 %v28
  %1209 = vmatprep.subr.mxu0 0.0
  %1210 = vmatpush2.msra.mxu0 0.0
  %1211 = vmatprep.subr.mxu0 0.0
  %1212 = vmatpush2.msra.mxu0 0.0
  %1213 = vmatprep.subr.mxu0 0.0
  %1214 = vmatpush2.msra.mxu0 0.0
  %1215 = vmatprep.subr.mxu0 0.0
  %1216 = vmatpush2.msra.mxu0 0.0
  %1217 = vmatprep.subr.mxu0 0.0
  %1218 = vmatpush2.msra.mxu0 0.0
  %1219 = vmatprep.subr.mxu0 0.0
  %1220 = vmatpush2.msra.mxu0 0.0
  %1221 = vmatprep.subr.mxu0 0.0
  %1222 = vmatpush2.msra.mxu0 0.0
  %1223 = vmatprep.subr.mxu0 0.0
  %1224 = vmatpush2.msra.mxu0 0.0
  %1225 = vmatprep.subr.mxu0 0.0
  %1226 = vmatpush2.msra.mxu0 0.0
  %1227 = vmatprep.subr.mxu0 0.0
  %1228 = vmatpush2.msra.mxu0 0.0
  %1229 = vmatprep.subr.mxu0 0.0
  %1230 = vmatpush2.msra.mxu0 0.0
  %1231 = vmatprep.subr.mxu0 0.0
  %1232 = vmatpush2.msra.mxu0 0.0
  %1233 = vmatprep.subr.mxu0 0.0
  %1234 = vmatpush2.msra.mxu0 0.0
  %1235 = vmatprep.subr.mxu0 0.0
  %1236 = vmatpush2.msra.mxu0 0.0
  %1237 = vmatprep.subr.mxu0 0.0
  %1238 = vmatpush2.msra.mxu0 0.0
  %1239 = vmatprep.subr.mxu0 0.0
  %1240 = vmatpush2.msra.mxu0 0.0
  %1241 = vmatprep.mubr.f32.mxu0 0.0
  %1242 = vmatmul.mubr.f32.gmra.mxu0 %v47
  %v1243 = vpop.f32.mrf.mxu0
  %v1244 = vadd.f32 0.0, %v1243
  %v1245 = vpop.f32.mrf.mxu0
  %1246 = vmatprep.mubr.f32.mxu0 0.0
  %1247 = vmatmul.mubr.f32.gmra.mxu0 %v50
  %v1248 = vpop.f32.mrf.mxu0
  %v1249 = vadd.f32 0.0, %v1248
  %v1250 = vpop.f32.mrf.mxu0
  %1251 = vdwg.mxu0
  %1252 = vmatprep.subr.mxu0 0.0
  %1253 = vmatpush1.msra.mxu0 0.0
  %1254 = vmatprep.subr.mxu0 0.0
  %1255 = vmatpush1.msra.mxu0 0.0
  %1256 = vmatprep.subr.mxu0 0.0
  %1257 = vmatpush1.msra.mxu0 0.0
  %1258 = vmatprep.subr.mxu0 0.0
  %1259 = vmatpush1.msra.mxu0 0.0
  %1260 = vmatprep.subr.mxu0 0.0
  %1261 = vmatpush1.msra.mxu0 0.0
  %1262 = vmatprep.subr.mxu0 0.0
  %1263 = vmatpush1.msra.mxu0 0.0
  %1264 = vmatprep.subr.mxu0 0.0
  %1265 = vmatpush1.msra.mxu0 0.0
  %1266 = vmatprep.subr.mxu0 0.0
  %1267 = vmatpush1.msra.mxu0 0.0
  %1268 = vmatprep.subr.mxu0 0.0
  %1269 = vmatpush1.msra.mxu0 0.0
  %1270 = vmatprep.subr.mxu0 0.0
  %1271 = vmatpush1.msra.mxu0 0.0
  %1272 = vmatprep.subr.mxu0 0.0
  %1273 = vmatpush1.msra.mxu0 0.0
  %1274 = vmatprep.subr.mxu0 0.0
  %1275 = vmatpush1.msra.mxu0 0.0
  %1276 = vmatprep.subr.mxu0 0.0
  %1277 = vmatpush1.msra.mxu0 0.0
  %1278 = vmatprep.subr.mxu0 0.0
  %1279 = vmatpush1.msra.mxu0 0.0
  %1280 = vmatprep.subr.mxu0 0.0
  %1281 = vmatpush1.msra.mxu0 0.0
  %1282 = vmatprep.subr.mxu0 0.0
  %1283 = vmatpush1.msra.mxu0 %v29
  %1284 = vmatprep.subr.mxu0 0.0
  %1285 = vmatpush2.msra.mxu0 0.0
  %1286 = vmatprep.subr.mxu0 0.0
  %1287 = vmatpush2.msra.mxu0 0.0
  %1288 = vmatprep.subr.mxu0 0.0
  %1289 = vmatpush2.msra.mxu0 0.0
  %1290 = vmatprep.subr.mxu0 0.0
  %1291 = vmatpush2.msra.mxu0 0.0
  %1292 = vmatprep.subr.mxu0 0.0
  %1293 = vmatpush2.msra.mxu0 0.0
  %1294 = vmatprep.subr.mxu0 0.0
  %1295 = vmatpush2.msra.mxu0 0.0
  %1296 = vmatprep.subr.mxu0 0.0
  %1297 = vmatpush2.msra.mxu0 0.0
  %1298 = vmatprep.subr.mxu0 0.0
  %1299 = vmatpush2.msra.mxu0 0.0
  %1300 = vmatprep.subr.mxu0 0.0
  %1301 = vmatpush2.msra.mxu0 0.0
  %1302 = vmatprep.subr.mxu0 0.0
  %1303 = vmatpush2.msra.mxu0 0.0
  %1304 = vmatprep.subr.mxu0 0.0
  %1305 = vmatpush2.msra.mxu0 0.0
  %1306 = vmatprep.subr.mxu0 0.0
  %1307 = vmatpush2.msra.mxu0 0.0
  %1308 = vmatprep.subr.mxu0 0.0
  %1309 = vmatpush2.msra.mxu0 0.0
  %1310 = vmatprep.subr.mxu0 0.0
  %1311 = vmatpush2.msra.mxu0 0.0
  %1312 = vmatprep.subr.mxu0 0.0
  %1313 = vmatpush2.msra.mxu0 0.0
  %1314 = vmatprep.subr.mxu0 0.0
  %1315 = vmatpush2.msra.mxu0 0.0
  %1316 = vmatprep.mubr.f32.mxu0 0.0
  %1317 = vmatmul.mubr.f32.gmra.mxu0 %v47
  %v1318 = vpop.f32.mrf.mxu0
  %v1319 = vadd.f32 0.0, %v1318
  %v1320 = vpop.f32.mrf.mxu0
  %1321 = vmatprep.mubr.f32.mxu0 0.0
  %1322 = vmatmul.mubr.f32.gmra.mxu0 %v50
  %v1323 = vpop.f32.mrf.mxu0
  %v1324 = vadd.f32 0.0, %v1323
  %v1325 = vpop.f32.mrf.mxu0
  %1326 = vdwg.mxu0
  %1327 = vmatprep.subr.mxu0 0.0
  %1328 = vmatpush1.msra.mxu0 0.0
  %1329 = vmatprep.subr.mxu0 0.0
  %1330 = vmatpush1.msra.mxu0 0.0
  %1331 = vmatprep.subr.mxu0 0.0
  %1332 = vmatpush1.msra.mxu0 0.0
  %1333 = vmatprep.subr.mxu0 0.0
  %1334 = vmatpush1.msra.mxu0 0.0
  %1335 = vmatprep.subr.mxu0 0.0
  %1336 = vmatpush1.msra.mxu0 0.0
  %1337 = vmatprep.subr.mxu0 0.0
  %1338 = vmatpush1.msra.mxu0 0.0
  %1339 = vmatprep.subr.mxu0 0.0
  %1340 = vmatpush1.msra.mxu0 0.0
  %1341 = vmatprep.subr.mxu0 0.0
  %1342 = vmatpush1.msra.mxu0 0.0
  %1343 = vmatprep.subr.mxu0 0.0
  %1344 = vmatpush1.msra.mxu0 0.0
  %1345 = vmatprep.subr.mxu0 0.0
  %1346 = vmatpush1.msra.mxu0 0.0
  %1347 = vmatprep.subr.mxu0 0.0
  %1348 = vmatpush1.msra.mxu0 0.0
  %1349 = vmatprep.subr.mxu0 0.0
  %1350 = vmatpush1.msra.mxu0 0.0
  %1351 = vmatprep.subr.mxu0 0.0
  %1352 = vmatpush1.msra.mxu0 0.0
  %1353 = vmatprep.subr.mxu0 0.0
  %1354 = vmatpush1.msra.mxu0 0.0
  %1355 = vmatprep.subr.mxu0 0.0
  %1356 = vmatpush1.msra.mxu0 0.0
  %1357 = vmatprep.subr.mxu0 0.0
  %1358 = vmatpush1.msra.mxu0 %v30
  %1359 = vmatprep.subr.mxu0 0.0
  %1360 = vmatpush2.msra.mxu0 0.0
  %1361 = vmatprep.subr.mxu0 0.0
  %1362 = vmatpush2.msra.mxu0 0.0
  %1363 = vmatprep.subr.mxu0 0.0
  %1364 = vmatpush2.msra.mxu0 0.0
  %1365 = vmatprep.subr.mxu0 0.0
  %1366 = vmatpush2.msra.mxu0 0.0
  %1367 = vmatprep.subr.mxu0 0.0
  %1368 = vmatpush2.msra.mxu0 0.0
  %1369 = vmatprep.subr.mxu0 0.0
  %1370 = vmatpush2.msra.mxu0 0.0
  %1371 = vmatprep.subr.mxu0 0.0
  %1372 = vmatpush2.msra.mxu0 0.0
  %1373 = vmatprep.subr.mxu0 0.0
  %1374 = vmatpush2.msra.mxu0 0.0
  %1375 = vmatprep.subr.mxu0 0.0
  %1376 = vmatpush2.msra.mxu0 0.0
  %1377 = vmatprep.subr.mxu0 0.0
  %1378 = vmatpush2.msra.mxu0 0.0
  %1379 = vmatprep.subr.mxu0 0.0
  %1380 = vmatpush2.msra.mxu0 0.0
  %1381 = vmatprep.subr.mxu0 0.0
  %1382 = vmatpush2.msra.mxu0 0.0
  %1383 = vmatprep.subr.mxu0 0.0
  %1384 = vmatpush2.msra.mxu0 0.0
  %1385 = vmatprep.subr.mxu0 0.0
  %1386 = vmatpush2.msra.mxu0 0.0
  %1387 = vmatprep.subr.mxu0 0.0
  %1388 = vmatpush2.msra.mxu0 0.0
  %1389 = vmatprep.subr.mxu0 0.0
  %1390 = vmatpush2.msra.mxu0 0.0
  %1391 = vmatprep.mubr.f32.mxu0 0.0
  %1392 = vmatmul.mubr.f32.gmra.mxu0 %v47
  %v1393 = vpop.f32.mrf.mxu0
  %v1394 = vadd.f32 0.0, %v1393
  %v1395 = vpop.f32.mrf.mxu0
  %1396 = vmatprep.mubr.f32.mxu0 0.0
  %1397 = vmatmul.mubr.f32.gmra.mxu0 %v50
  %v1398 = vpop.f32.mrf.mxu0
  %v1399 = vadd.f32 0.0, %v1398
  %v1400 = vpop.f32.mrf.mxu0
  %1401 = vdwg.mxu0
  %1402 = vmatprep.subr.mxu0 0.0
  %1403 = vmatpush1.msra.mxu0 0.0
  %1404 = vmatprep.subr.mxu0 0.0
  %1405 = vmatpush1.msra.mxu0 0.0
  %1406 = vmatprep.subr.mxu0 0.0
  %1407 = vmatpush1.msra.mxu0 0.0
  %1408 = vmatprep.subr.mxu0 0.0
  %1409 = vmatpush1.msra.mxu0 0.0
  %1410 = vmatprep.subr.mxu0 0.0
  %1411 = vmatpush1.msra.mxu0 0.0
  %1412 = vmatprep.subr.mxu0 0.0
  %1413 = vmatpush1.msra.mxu0 0.0
  %1414 = vmatprep.subr.mxu0 0.0
  %1415 = vmatpush1.msra.mxu0 0.0
  %1416 = vmatprep.subr.mxu0 0.0
  %1417 = vmatpush1.msra.mxu0 0.0
  %1418 = vmatprep.subr.mxu0 0.0
  %1419 = vmatpush1.msra.mxu0 0.0
  %1420 = vmatprep.subr.mxu0 0.0
  %1421 = vmatpush1.msra.mxu0 0.0
  %1422 = vmatprep.subr.mxu0 0.0
  %1423 = vmatpush1.msra.mxu0 0.0
  %1424 = vmatprep.subr.mxu0 0.0
  %1425 = vmatpush1.msra.mxu0 0.0
  %1426 = vmatprep.subr.mxu0 0.0
  %1427 = vmatpush1.msra.mxu0 0.0
  %1428 = vmatprep.subr.mxu0 0.0
  %1429 = vmatpush1.msra.mxu0 0.0
  %1430 = vmatprep.subr.mxu0 0.0
  %1431 = vmatpush1.msra.mxu0 0.0
  %1432 = vmatprep.subr.mxu0 0.0
  %1433 = vmatpush1.msra.mxu0 %v31
  %1434 = vmatprep.subr.mxu0 0.0
  %1435 = vmatpush2.msra.mxu0 0.0
  %1436 = vmatprep.subr.mxu0 0.0
  %1437 = vmatpush2.msra.mxu0 0.0
  %1438 = vmatprep.subr.mxu0 0.0
  %1439 = vmatpush2.msra.mxu0 0.0
  %1440 = vmatprep.subr.mxu0 0.0
  %1441 = vmatpush2.msra.mxu0 0.0
  %1442 = vmatprep.subr.mxu0 0.0
  %1443 = vmatpush2.msra.mxu0 0.0
  %1444 = vmatprep.subr.mxu0 0.0
  %1445 = vmatpush2.msra.mxu0 0.0
  %1446 = vmatprep.subr.mxu0 0.0
  %1447 = vmatpush2.msra.mxu0 0.0
  %1448 = vmatprep.subr.mxu0 0.0
  %1449 = vmatpush2.msra.mxu0 0.0
  %1450 = vmatprep.subr.mxu0 0.0
  %1451 = vmatpush2.msra.mxu0 0.0
  %1452 = vmatprep.subr.mxu0 0.0
  %1453 = vmatpush2.msra.mxu0 0.0
  %1454 = vmatprep.subr.mxu0 0.0
  %1455 = vmatpush2.msra.mxu0 0.0
  %1456 = vmatprep.subr.mxu0 0.0
  %1457 = vmatpush2.msra.mxu0 0.0
  %1458 = vmatprep.subr.mxu0 0.0
  %1459 = vmatpush2.msra.mxu0 0.0
  %1460 = vmatprep.subr.mxu0 0.0
  %1461 = vmatpush2.msra.mxu0 0.0
  %1462 = vmatprep.subr.mxu0 0.0
  %1463 = vmatpush2.msra.mxu0 0.0
  %1464 = vmatprep.subr.mxu0 0.0
  %1465 = vmatpush2.msra.mxu0 0.0
  %1466 = vmatprep.mubr.f32.mxu0 0.0
  %1467 = vmatmul.mubr.f32.gmra.mxu0 %v47
  %v1468 = vpop.f32.mrf.mxu0
  %v1469 = vadd.f32 0.0, %v1468
  %v1470 = vpop.f32.mrf.mxu0
  %1471 = vmatprep.mubr.f32.mxu0 0.0
  %1472 = vmatmul.mubr.f32.gmra.mxu0 %v50
  %v1473 = vpop.f32.mrf.mxu0
  %v1474 = vadd.f32 0.0, %v1473
  %v1475 = vpop.f32.mrf.mxu0
  %1476 = vdwg.mxu0
  %1477 = vmatprep.subr.mxu0 0.0
  %1478 = vmatpush1.msra.mxu0 0.0
  %1479 = vmatprep.subr.mxu0 0.0
  %1480 = vmatpush1.msra.mxu0 0.0
  %1481 = vmatprep.subr.mxu0 0.0
  %1482 = vmatpush1.msra.mxu0 0.0
  %1483 = vmatprep.subr.mxu0 0.0
  %1484 = vmatpush1.msra.mxu0 0.0
  %1485 = vmatprep.subr.mxu0 0.0
  %1486 = vmatpush1.msra.mxu0 0.0
  %1487 = vmatprep.subr.mxu0 0.0
  %1488 = vmatpush1.msra.mxu0 0.0
  %1489 = vmatprep.subr.mxu0 0.0
  %1490 = vmatpush1.msra.mxu0 0.0
  %1491 = vmatprep.subr.mxu0 0.0
  %1492 = vmatpush1.msra.mxu0 0.0
  %1493 = vmatprep.subr.mxu0 0.0
  %1494 = vmatpush1.msra.mxu0 0.0
  %1495 = vmatprep.subr.mxu0 0.0
  %1496 = vmatpush1.msra.mxu0 0.0
  %1497 = vmatprep.subr.mxu0 0.0
  %1498 = vmatpush1.msra.mxu0 0.0
  %1499 = vmatprep.subr.mxu0 0.0
  %1500 = vmatpush1.msra.mxu0 0.0
  %1501 = vmatprep.subr.mxu0 0.0
  %1502 = vmatpush1.msra.mxu0 0.0
  %1503 = vmatprep.subr.mxu0 0.0
  %1504 = vmatpush1.msra.mxu0 0.0
  %1505 = vmatprep.subr.mxu0 0.0
  %1506 = vmatpush1.msra.mxu0 0.0
  %1507 = vmatprep.subr.mxu0 0.0
  %1508 = vmatpush1.msra.mxu0 %v32
  %1509 = vmatprep.subr.mxu0 0.0
  %1510 = vmatpush2.msra.mxu0 0.0
  %1511 = vmatprep.subr.mxu0 0.0
  %1512 = vmatpush2.msra.mxu0 0.0
  %1513 = vmatprep.subr.mxu0 0.0
  %1514 = vmatpush2.msra.mxu0 0.0
  %1515 = vmatprep.subr.mxu0 0.0
  %1516 = vmatpush2.msra.mxu0 0.0
  %1517 = vmatprep.subr.mxu0 0.0
  %1518 = vmatpush2.msra.mxu0 0.0
  %1519 = vmatprep.subr.mxu0 0.0
  %1520 = vmatpush2.msra.mxu0 0.0
  %1521 = vmatprep.subr.mxu0 0.0
  %1522 = vmatpush2.msra.mxu0 0.0
  %1523 = vmatprep.subr.mxu0 0.0
  %1524 = vmatpush2.msra.mxu0 0.0
  %1525 = vmatprep.subr.mxu0 0.0
  %1526 = vmatpush2.msra.mxu0 0.0
  %1527 = vmatprep.subr.mxu0 0.0
  %1528 = vmatpush2.msra.mxu0 0.0
  %1529 = vmatprep.subr.mxu0 0.0
  %1530 = vmatpush2.msra.mxu0 0.0
  %1531 = vmatprep.subr.mxu0 0.0
  %1532 = vmatpush2.msra.mxu0 0.0
  %1533 = vmatprep.subr.mxu0 0.0
  %1534 = vmatpush2.msra.mxu0 0.0
  %1535 = vmatprep.subr.mxu0 0.0
  %1536 = vmatpush2.msra.mxu0 0.0
  %1537 = vmatprep.subr.mxu0 0.0
  %1538 = vmatpush2.msra.mxu0 0.0
  %1539 = vmatprep.subr.mxu0 0.0
  %1540 = vmatpush2.msra.mxu0 0.0
  %1541 = vmatprep.mubr.f32.mxu0 0.0
  %1542 = vmatmul.mubr.f32.gmra.mxu0 %v47
  %v1543 = vpop.f32.mrf.mxu0
  %v1544 = vadd.f32 0.0, %v1543
  %v1545 = vpop.f32.mrf.mxu0
  %1546 = vmatprep.mubr.f32.mxu0 0.0
  %1547 = vmatmul.mubr.f32.gmra.mxu0 %v50
  %v1548 = vpop.f32.mrf.mxu0
  %v1549 = vadd.f32 0.0, %v1548
  %v1550 = vpop.f32.mrf.mxu0
  %1551 = vdwg.mxu0
  %1552 = vmatprep.subr.mxu0 0.0
  %1553 = vmatpush1.msra.mxu0 0.0
  %1554 = vmatprep.subr.mxu0 0.0
  %1555 = vmatpush1.msra.mxu0 0.0
  %1556 = vmatprep.subr.mxu0 0.0
  %1557 = vmatpush1.msra.mxu0 0.0
  %1558 = vmatprep.subr.mxu0 0.0
  %1559 = vmatpush1.msra.mxu0 0.0
  %1560 = vmatprep.subr.mxu0 0.0
  %1561 = vmatpush1.msra.mxu0 0.0
  %1562 = vmatprep.subr.mxu0 0.0
  %1563 = vmatpush1.msra.mxu0 0.0
  %1564 = vmatprep.subr.mxu0 0.0
  %1565 = vmatpush1.msra.mxu0 0.0
  %1566 = vmatprep.subr.mxu0 0.0
  %1567 = vmatpush1.msra.mxu0 0.0
  %1568 = vmatprep.subr.mxu0 0.0
  %1569 = vmatpush1.msra.mxu0 0.0
  %1570 = vmatprep.subr.mxu0 0.0
  %1571 = vmatpush1.msra.mxu0 0.0
  %1572 = vmatprep.subr.mxu0 0.0
  %1573 = vmatpush1.msra.mxu0 0.0
  %1574 = vmatprep.subr.mxu0 0.0
  %1575 = vmatpush1.msra.mxu0 0.0
  %1576 = vmatprep.subr.mxu0 0.0
  %1577 = vmatpush1.msra.mxu0 0.0
  %1578 = vmatprep.subr.mxu0 0.0
  %1579 = vmatpush1.msra.mxu0 0.0
  %1580 = vmatprep.subr.mxu0 0.0
  %1581 = vmatpush1.msra.mxu0 0.0
  %1582 = vmatprep.subr.mxu0 0.0
  %1583 = vmatpush1.msra.mxu0 %v33
  %1584 = vmatprep.subr.mxu0 0.0
  %1585 = vmatpush2.msra.mxu0 0.0
  %1586 = vmatprep.subr.mxu0 0.0
  %1587 = vmatpush2.msra.mxu0 0.0
  %1588 = vmatprep.subr.mxu0 0.0
  %1589 = vmatpush2.msra.mxu0 0.0
  %1590 = vmatprep.subr.mxu0 0.0
  %1591 = vmatpush2.msra.mxu0 0.0
  %1592 = vmatprep.subr.mxu0 0.0
  %1593 = vmatpush2.msra.mxu0 0.0
  %1594 = vmatprep.subr.mxu0 0.0
  %1595 = vmatpush2.msra.mxu0 0.0
  %1596 = vmatprep.subr.mxu0 0.0
  %1597 = vmatpush2.msra.mxu0 0.0
  %1598 = vmatprep.subr.mxu0 0.0
  %1599 = vmatpush2.msra.mxu0 0.0
  %1600 = vmatprep.subr.mxu0 0.0
  %1601 = vmatpush2.msra.mxu0 0.0
  %1602 = vmatprep.subr.mxu0 0.0
  %1603 = vmatpush2.msra.mxu0 0.0
  %1604 = vmatprep.subr.mxu0 0.0
  %1605 = vmatpush2.msra.mxu0 0.0
  %1606 = vmatprep.subr.mxu0 0.0
  %1607 = vmatpush2.msra.mxu0 0.0
  %1608 = vmatprep.subr.mxu0 0.0
  %1609 = vmatpush2.msra.mxu0 0.0
  %1610 = vmatprep.subr.mxu0 0.0
  %1611 = vmatpush2.msra.mxu0 0.0
  %1612 = vmatprep.subr.mxu0 0.0
  %1613 = vmatpush2.msra.mxu0 0.0
  %1614 = vmatprep.subr.mxu0 0.0
  %1615 = vmatpush2.msra.mxu0 0.0
  %1616 = vmatprep.mubr.f32.mxu0 0.0
  %1617 = vmatmul.mubr.f32.gmra.mxu0 %v47
  %v1618 = vpop.f32.mrf.mxu0
  %v1619 = vadd.f32 0.0, %v1618
  %v1620 = vpop.f32.mrf.mxu0
  %1621 = vmatprep.mubr.f32.mxu0 0.0
  %1622 = vmatmul.mubr.f32.gmra.mxu0 %v50
  %v1623 = vpop.f32.mrf.mxu0
  %v1624 = vadd.f32 0.0, %v1623
  %v1625 = vpop.f32.mrf.mxu0
  %1626 = vdwg.mxu0
  %1627 = vmatprep.subr.mxu0 0.0
  %1628 = vmatpush1.msra.mxu0 0.0
  %1629 = vmatprep.subr.mxu0 0.0
  %1630 = vmatpush1.msra.mxu0 0.0
  %1631 = vmatprep.subr.mxu0 0.0
  %1632 = vmatpush1.msra.mxu0 0.0
  %1633 = vmatprep.subr.mxu0 0.0
  %1634 = vmatpush1.msra.mxu0 0.0
  %1635 = vmatprep.subr.mxu0 0.0
  %1636 = vmatpush1.msra.mxu0 0.0
  %1637 = vmatprep.subr.mxu0 0.0
  %1638 = vmatpush1.msra.mxu0 0.0
  %1639 = vmatprep.subr.mxu0 0.0
  %1640 = vmatpush1.msra.mxu0 0.0
  %1641 = vmatprep.subr.mxu0 0.0
  %1642 = vmatpush1.msra.mxu0 0.0
  %1643 = vmatprep.subr.mxu0 0.0
  %1644 = vmatpush1.msra.mxu0 0.0
  %1645 = vmatprep.subr.mxu0 0.0
  %1646 = vmatpush1.msra.mxu0 0.0
  %1647 = vmatprep.subr.mxu0 0.0
  %1648 = vmatpush1.msra.mxu0 0.0
  %1649 = vmatprep.subr.mxu0 0.0
  %1650 = vmatpush1.msra.mxu0 0.0
  %1651 = vmatprep.subr.mxu0 0.0
  %1652 = vmatpush1.msra.mxu0 0.0
  %1653 = vmatprep.subr.mxu0 0.0
  %1654 = vmatpush1.msra.mxu0 0.0
  %1655 = vmatprep.subr.mxu0 0.0
  %1656 = vmatpush1.msra.mxu0 0.0
  %1657 = vmatprep.subr.mxu0 0.0
  %1658 = vmatpush1.msra.mxu0 %v34
  %1659 = vmatprep.subr.mxu0 0.0
  %1660 = vmatpush2.msra.mxu0 0.0
  %1661 = vmatprep.subr.mxu0 0.0
  %1662 = vmatpush2.msra.mxu0 0.0
  %1663 = vmatprep.subr.mxu0 0.0
  %1664 = vmatpush2.msra.mxu0 0.0
  %1665 = vmatprep.subr.mxu0 0.0
  %1666 = vmatpush2.msra.mxu0 0.0
  %1667 = vmatprep.subr.mxu0 0.0
  %1668 = vmatpush2.msra.mxu0 0.0
  %1669 = vmatprep.subr.mxu0 0.0
  %1670 = vmatpush2.msra.mxu0 0.0
  %1671 = vmatprep.subr.mxu0 0.0
  %1672 = vmatpush2.msra.mxu0 0.0
  %1673 = vmatprep.subr.mxu0 0.0
  %1674 = vmatpush2.msra.mxu0 0.0
  %1675 = vmatprep.subr.mxu0 0.0
  %1676 = vmatpush2.msra.mxu0 0.0
  %1677 = vmatprep.subr.mxu0 0.0
  %1678 = vmatpush2.msra.mxu0 0.0
  %1679 = vmatprep.subr.mxu0 0.0
  %1680 = vmatpush2.msra.mxu0 0.0
  %1681 = vmatprep.subr.mxu0 0.0
  %1682 = vmatpush2.msra.mxu0 0.0
  %1683 = vmatprep.subr.mxu0 0.0
  %1684 = vmatpush2.msra.mxu0 0.0
  %1685 = vmatprep.subr.mxu0 0.0
  %1686 = vmatpush2.msra.mxu0 0.0
  %1687 = vmatprep.subr.mxu0 0.0
  %1688 = vmatpush2.msra.mxu0 0.0
  %1689 = vmatprep.subr.mxu0 0.0
  %1690 = vmatpush2.msra.mxu0 0.0
  %1691 = vmatprep.mubr.f32.mxu0 0.0
  %1692 = vmatmul.mubr.f32.gmra.mxu0 %v47
  %v1693 = vpop.f32.mrf.mxu0
  %v1694 = vadd.f32 0.0, %v1693
  %v1695 = vpop.f32.mrf.mxu0
  %1696 = vmatprep.mubr.f32.mxu0 0.0
  %1697 = vmatmul.mubr.f32.gmra.mxu0 %v50
  %v1698 = vpop.f32.mrf.mxu0
  %v1699 = vadd.f32 0.0, %v1698
  %v1700 = vpop.f32.mrf.mxu0
  %1701 = vdwg.mxu0
  %1702 = vmatprep.subr.mxu0 0.0
  %1703 = vmatpush1.msra.mxu0 0.0
  %1704 = vmatprep.subr.mxu0 0.0
  %1705 = vmatpush1.msra.mxu0 0.0
  %1706 = vmatprep.subr.mxu0 0.0
  %1707 = vmatpush1.msra.mxu0 0.0
  %1708 = vmatprep.subr.mxu0 0.0
  %1709 = vmatpush1.msra.mxu0 0.0
  %1710 = vmatprep.subr.mxu0 0.0
  %1711 = vmatpush1.msra.mxu0 0.0
  %1712 = vmatprep.subr.mxu0 0.0
  %1713 = vmatpush1.msra.mxu0 0.0
  %1714 = vmatprep.subr.mxu0 0.0
  %1715 = vmatpush1.msra.mxu0 0.0
  %1716 = vmatprep.subr.mxu0 0.0
  %1717 = vmatpush1.msra.mxu0 0.0
  %1718 = vmatprep.subr.mxu0 0.0
  %1719 = vmatpush1.msra.mxu0 0.0
  %1720 = vmatprep.subr.mxu0 0.0
  %1721 = vmatpush1.msra.mxu0 0.0
  %1722 = vmatprep.subr.mxu0 0.0
  %1723 = vmatpush1.msra.mxu0 0.0
  %1724 = vmatprep.subr.mxu0 0.0
  %1725 = vmatpush1.msra.mxu0 0.0
  %1726 = vmatprep.subr.mxu0 0.0
  %1727 = vmatpush1.msra.mxu0 0.0
  %1728 = vmatprep.subr.mxu0 0.0
  %1729 = vmatpush1.msra.mxu0 0.0
  %1730 = vmatprep.subr.mxu0 0.0
  %1731 = vmatpush1.msra.mxu0 0.0
  %1732 = vmatprep.subr.mxu0 0.0
  %1733 = vmatpush1.msra.mxu0 %v35
  %1734 = vmatprep.subr.mxu0 0.0
  %1735 = vmatpush2.msra.mxu0 0.0
  %1736 = vmatprep.subr.mxu0 0.0
  %1737 = vmatpush2.msra.mxu0 0.0
  %1738 = vmatprep.subr.mxu0 0.0
  %1739 = vmatpush2.msra.mxu0 0.0
  %1740 = vmatprep.subr.mxu0 0.0
  %1741 = vmatpush2.msra.mxu0 0.0
  %1742 = vmatprep.subr.mxu0 0.0
  %1743 = vmatpush2.msra.mxu0 0.0
  %1744 = vmatprep.subr.mxu0 0.0
  %1745 = vmatpush2.msra.mxu0 0.0
  %1746 = vmatprep.subr.mxu0 0.0
  %1747 = vmatpush2.msra.mxu0 0.0
  %1748 = vmatprep.subr.mxu0 0.0
  %1749 = vmatpush2.msra.mxu0 0.0
  %1750 = vmatprep.subr.mxu0 0.0
  %1751 = vmatpush2.msra.mxu0 0.0
  %1752 = vmatprep.subr.mxu0 0.0
  %1753 = vmatpush2.msra.mxu0 0.0
  %1754 = vmatprep.subr.mxu0 0.0
  %1755 = vmatpush2.msra.mxu0 0.0
  %1756 = vmatprep.subr.mxu0 0.0
  %1757 = vmatpush2.msra.mxu0 0.0
  %1758 = vmatprep.subr.mxu0 0.0
  %1759 = vmatpush2.msra.mxu0 0.0
  %1760 = vmatprep.subr.mxu0 0.0
  %1761 = vmatpush2.msra.mxu0 0.0
  %1762 = vmatprep.subr.mxu0 0.0
  %1763 = vmatpush2.msra.mxu0 0.0
  %1764 = vmatprep.subr.mxu0 0.0
  %1765 = vmatpush2.msra.mxu0 0.0
  %1766 = vmatprep.mubr.f32.mxu0 0.0
  %1767 = vmatmul.mubr.f32.gmra.mxu0 %v47
  %v1768 = vpop.f32.mrf.mxu0
  %v1769 = vadd.f32 0.0, %v1768
  %v1770 = vpop.f32.mrf.mxu0
  %1771 = vmatprep.mubr.f32.mxu0 0.0
  %1772 = vmatmul.mubr.f32.gmra.mxu0 %v50
  %v1773 = vpop.f32.mrf.mxu0
  %v1774 = vadd.f32 0.0, %v1773
  %v1775 = vpop.f32.mrf.mxu0
  %1776 = vdwg.mxu0
  %1777 = vmatprep.subr.mxu0 0.0
  %1778 = vmatpush1.msra.mxu0 0.0
  %1779 = vmatprep.subr.mxu0 0.0
  %1780 = vmatpush1.msra.mxu0 0.0
  %1781 = vmatprep.subr.mxu0 0.0
  %1782 = vmatpush1.msra.mxu0 0.0
  %1783 = vmatprep.subr.mxu0 0.0
  %1784 = vmatpush1.msra.mxu0 0.0
  %1785 = vmatprep.subr.mxu0 0.0
  %1786 = vmatpush1.msra.mxu0 0.0
  %1787 = vmatprep.subr.mxu0 0.0
  %1788 = vmatpush1.msra.mxu0 0.0
  %1789 = vmatprep.subr.mxu0 0.0
  %1790 = vmatpush1.msra.mxu0 0.0
  %1791 = vmatprep.subr.mxu0 0.0
  %1792 = vmatpush1.msra.mxu0 0.0
  %1793 = vmatprep.subr.mxu0 0.0
  %1794 = vmatpush1.msra.mxu0 0.0
  %1795 = vmatprep.subr.mxu0 0.0
  %1796 = vmatpush1.msra.mxu0 0.0
  %1797 = vmatprep.subr.mxu0 0.0
  %1798 = vmatpush1.msra.mxu0 0.0
  %1799 = vmatprep.subr.mxu0 0.0
  %1800 = vmatpush1.msra.mxu0 0.0
  %1801 = vmatprep.subr.mxu0 0.0
  %1802 = vmatpush1.msra.mxu0 0.0
  %1803 = vmatprep.subr.mxu0 0.0
  %1804 = vmatpush1.msra.mxu0 0.0
  %1805 = vmatprep.subr.mxu0 0.0
  %1806 = vmatpush1.msra.mxu0 0.0
  %1807 = vmatprep.subr.mxu0 0.0
  %1808 = vmatpush1.msra.mxu0 %v36
  %1809 = vmatprep.subr.mxu0 0.0
  %1810 = vmatpush2.msra.mxu0 0.0
  %1811 = vmatprep.subr.mxu0 0.0
  %1812 = vmatpush2.msra.mxu0 0.0
  %1813 = vmatprep.subr.mxu0 0.0
  %1814 = vmatpush2.msra.mxu0 0.0
  %1815 = vmatprep.subr.mxu0 0.0
  %1816 = vmatpush2.msra.mxu0 0.0
  %1817 = vmatprep.subr.mxu0 0.0
  %1818 = vmatpush2.msra.mxu0 0.0
  %1819 = vmatprep.subr.mxu0 0.0
  %1820 = vmatpush2.msra.mxu0 0.0
  %1821 = vmatprep.subr.mxu0 0.0
  %1822 = vmatpush2.msra.mxu0 0.0
  %1823 = vmatprep.subr.mxu0 0.0
  %1824 = vmatpush2.msra.mxu0 0.0
  %1825 = vmatprep.subr.mxu0 0.0
  %1826 = vmatpush2.msra.mxu0 0.0
  %1827 = vmatprep.subr.mxu0 0.0
  %1828 = vmatpush2.msra.mxu0 0.0
  %1829 = vmatprep.subr.mxu0 0.0
  %1830 = vmatpush2.msra.mxu0 0.0
  %1831 = vmatprep.subr.mxu0 0.0
  %1832 = vmatpush2.msra.mxu0 0.0
  %1833 = vmatprep.subr.mxu0 0.0
  %1834 = vmatpush2.msra.mxu0 0.0
  %1835 = vmatprep.subr.mxu0 0.0
  %1836 = vmatpush2.msra.mxu0 0.0
  %1837 = vmatprep.subr.mxu0 0.0
  %1838 = vmatpush2.msra.mxu0 0.0
  %1839 = vmatprep.subr.mxu0 0.0
  %1840 = vmatpush2.msra.mxu0 0.0
  %1841 = vmatprep.mubr.f32.mxu0 0.0
  %1842 = vmatmul.mubr.f32.gmra.mxu0 %v47
  %v1843 = vpop.f32.mrf.mxu0
  %v1844 = vadd.f32 0.0, %v1843
  %v1845 = vpop.f32.mrf.mxu0
  %1846 = vmatprep.mubr.f32.mxu0 0.0
  %1847 = vmatmul.mubr.f32.gmra.mxu0 %v50
  %v1848 = vpop.f32.mrf.mxu0
  %v1849 = vadd.f32 0.0, %v1848
  %v1850 = vpop.f32.mrf.mxu0
  %1851 = vdwg.mxu0
  %1852 = vmatprep.subr.mxu0 0.0
  %1853 = vmatpush1.msra.mxu0 0.0
  %1854 = vmatprep.subr.mxu0 0.0
  %1855 = vmatpush1.msra.mxu0 0.0
  %1856 = vmatprep.subr.mxu0 0.0
  %1857 = vmatpush1.msra.mxu0 0.0
  %1858 = vmatprep.subr.mxu0 0.0
  %1859 = vmatpush1.msra.mxu0 0.0
  %1860 = vmatprep.subr.mxu0 0.0
  %1861 = vmatpush1.msra.mxu0 0.0
  %1862 = vmatprep.subr.mxu0 0.0
  %1863 = vmatpush1.msra.mxu0 0.0
  %1864 = vmatprep.subr.mxu0 0.0
  %1865 = vmatpush1.msra.mxu0 0.0
  %1866 = vmatprep.subr.mxu0 0.0
  %1867 = vmatpush1.msra.mxu0 0.0
  %1868 = vmatprep.subr.mxu0 0.0
  %1869 = vmatpush1.msra.mxu0 0.0
  %1870 = vmatprep.subr.mxu0 0.0
  %1871 = vmatpush1.msra.mxu0 0.0
  %1872 = vmatprep.subr.mxu0 0.0
  %1873 = vmatpush1.msra.mxu0 0.0
  %1874 = vmatprep.subr.mxu0 0.0
  %1875 = vmatpush1.msra.mxu0 0.0
  %1876 = vmatprep.subr.mxu0 0.0
  %1877 = vmatpush1.msra.mxu0 0.0
  %1878 = vmatprep.subr.mxu0 0.0
  %1879 = vmatpush1.msra.mxu0 0.0
  %1880 = vmatprep.subr.mxu0 0.0
  %1881 = vmatpush1.msra.mxu0 0.0
  %1882 = vmatprep.subr.mxu0 0.0
  %1883 = vmatpush1.msra.mxu0 %v37
  %1884 = vmatprep.subr.mxu0 0.0
  %1885 = vmatpush2.msra.mxu0 0.0
  %1886 = vmatprep.subr.mxu0 0.0
  %1887 = vmatpush2.msra.mxu0 0.0
  %1888 = vmatprep.subr.mxu0 0.0
  %1889 = vmatpush2.msra.mxu0 0.0
  %1890 = vmatprep.subr.mxu0 0.0
  %1891 = vmatpush2.msra.mxu0 0.0
  %1892 = vmatprep.subr.mxu0 0.0
  %1893 = vmatpush2.msra.mxu0 0.0
  %1894 = vmatprep.subr.mxu0 0.0
  %1895 = vmatpush2.msra.mxu0 0.0
  %1896 = vmatprep.subr.mxu0 0.0
  %1897 = vmatpush2.msra.mxu0 0.0
  %1898 = vmatprep.subr.mxu0 0.0
  %1899 = vmatpush2.msra.mxu0 0.0
  %1900 = vmatprep.subr.mxu0 0.0
  %1901 = vmatpush2.msra.mxu0 0.0
  %1902 = vmatprep.subr.mxu0 0.0
  %1903 = vmatpush2.msra.mxu0 0.0
  %1904 = vmatprep.subr.mxu0 0.0
  %1905 = vmatpush2.msra.mxu0 0.0
  %1906 = vmatprep.subr.mxu0 0.0
  %1907 = vmatpush2.msra.mxu0 0.0
  %1908 = vmatprep.subr.mxu0 0.0
  %1909 = vmatpush2.msra.mxu0 0.0
  %1910 = vmatprep.subr.mxu0 0.0
  %1911 = vmatpush2.msra.mxu0 0.0
  %1912 = vmatprep.subr.mxu0 0.0
  %1913 = vmatpush2.msra.mxu0 0.0
  %1914 = vmatprep.subr.mxu0 0.0
  %1915 = vmatpush2.msra.mxu0 0.0
  %1916 = vmatprep.mubr.f32.mxu0 0.0
  %1917 = vmatmul.mubr.f32.gmra.mxu0 %v47
  %v1918 = vpop.f32.mrf.mxu0
  %v1919 = vadd.f32 0.0, %v1918
  %v1920 = vpop.f32.mrf.mxu0
  %1921 = vmatprep.mubr.f32.mxu0 0.0
  %1922 = vmatmul.mubr.f32.gmra.mxu0 %v50
  %v1923 = vpop.f32.mrf.mxu0
  %v1924 = vadd.f32 0.0, %v1923
  %v1925 = vpop.f32.mrf.mxu0
  %1926 = vdwg.mxu0
  %1927 = vmatprep.subr.mxu0 0.0
  %1928 = vmatpush1.msra.mxu0 0.0
  %1929 = vmatprep.subr.mxu0 0.0
  %1930 = vmatpush1.msra.mxu0 0.0
  %1931 = vmatprep.subr.mxu0 0.0
  %1932 = vmatpush1.msra.mxu0 0.0
  %1933 = vmatprep.subr.mxu0 0.0
  %1934 = vmatpush1.msra.mxu0 0.0
  %1935 = vmatprep.subr.mxu0 0.0
  %1936 = vmatpush1.msra.mxu0 0.0
  %1937 = vmatprep.subr.mxu0 0.0
  %1938 = vmatpush1.msra.mxu0 0.0
  %1939 = vmatprep.subr.mxu0 0.0
  %1940 = vmatpush1.msra.mxu0 0.0
  %1941 = vmatprep.subr.mxu0 0.0
  %1942 = vmatpush1.msra.mxu0 0.0
  %1943 = vmatprep.subr.mxu0 0.0
  %1944 = vmatpush1.msra.mxu0 0.0
  %1945 = vmatprep.subr.mxu0 0.0
  %1946 = vmatpush1.msra.mxu0 0.0
  %1947 = vmatprep.subr.mxu0 0.0
  %1948 = vmatpush1.msra.mxu0 0.0
  %1949 = vmatprep.subr.mxu0 0.0
  %1950 = vmatpush1.msra.mxu0 0.0
  %1951 = vmatprep.subr.mxu0 0.0
  %1952 = vmatpush1.msra.mxu0 0.0
  %1953 = vmatprep.subr.mxu0 0.0
  %1954 = vmatpush1.msra.mxu0 0.0
  %1955 = vmatprep.subr.mxu0 0.0
  %1956 = vmatpush1.msra.mxu0 0.0
  %1957 = vmatprep.subr.mxu0 0.0
  %1958 = vmatpush1.msra.mxu0 %v38
  %1959 = vmatprep.subr.mxu0 0.0
  %1960 = vmatpush2.msra.mxu0 0.0
  %1961 = vmatprep.subr.mxu0 0.0
  %1962 = vmatpush2.msra.mxu0 0.0
  %1963 = vmatprep.subr.mxu0 0.0
  %1964 = vmatpush2.msra.mxu0 0.0
  %1965 = vmatprep.subr.mxu0 0.0
  %1966 = vmatpush2.msra.mxu0 0.0
  %1967 = vmatprep.subr.mxu0 0.0
  %1968 = vmatpush2.msra.mxu0 0.0
  %1969 = vmatprep.subr.mxu0 0.0
  %1970 = vmatpush2.msra.mxu0 0.0
  %1971 = vmatprep.subr.mxu0 0.0
  %1972 = vmatpush2.msra.mxu0 0.0
  %1973 = vmatprep.subr.mxu0 0.0
  %1974 = vmatpush2.msra.mxu0 0.0
  %1975 = vmatprep.subr.mxu0 0.0
  %1976 = vmatpush2.msra.mxu0 0.0
  %1977 = vmatprep.subr.mxu0 0.0
  %1978 = vmatpush2.msra.mxu0 0.0
  %1979 = vmatprep.subr.mxu0 0.0
  %1980 = vmatpush2.msra.mxu0 0.0
  %1981 = vmatprep.subr.mxu0 0.0
  %1982 = vmatpush2.msra.mxu0 0.0
  %1983 = vmatprep.subr.mxu0 0.0
  %1984 = vmatpush2.msra.mxu0 0.0
  %1985 = vmatprep.subr.mxu0 0.0
  %1986 = vmatpush2.msra.mxu0 0.0
  %1987 = vmatprep.subr.mxu0 0.0
  %1988 = vmatpush2.msra.mxu0 0.0
  %1989 = vmatprep.subr.mxu0 0.0
  %1990 = vmatpush2.msra.mxu0 0.0
  %1991 = vmatprep.mubr.f32.mxu0 0.0
  %1992 = vmatmul.mubr.f32.gmra.mxu0 %v47
  %v1993 = vpop.f32.mrf.mxu0
  %v1994 = vadd.f32 0.0, %v1993
  %v1995 = vpop.f32.mrf.mxu0
  %1996 = vmatprep.mubr.f32.mxu0 0.0
  %1997 = vmatmul.mubr.f32.gmra.mxu0 %v50
  %v1998 = vpop.f32.mrf.mxu0
  %v1999 = vadd.f32 0.0, %v1998
  %v2000 = vpop.f32.mrf.mxu0
  %2001 = vdwg.mxu0
  %2002 = vmatprep.subr.mxu0 0.0
  %2003 = vmatpush1.msra.mxu0 0.0
  %2004 = vmatprep.subr.mxu0 0.0
  %2005 = vmatpush1.msra.mxu0 0.0
  %2006 = vmatprep.subr.mxu0 0.0
  %2007 = vmatpush1.msra.mxu0 0.0
  %2008 = vmatprep.subr.mxu0 0.0
  %2009 = vmatpush1.msra.mxu0 0.0
  %2010 = vmatprep.subr.mxu0 0.0
  %2011 = vmatpush1.msra.mxu0 0.0
  %2012 = vmatprep.subr.mxu0 0.0
  %2013 = vmatpush1.msra.mxu0 0.0
  %2014 = vmatprep.subr.mxu0 0.0
  %2015 = vmatpush1.msra.mxu0 0.0
  %2016 = vmatprep.subr.mxu0 0.0
  %2017 = vmatpush1.msra.mxu0 0.0
  %2018 = vmatprep.subr.mxu0 0.0
  %2019 = vmatpush1.msra.mxu0 0.0
  %2020 = vmatprep.subr.mxu0 0.0
  %2021 = vmatpush1.msra.mxu0 0.0
  %2022 = vmatprep.subr.mxu0 0.0
  %2023 = vmatpush1.msra.mxu0 0.0
  %2024 = vmatprep.subr.mxu0 0.0
  %2025 = vmatpush1.msra.mxu0 0.0
  %2026 = vmatprep.subr.mxu0 0.0
  %2027 = vmatpush1.msra.mxu0 0.0
  %2028 = vmatprep.subr.mxu0 0.0
  %2029 = vmatpush1.msra.mxu0 0.0
  %2030 = vmatprep.subr.mxu0 0.0
  %2031 = vmatpush1.msra.mxu0 0.0
  %2032 = vmatprep.subr.mxu0 0.0
  %2033 = vmatpush1.msra.mxu0 %v39
  %2034 = vmatprep.subr.mxu0 0.0
  %2035 = vmatpush2.msra.mxu0 0.0
  %2036 = vmatprep.subr.mxu0 0.0
  %2037 = vmatpush2.msra.mxu0 0.0
  %2038 = vmatprep.subr.mxu0 0.0
  %2039 = vmatpush2.msra.mxu0 0.0
  %2040 = vmatprep.subr.mxu0 0.0
  %2041 = vmatpush2.msra.mxu0 0.0
  %2042 = vmatprep.subr.mxu0 0.0
  %2043 = vmatpush2.msra.mxu0 0.0
  %2044 = vmatprep.subr.mxu0 0.0
  %2045 = vmatpush2.msra.mxu0 0.0
  %2046 = vmatprep.subr.mxu0 0.0
  %2047 = vmatpush2.msra.mxu0 0.0
  %2048 = vmatprep.subr.mxu0 0.0
  %2049 = vmatpush2.msra.mxu0 0.0
  %2050 = vmatprep.subr.mxu0 0.0
  %2051 = vmatpush2.msra.mxu0 0.0
  %2052 = vmatprep.subr.mxu0 0.0
  %2053 = vmatpush2.msra.mxu0 0.0
  %2054 = vmatprep.subr.mxu0 0.0
  %2055 = vmatpush2.msra.mxu0 0.0
  %2056 = vmatprep.subr.mxu0 0.0
  %2057 = vmatpush2.msra.mxu0 0.0
  %2058 = vmatprep.subr.mxu0 0.0
  %2059 = vmatpush2.msra.mxu0 0.0
  %2060 = vmatprep.subr.mxu0 0.0
  %2061 = vmatpush2.msra.mxu0 0.0
  %2062 = vmatprep.subr.mxu0 0.0
  %2063 = vmatpush2.msra.mxu0 0.0
  %2064 = vmatprep.subr.mxu0 0.0
  %2065 = vmatpush2.msra.mxu0 0.0
  %2066 = vmatprep.mubr.f32.mxu0 0.0
  %2067 = vmatmul.mubr.f32.gmra.mxu0 %v47
  %v2068 = vpop.f32.mrf.mxu0
  %v2069 = vadd.f32 0.0, %v2068
  %v2070 = vpop.f32.mrf.mxu0
  %2071 = vmatprep.mubr.f32.mxu0 0.0
  %2072 = vmatmul.mubr.f32.gmra.mxu0 %v50
  %v2073 = vpop.f32.mrf.mxu0
  %v2074 = vadd.f32 0.0, %v2073
  %v2075 = vpop.f32.mrf.mxu0
  %2076 = vdwg.mxu0
  %2077 = vmatprep.subr.mxu0 0.0
  %2078 = vmatpush1.msra.mxu0 0.0
  %2079 = vmatprep.subr.mxu0 0.0
  %2080 = vmatpush1.msra.mxu0 0.0
  %2081 = vmatprep.subr.mxu0 0.0
  %2082 = vmatpush1.msra.mxu0 0.0
  %2083 = vmatprep.subr.mxu0 0.0
  %2084 = vmatpush1.msra.mxu0 0.0
  %2085 = vmatprep.subr.mxu0 0.0
  %2086 = vmatpush1.msra.mxu0 0.0
  %2087 = vmatprep.subr.mxu0 0.0
  %2088 = vmatpush1.msra.mxu0 0.0
  %2089 = vmatprep.subr.mxu0 0.0
  %2090 = vmatpush1.msra.mxu0 0.0
  %2091 = vmatprep.subr.mxu0 0.0
  %2092 = vmatpush1.msra.mxu0 0.0
  %2093 = vmatprep.subr.mxu0 0.0
  %2094 = vmatpush1.msra.mxu0 0.0
  %2095 = vmatprep.subr.mxu0 0.0
  %2096 = vmatpush1.msra.mxu0 0.0
  %2097 = vmatprep.subr.mxu0 0.0
  %2098 = vmatpush1.msra.mxu0 0.0
  %2099 = vmatprep.subr.mxu0 0.0
  %2100 = vmatpush1.msra.mxu0 0.0
  %2101 = vmatprep.subr.mxu0 0.0
  %2102 = vmatpush1.msra.mxu0 0.0
  %2103 = vmatprep.subr.mxu0 0.0
  %2104 = vmatpush1.msra.mxu0 0.0
  %2105 = vmatprep.subr.mxu0 0.0
  %2106 = vmatpush1.msra.mxu0 0.0
  %2107 = vmatprep.subr.mxu0 0.0
  %2108 = vmatpush1.msra.mxu0 %v40
  %2109 = vmatprep.subr.mxu0 0.0
  %2110 = vmatpush2.msra.mxu0 0.0
  %2111 = vmatprep.subr.mxu0 0.0
  %2112 = vmatpush2.msra.mxu0 0.0
  %2113 = vmatprep.subr.mxu0 0.0
  %2114 = vmatpush2.msra.mxu0 0.0
  %2115 = vmatprep.subr.mxu0 0.0
  %2116 = vmatpush2.msra.mxu0 0.0
  %2117 = vmatprep.subr.mxu0 0.0
  %2118 = vmatpush2.msra.mxu0 0.0
  %2119 = vmatprep.subr.mxu0 0.0
  %2120 = vmatpush2.msra.mxu0 0.0
  %2121 = vmatprep.subr.mxu0 0.0
  %2122 = vmatpush2.msra.mxu0 0.0
  %2123 = vmatprep.subr.mxu0 0.0
  %2124 = vmatpush2.msra.mxu0 0.0
  %2125 = vmatprep.subr.mxu0 0.0
  %2126 = vmatpush2.msra.mxu0 0.0
  %2127 = vmatprep.subr.mxu0 0.0
  %2128 = vmatpush2.msra.mxu0 0.0
  %2129 = vmatprep.subr.mxu0 0.0
  %2130 = vmatpush2.msra.mxu0 0.0
  %2131 = vmatprep.subr.mxu0 0.0
  %2132 = vmatpush2.msra.mxu0 0.0
  %2133 = vmatprep.subr.mxu0 0.0
  %2134 = vmatpush2.msra.mxu0 0.0
  %2135 = vmatprep.subr.mxu0 0.0
  %2136 = vmatpush2.msra.mxu0 0.0
  %2137 = vmatprep.subr.mxu0 0.0
  %2138 = vmatpush2.msra.mxu0 0.0
  %2139 = vmatprep.subr.mxu0 0.0
  %2140 = vmatpush2.msra.mxu0 0.0
  %2141 = vmatprep.mubr.f32.mxu0 0.0
  %2142 = vmatmul.mubr.f32.gmra.mxu0 %v47
  %v2143 = vpop.f32.mrf.mxu0
  %v2144 = vadd.f32 0.0, %v2143
  %v2145 = vpop.f32.mrf.mxu0
  %2146 = vmatprep.mubr.f32.mxu0 0.0
  %2147 = vmatmul.mubr.f32.gmra.mxu0 %v50
  %v2148 = vpop.f32.mrf.mxu0
  %v2149 = vadd.f32 0.0, %v2148
  %v2150 = vpop.f32.mrf.mxu0
  %2151 = vdwg.mxu0
  %2152 = vmatprep.subr.mxu0 0.0
  %2153 = vmatpush1.msra.mxu0 0.0
  %2154 = vmatprep.subr.mxu0 0.0
  %2155 = vmatpush1.msra.mxu0 0.0
  %2156 = vmatprep.subr.mxu0 0.0
  %2157 = vmatpush1.msra.mxu0 0.0
  %2158 = vmatprep.subr.mxu0 0.0
  %2159 = vmatpush1.msra.mxu0 0.0
  %2160 = vmatprep.subr.mxu0 0.0
  %2161 = vmatpush1.msra.mxu0 0.0
  %2162 = vmatprep.subr.mxu0 0.0
  %2163 = vmatpush1.msra.mxu0 0.0
  %2164 = vmatprep.subr.mxu0 0.0
  %2165 = vmatpush1.msra.mxu0 0.0
  %2166 = vmatprep.subr.mxu0 0.0
  %2167 = vmatpush1.msra.mxu0 0.0
  %2168 = vmatprep.subr.mxu0 0.0
  %2169 = vmatpush1.msra.mxu0 0.0
  %2170 = vmatprep.subr.mxu0 0.0
  %2171 = vmatpush1.msra.mxu0 0.0
  %2172 = vmatprep.subr.mxu0 0.0
  %2173 = vmatpush1.msra.mxu0 0.0
  %2174 = vmatprep.subr.mxu0 0.0
  %2175 = vmatpush1.msra.mxu0 0.0
  %2176 = vmatprep.subr.mxu0 0.0
  %2177 = vmatpush1.msra.mxu0 0.0
  %2178 = vmatprep.subr.mxu0 0.0
  %2179 = vmatpush1.msra.mxu0 0.0
  %2180 = vmatprep.subr.mxu0 0.0
  %2181 = vmatpush1.msra.mxu0 0.0
  %2182 = vmatprep.subr.mxu0 0.0
  %2183 = vmatpush1.msra.mxu0 %v41
  %2184 = vmatprep.subr.mxu0 0.0
  %2185 = vmatpush2.msra.mxu0 0.0
  %2186 = vmatprep.subr.mxu0 0.0
  %2187 = vmatpush2.msra.mxu0 0.0
  %2188 = vmatprep.subr.mxu0 0.0
  %2189 = vmatpush2.msra.mxu0 0.0
  %2190 = vmatprep.subr.mxu0 0.0
  %2191 = vmatpush2.msra.mxu0 0.0
  %2192 = vmatprep.subr.mxu0 0.0
  %2193 = vmatpush2.msra.mxu0 0.0
  %2194 = vmatprep.subr.mxu0 0.0
  %2195 = vmatpush2.msra.mxu0 0.0
  %2196 = vmatprep.subr.mxu0 0.0
  %2197 = vmatpush2.msra.mxu0 0.0
  %2198 = vmatprep.subr.mxu0 0.0
  %2199 = vmatpush2.msra.mxu0 0.0
  %2200 = vmatprep.subr.mxu0 0.0
  %2201 = vmatpush2.msra.mxu0 0.0
  %2202 = vmatprep.subr.mxu0 0.0
  %2203 = vmatpush2.msra.mxu0 0.0
  %2204 = vmatprep.subr.mxu0 0.0
  %2205 = vmatpush2.msra.mxu0 0.0
  %2206 = vmatprep.subr.mxu0 0.0
  %2207 = vmatpush2.msra.mxu0 0.0
  %2208 = vmatprep.subr.mxu0 0.0
  %2209 = vmatpush2.msra.mxu0 0.0
  %2210 = vmatprep.subr.mxu0 0.0
  %2211 = vmatpush2.msra.mxu0 0.0
  %2212 = vmatprep.subr.mxu0 0.0
  %2213 = vmatpush2.msra.mxu0 0.0
  %2214 = vmatprep.subr.mxu0 0.0
  %2215 = vmatpush2.msra.mxu0 0.0
  %2216 = vmatprep.mubr.f32.mxu0 0.0
  %2217 = vmatmul.mubr.f32.gmra.mxu0 %v47
  %v2218 = vpop.f32.mrf.mxu0
  %v2219 = vadd.f32 0.0, %v2218
  %v2220 = vpop.f32.mrf.mxu0
  %2221 = vmatprep.mubr.f32.mxu0 0.0
  %2222 = vmatmul.mubr.f32.gmra.mxu0 %v50
  %v2223 = vpop.f32.mrf.mxu0
  %v2224 = vadd.f32 0.0, %v2223
  %v2225 = vpop.f32.mrf.mxu0
  %2226 = vdwg.mxu0
  %2227 = vmatprep.subr.mxu0 0.0
  %2228 = vmatpush1.msra.mxu0 0.0
  %2229 = vmatprep.subr.mxu0 0.0
  %2230 = vmatpush1.msra.mxu0 0.0
  %2231 = vmatprep.subr.mxu0 0.0
  %2232 = vmatpush1.msra.mxu0 0.0
  %2233 = vmatprep.subr.mxu0 0.0
  %2234 = vmatpush1.msra.mxu0 0.0
  %2235 = vmatprep.subr.mxu0 0.0
  %2236 = vmatpush1.msra.mxu0 0.0
  %2237 = vmatprep.subr.mxu0 0.0
  %2238 = vmatpush1.msra.mxu0 0.0
  %2239 = vmatprep.subr.mxu0 0.0
  %2240 = vmatpush1.msra.mxu0 0.0
  %2241 = vmatprep.subr.mxu0 0.0
  %2242 = vmatpush1.msra.mxu0 0.0
  %2243 = vmatprep.subr.mxu0 0.0
  %2244 = vmatpush1.msra.mxu0 0.0
  %2245 = vmatprep.subr.mxu0 0.0
  %2246 = vmatpush1.msra.mxu0 0.0
  %2247 = vmatprep.subr.mxu0 0.0
  %2248 = vmatpush1.msra.mxu0 0.0
  %2249 = vmatprep.subr.mxu0 0.0
  %2250 = vmatpush1.msra.mxu0 0.0
  %2251 = vmatprep.subr.mxu0 0.0
  %2252 = vmatpush1.msra.mxu0 0.0
  %2253 = vmatprep.subr.mxu0 0.0
  %2254 = vmatpush1.msra.mxu0 0.0
  %2255 = vmatprep.subr.mxu0 0.0
  %2256 = vmatpush1.msra.mxu0 0.0
  %2257 = vmatprep.subr.mxu0 0.0
  %2258 = vmatpush1.msra.mxu0 %v42
  %2259 = vmatprep.subr.mxu0 0.0
  %2260 = vmatpush2.msra.mxu0 0.0
  %2261 = vmatprep.subr.mxu0 0.0
  %2262 = vmatpush2.msra.mxu0 0.0
  %2263 = vmatprep.subr.mxu0 0.0
  %2264 = vmatpush2.msra.mxu0 0.0
  %2265 = vmatprep.subr.mxu0 0.0
  %2266 = vmatpush2.msra.mxu0 0.0
  %2267 = vmatprep.subr.mxu0 0.0
  %2268 = vmatpush2.msra.mxu0 0.0
  %2269 = vmatprep.subr.mxu0 0.0
  %2270 = vmatpush2.msra.mxu0 0.0
  %2271 = vmatprep.subr.mxu0 0.0
  %2272 = vmatpush2.msra.mxu0 0.0
  %2273 = vmatprep.subr.mxu0 0.0
  %2274 = vmatpush2.msra.mxu0 0.0
  %2275 = vmatprep.subr.mxu0 0.0
  %2276 = vmatpush2.msra.mxu0 0.0
  %2277 = vmatprep.subr.mxu0 0.0
  %2278 = vmatpush2.msra.mxu0 0.0
  %2279 = vmatprep.subr.mxu0 0.0
  %2280 = vmatpush2.msra.mxu0 0.0
  %2281 = vmatprep.subr.mxu0 0.0
  %2282 = vmatpush2.msra.mxu0 0.0
  %2283 = vmatprep.subr.mxu0 0.0
  %2284 = vmatpush2.msra.mxu0 0.0
  %2285 = vmatprep.subr.mxu0 0.0
  %2286 = vmatpush2.msra.mxu0 0.0
  %2287 = vmatprep.subr.mxu0 0.0
  %2288 = vmatpush2.msra.mxu0 0.0
  %2289 = vmatprep.subr.mxu0 0.0
  %2290 = vmatpush2.msra.mxu0 0.0
  %2291 = vmatprep.mubr.f32.mxu0 0.0
  %2292 = vmatmul.mubr.f32.gmra.mxu0 %v47
  %v2293 = vpop.f32.mrf.mxu0
  %v2294 = vadd.f32 0.0, %v2293
  %v2295 = vpop.f32.mrf.mxu0
  %2296 = vmatprep.mubr.f32.mxu0 0.0
  %2297 = vmatmul.mubr.f32.gmra.mxu0 %v50
  %v2298 = vpop.f32.mrf.mxu0
  %v2299 = vadd.f32 0.0, %v2298
  %v2300 = vpop.f32.mrf.mxu0
  %2301 = vdwg.mxu0
  %2302 = vmatprep.subr.mxu0 0.0
  %2303 = vmatpush1.msra.mxu0 0.0
  %2304 = vmatprep.subr.mxu0 0.0
  %2305 = vmatpush1.msra.mxu0 0.0
  %2306 = vmatprep.subr.mxu0 0.0
  %2307 = vmatpush1.msra.mxu0 0.0
  %2308 = vmatprep.subr.mxu0 0.0
  %2309 = vmatpush1.msra.mxu0 0.0
  %2310 = vmatprep.subr.mxu0 0.0
  %2311 = vmatpush1.msra.mxu0 0.0
  %2312 = vmatprep.subr.mxu0 0.0
  %2313 = vmatpush1.msra.mxu0 0.0
  %2314 = vmatprep.subr.mxu0 0.0
  %2315 = vmatpush1.msra.mxu0 0.0
  %2316 = vmatprep.subr.mxu0 0.0
  %2317 = vmatpush1.msra.mxu0 0.0
  %2318 = vmatprep.subr.mxu0 0.0
  %2319 = vmatpush1.msra.mxu0 0.0
  %2320 = vmatprep.subr.mxu0 0.0
  %2321 = vmatpush1.msra.mxu0 0.0
  %2322 = vmatprep.subr.mxu0 0.0
  %2323 = vmatpush1.msra.mxu0 0.0
  %2324 = vmatprep.subr.mxu0 0.0
  %2325 = vmatpush1.msra.mxu0 0.0
  %2326 = vmatprep.subr.mxu0 0.0
  %2327 = vmatpush1.msra.mxu0 0.0
  %2328 = vmatprep.subr.mxu0 0.0
  %2329 = vmatpush1.msra.mxu0 0.0
  %2330 = vmatprep.subr.mxu0 0.0
  %2331 = vmatpush1.msra.mxu0 0.0
  %2332 = vmatprep.subr.mxu0 0.0
  %2333 = vmatpush1.msra.mxu0 %v43
  %2334 = vmatprep.subr.mxu0 0.0
  %2335 = vmatpush2.msra.mxu0 0.0
  %2336 = vmatprep.subr.mxu0 0.0
  %2337 = vmatpush2.msra.mxu0 0.0
  %2338 = vmatprep.subr.mxu0 0.0
  %2339 = vmatpush2.msra.mxu0 0.0
  %2340 = vmatprep.subr.mxu0 0.0
  %2341 = vmatpush2.msra.mxu0 0.0
  %2342 = vmatprep.subr.mxu0 0.0
  %2343 = vmatpush2.msra.mxu0 0.0
  %2344 = vmatprep.subr.mxu0 0.0
  %2345 = vmatpush2.msra.mxu0 0.0
  %2346 = vmatprep.subr.mxu0 0.0
  %2347 = vmatpush2.msra.mxu0 0.0
  %2348 = vmatprep.subr.mxu0 0.0
  %2349 = vmatpush2.msra.mxu0 0.0
  %2350 = vmatprep.subr.mxu0 0.0
  %2351 = vmatpush2.msra.mxu0 0.0
  %2352 = vmatprep.subr.mxu0 0.0
  %2353 = vmatpush2.msra.mxu0 0.0
  %2354 = vmatprep.subr.mxu0 0.0
  %2355 = vmatpush2.msra.mxu0 0.0
  %2356 = vmatprep.subr.mxu0 0.0
  %2357 = vmatpush2.msra.mxu0 0.0
  %2358 = vmatprep.subr.mxu0 0.0
  %2359 = vmatpush2.msra.mxu0 0.0
  %2360 = vmatprep.subr.mxu0 0.0
  %2361 = vmatpush2.msra.mxu0 0.0
  %2362 = vmatprep.subr.mxu0 0.0
  %2363 = vmatpush2.msra.mxu0 0.0
  %2364 = vmatprep.subr.mxu0 0.0
  %2365 = vmatpush2.msra.mxu0 0.0
  %2366 = vmatprep.mubr.f32.mxu0 0.0
  %2367 = vmatmul.mubr.f32.gmra.mxu0 %v47
  %v2368 = vpop.f32.mrf.mxu0
  %v2369 = vadd.f32 0.0, %v2368
  %v2370 = vpop.f32.mrf.mxu0
  %2371 = vmatprep.mubr.f32.mxu0 0.0
  %2372 = vmatmul.mubr.f32.gmra.mxu0 %v50
  %v2373 = vpop.f32.mrf.mxu0
  %v2374 = vadd.f32 0.0, %v2373
  %v2375 = vpop.f32.mrf.mxu0
  %2376 = vdwg.mxu0
  %2377 = vmatprep.subr.mxu0 0.0
  %2378 = vmatpush1.msra.mxu0 0.0
  %2379 = vmatprep.subr.mxu0 0.0
  %2380 = vmatpush1.msra.mxu0 0.0
  %2381 = vmatprep.subr.mxu0 0.0
  %2382 = vmatpush1.msra.mxu0 0.0
  %2383 = vmatprep.subr.mxu0 0.0
  %2384 = vmatpush1.msra.mxu0 0.0
  %2385 = vmatprep.subr.mxu0 0.0
  %2386 = vmatpush1.msra.mxu0 0.0
  %2387 = vmatprep.subr.mxu0 0.0
  %2388 = vmatpush1.msra.mxu0 0.0
  %2389 = vmatprep.subr.mxu0 0.0
  %2390 = vmatpush1.msra.mxu0 0.0
  %2391 = vmatprep.subr.mxu0 0.0
  %2392 = vmatpush1.msra.mxu0 0.0
  %2393 = vmatprep.subr.mxu0 0.0
  %2394 = vmatpush1.msra.mxu0 0.0
  %2395 = vmatprep.subr.mxu0 0.0
  %2396 = vmatpush1.msra.mxu0 0.0
  %2397 = vmatprep.subr.mxu0 0.0
  %2398 = vmatpush1.msra.mxu0 0.0
  %2399 = vmatprep.subr.mxu0 0.0
  %2400 = vmatpush1.msra.mxu0 0.0
  %2401 = vmatprep.subr.mxu0 0.0
  %2402 = vmatpush1.msra.mxu0 0.0
  %2403 = vmatprep.subr.mxu0 0.0
  %2404 = vmatpush1.msra.mxu0 0.0
  %2405 = vmatprep.subr.mxu0 0.0
  %2406 = vmatpush1.msra.mxu0 0.0
  %2407 = vmatprep.subr.mxu0 0.0
  %2408 = vmatpush1.msra.mxu0 %v44
  %2409 = vmatprep.subr.mxu0 0.0
  %2410 = vmatpush2.msra.mxu0 0.0
  %2411 = vmatprep.subr.mxu0 0.0
  %2412 = vmatpush2.msra.mxu0 0.0
  %2413 = vmatprep.subr.mxu0 0.0
  %2414 = vmatpush2.msra.mxu0 0.0
  %2415 = vmatprep.subr.mxu0 0.0
  %2416 = vmatpush2.msra.mxu0 0.0
  %2417 = vmatprep.subr.mxu0 0.0
  %2418 = vmatpush2.msra.mxu0 0.0
  %2419 = vmatprep.subr.mxu0 0.0
  %2420 = vmatpush2.msra.mxu0 0.0
  %2421 = vmatprep.subr.mxu0 0.0
  %2422 = vmatpush2.msra.mxu0 0.0
  %2423 = vmatprep.subr.mxu0 0.0
  %2424 = vmatpush2.msra.mxu0 0.0
  %2425 = vmatprep.subr.mxu0 0.0
  %2426 = vmatpush2.msra.mxu0 0.0
  %2427 = vmatprep.subr.mxu0 0.0
  %2428 = vmatpush2.msra.mxu0 0.0
  %2429 = vmatprep.subr.mxu0 0.0
  %2430 = vmatpush2.msra.mxu0 0.0
  %2431 = vmatprep.subr.mxu0 0.0
  %2432 = vmatpush2.msra.mxu0 0.0
  %2433 = vmatprep.subr.mxu0 0.0
  %2434 = vmatpush2.msra.mxu0 0.0
  %2435 = vmatprep.subr.mxu0 0.0
  %2436 = vmatpush2.msra.mxu0 0.0
  %2437 = vmatprep.subr.mxu0 0.0
  %2438 = vmatpush2.msra.mxu0 0.0
  %2439 = vmatprep.subr.mxu0 0.0
  %2440 = vmatpush2.msra.mxu0 0.0
  %2441 = vmatprep.mubr.f32.mxu0 0.0
  %2442 = vmatmul.mubr.f32.gmra.mxu0 %v47
  %v2443 = vpop.f32.mrf.mxu0
  %v2444 = vadd.f32 0.0, %v2443
  %v2445 = vpop.f32.mrf.mxu0
  %2446 = vmatprep.mubr.f32.mxu0 0.0
  %2447 = vmatmul.mubr.f32.gmra.mxu0 %v50
  %v2448 = vpop.f32.mrf.mxu0
  %v2449 = vadd.f32 0.0, %v2448
  %v2450 = vpop.f32.mrf.mxu0
  %2451 = vdwg.mxu0
  %v2453 = vsel %vm45, %v119, 0
  %v2456 = vsel %vm45, %v124, 0
  %2458 = vmatprep.subr.mxu0 0.0
  %2459 = vmatpush1.xpose.msra.mxu0 0.0
  %2460 = vmatprep.subr.mxu0 0.0
  %2461 = vmatpush1.xpose.msra.mxu0 0.0
  %2462 = vmatprep.subr.mxu0 0.0
  %2463 = vmatpush1.xpose.msra.mxu0 0.0
  %2464 = vmatprep.subr.mxu0 0.0
  %2465 = vmatpush1.xpose.msra.mxu0 0.0
  %2466 = vmatprep.subr.mxu0 0.0
  %2467 = vmatpush1.xpose.msra.mxu0 0.0
  %2468 = vmatprep.subr.mxu0 0.0
  %2469 = vmatpush1.xpose.msra.mxu0 0.0
  %2470 = vmatprep.subr.mxu0 0.0
  %2471 = vmatpush1.xpose.msra.mxu0 0.0
  %2472 = vmatprep.subr.mxu0 0.0
  %2473 = vmatpush1.xpose.msra.mxu0 0.0
  %2474 = vmatprep.subr.mxu0 0.0
  %2475 = vmatpush1.xpose.msra.mxu0 0.0
  %2476 = vmatprep.subr.mxu0 0.0
  %2477 = vmatpush1.xpose.msra.mxu0 0.0
  %2478 = vmatprep.subr.mxu0 0.0
  %2479 = vmatpush1.xpose.msra.mxu0 0.0
  %2480 = vmatprep.subr.mxu0 0.0
  %2481 = vmatpush1.xpose.msra.mxu0 0.0
  %2482 = vmatprep.subr.mxu0 0.0
  %2483 = vmatpush1.xpose.msra.mxu0 0.0
  %2484 = vmatprep.subr.mxu0 0.0
  %2485 = vmatpush1.xpose.msra.mxu0 0.0
  %2486 = vmatprep.subr.mxu0 0.0
  %2487 = vmatpush1.xpose.msra.mxu0 %v50
  %2488 = vmatprep.subr.mxu0 0.0
  %2489 = vmatpush1.xpose.msra.mxu0 %v47
  %2490 = vmatprep.subr.mxu0 0.0
  %2491 = vmatpush2.xpose.msra.mxu0 0.0
  %2492 = vmatprep.subr.mxu0 0.0
  %2493 = vmatpush2.xpose.msra.mxu0 0.0
  %2494 = vmatprep.subr.mxu0 0.0
  %2495 = vmatpush2.xpose.msra.mxu0 0.0
  %2496 = vmatprep.subr.mxu0 0.0
  %2497 = vmatpush2.xpose.msra.mxu0 0.0
  %2498 = vmatprep.subr.mxu0 0.0
  %2499 = vmatpush2.xpose.msra.mxu0 0.0
  %2500 = vmatprep.subr.mxu0 0.0
  %2501 = vmatpush2.xpose.msra.mxu0 0.0
  %2502 = vmatprep.subr.mxu0 0.0
  %2503 = vmatpush2.xpose.msra.mxu0 0.0
  %2504 = vmatprep.subr.mxu0 0.0
  %2505 = vmatpush2.xpose.msra.mxu0 0.0
  %2506 = vmatprep.subr.mxu0 0.0
  %2507 = vmatpush2.xpose.msra.mxu0 0.0
  %2508 = vmatprep.subr.mxu0 0.0
  %2509 = vmatpush2.xpose.msra.mxu0 0.0
  %2510 = vmatprep.subr.mxu0 0.0
  %2511 = vmatpush2.xpose.msra.mxu0 0.0
  %2512 = vmatprep.subr.mxu0 0.0
  %2513 = vmatpush2.xpose.msra.mxu0 0.0
  %2514 = vmatprep.subr.mxu0 0.0
  %2515 = vmatpush2.xpose.msra.mxu0 0.0
  %2516 = vmatprep.subr.mxu0 0.0
  %2517 = vmatpush2.xpose.msra.mxu0 0.0
  %2518 = vmatprep.subr.mxu0 0.0
  %2519 = vmatpush2.xpose.msra.mxu0 0.0
  %2520 = vmatprep.subr.mxu0 0.0
  %2521 = vmatpush2.xpose.msra.mxu0 0.0
  %2522 = vmatprep.mubr.f32.mxu0 0.0
  %2523 = vmatmul.mubr.f32.gmra.mxu0 %v2453
  %v2524 = vpop.f32.mrf.mxu0
  %v2525 = vadd.f32 0.0, %v2524
  %v2526 = vpop.f32.mrf.mxu0
  %2527 = vmatprep.mubr.f32.mxu0 0.0
  %2528 = vmatmul.mubr.f32.gmra.mxu0 %v2456
  %v2529 = vpop.f32.mrf.mxu0
  %v2530 = vadd.f32 0.0, %v2529
  %v2531 = vpop.f32.mrf.mxu0
  %2532 = vdwg.mxu0
  %v2534 = vsel %vm45, %v194, 0
  %v2537 = vsel %vm45, %v199, 0
  %2539 = vmatprep.subr.mxu0 0.0
  %2540 = vmatpush1.xpose.msra.mxu0 0.0
  %2541 = vmatprep.subr.mxu0 0.0
  %2542 = vmatpush1.xpose.msra.mxu0 0.0
  %2543 = vmatprep.subr.mxu0 0.0
  %2544 = vmatpush1.xpose.msra.mxu0 0.0
  %2545 = vmatprep.subr.mxu0 0.0
  %2546 = vmatpush1.xpose.msra.mxu0 0.0
  %2547 = vmatprep.subr.mxu0 0.0
  %2548 = vmatpush1.xpose.msra.mxu0 0.0
  %2549 = vmatprep.subr.mxu0 0.0
  %2550 = vmatpush1.xpose.msra.mxu0 0.0
  %2551 = vmatprep.subr.mxu0 0.0
  %2552 = vmatpush1.xpose.msra.mxu0 0.0
  %2553 = vmatprep.subr.mxu0 0.0
  %2554 = vmatpush1.xpose.msra.mxu0 0.0
  %2555 = vmatprep.subr.mxu0 0.0
  %2556 = vmatpush1.xpose.msra.mxu0 0.0
  %2557 = vmatprep.subr.mxu0 0.0
  %2558 = vmatpush1.xpose.msra.mxu0 0.0
  %2559 = vmatprep.subr.mxu0 0.0
  %2560 = vmatpush1.xpose.msra.mxu0 0.0
  %2561 = vmatprep.subr.mxu0 0.0
  %2562 = vmatpush1.xpose.msra.mxu0 0.0
  %2563 = vmatprep.subr.mxu0 0.0
  %2564 = vmatpush1.xpose.msra.mxu0 0.0
  %2565 = vmatprep.subr.mxu0 0.0
  %2566 = vmatpush1.xpose.msra.mxu0 0.0
  %2567 = vmatprep.subr.mxu0 0.0
  %2568 = vmatpush1.xpose.msra.mxu0 %v50
  %2569 = vmatprep.subr.mxu0 0.0
  %2570 = vmatpush1.xpose.msra.mxu0 %v47
  %2571 = vmatprep.subr.mxu0 0.0
  %2572 = vmatpush2.xpose.msra.mxu0 0.0
  %2573 = vmatprep.subr.mxu0 0.0
  %2574 = vmatpush2.xpose.msra.mxu0 0.0
  %2575 = vmatprep.subr.mxu0 0.0
  %2576 = vmatpush2.xpose.msra.mxu0 0.0
  %2577 = vmatprep.subr.mxu0 0.0
  %2578 = vmatpush2.xpose.msra.mxu0 0.0
  %2579 = vmatprep.subr.mxu0 0.0
  %2580 = vmatpush2.xpose.msra.mxu0 0.0
  %2581 = vmatprep.subr.mxu0 0.0
  %2582 = vmatpush2.xpose.msra.mxu0 0.0
  %2583 = vmatprep.subr.mxu0 0.0
  %2584 = vmatpush2.xpose.msra.mxu0 0.0
  %2585 = vmatprep.subr.mxu0 0.0
  %2586 = vmatpush2.xpose.msra.mxu0 0.0
  %2587 = vmatprep.subr.mxu0 0.0
  %2588 = vmatpush2.xpose.msra.mxu0 0.0
  %2589 = vmatprep.subr.mxu0 0.0
  %2590 = vmatpush2.xpose.msra.mxu0 0.0
  %2591 = vmatprep.subr.mxu0 0.0
  %2592 = vmatpush2.xpose.msra.mxu0 0.0
  %2593 = vmatprep.subr.mxu0 0.0
  %2594 = vmatpush2.xpose.msra.mxu0 0.0
  %2595 = vmatprep.subr.mxu0 0.0
  %2596 = vmatpush2.xpose.msra.mxu0 0.0
  %2597 = vmatprep.subr.mxu0 0.0
  %2598 = vmatpush2.xpose.msra.mxu0 0.0
  %2599 = vmatprep.subr.mxu0 0.0
  %2600 = vmatpush2.xpose.msra.mxu0 0.0
  %2601 = vmatprep.subr.mxu0 0.0
  %2602 = vmatpush2.xpose.msra.mxu0 0.0
  %2603 = vmatprep.mubr.f32.mxu0 0.0
  %2604 = vmatmul.mubr.f32.gmra.mxu0 %v2534
  %v2605 = vpop.f32.mrf.mxu0
  %v2606 = vadd.f32 0.0, %v2605
  %v2607 = vpop.f32.mrf.mxu0
  %2608 = vmatprep.mubr.f32.mxu0 0.0
  %2609 = vmatmul.mubr.f32.gmra.mxu0 %v2537
  %v2610 = vpop.f32.mrf.mxu0
  %v2611 = vadd.f32 0.0, %v2610
  %v2612 = vpop.f32.mrf.mxu0
  %2613 = vdwg.mxu0
  %v2615 = vsel %vm45, %v269, 0
  %v2618 = vsel %vm45, %v274, 0
  %2620 = vmatprep.subr.mxu0 0.0
  %2621 = vmatpush1.xpose.msra.mxu0 0.0
  %2622 = vmatprep.subr.mxu0 0.0
  %2623 = vmatpush1.xpose.msra.mxu0 0.0
  %2624 = vmatprep.subr.mxu0 0.0
  %2625 = vmatpush1.xpose.msra.mxu0 0.0
  %2626 = vmatprep.subr.mxu0 0.0
  %2627 = vmatpush1.xpose.msra.mxu0 0.0
  %2628 = vmatprep.subr.mxu0 0.0
  %2629 = vmatpush1.xpose.msra.mxu0 0.0
  %2630 = vmatprep.subr.mxu0 0.0
  %2631 = vmatpush1.xpose.msra.mxu0 0.0
  %2632 = vmatprep.subr.mxu0 0.0
  %2633 = vmatpush1.xpose.msra.mxu0 0.0
  %2634 = vmatprep.subr.mxu0 0.0
  %2635 = vmatpush1.xpose.msra.mxu0 0.0
  %2636 = vmatprep.subr.mxu0 0.0
  %2637 = vmatpush1.xpose.msra.mxu0 0.0
  %2638 = vmatprep.subr.mxu0 0.0
  %2639 = vmatpush1.xpose.msra.mxu0 0.0
  %2640 = vmatprep.subr.mxu0 0.0
  %2641 = vmatpush1.xpose.msra.mxu0 0.0
  %2642 = vmatprep.subr.mxu0 0.0
  %2643 = vmatpush1.xpose.msra.mxu0 0.0
  %2644 = vmatprep.subr.mxu0 0.0
  %2645 = vmatpush1.xpose.msra.mxu0 0.0
  %2646 = vmatprep.subr.mxu0 0.0
  %2647 = vmatpush1.xpose.msra.mxu0 0.0
  %2648 = vmatprep.subr.mxu0 0.0
  %2649 = vmatpush1.xpose.msra.mxu0 %v50
  %2650 = vmatprep.subr.mxu0 0.0
  %2651 = vmatpush1.xpose.msra.mxu0 %v47
  %2652 = vmatprep.subr.mxu0 0.0
  %2653 = vmatpush2.xpose.msra.mxu0 0.0
  %2654 = vmatprep.subr.mxu0 0.0
  %2655 = vmatpush2.xpose.msra.mxu0 0.0
  %2656 = vmatprep.subr.mxu0 0.0
  %2657 = vmatpush2.xpose.msra.mxu0 0.0
  %2658 = vmatprep.subr.mxu0 0.0
  %2659 = vmatpush2.xpose.msra.mxu0 0.0
  %2660 = vmatprep.subr.mxu0 0.0
  %2661 = vmatpush2.xpose.msra.mxu0 0.0
  %2662 = vmatprep.subr.mxu0 0.0
  %2663 = vmatpush2.xpose.msra.mxu0 0.0
  %2664 = vmatprep.subr.mxu0 0.0
  %2665 = vmatpush2.xpose.msra.mxu0 0.0
  %2666 = vmatprep.subr.mxu0 0.0
  %2667 = vmatpush2.xpose.msra.mxu0 0.0
  %2668 = vmatprep.subr.mxu0 0.0
  %2669 = vmatpush2.xpose.msra.mxu0 0.0
  %2670 = vmatprep.subr.mxu0 0.0
  %2671 = vmatpush2.xpose.msra.mxu0 0.0
  %2672 = vmatprep.subr.mxu0 0.0
  %2673 = vmatpush2.xpose.msra.mxu0 0.0
  %2674 = vmatprep.subr.mxu0 0.0
  %2675 = vmatpush2.xpose.msra.mxu0 0.0
  %2676 = vmatprep.subr.mxu0 0.0
  %2677 = vmatpush2.xpose.msra.mxu0 0.0
  %2678 = vmatprep.subr.mxu0 0.0
  %2679 = vmatpush2.xpose.msra.mxu0 0.0
  %2680 = vmatprep.subr.mxu0 0.0
  %2681 = vmatpush2.xpose.msra.mxu0 0.0
  %2682 = vmatprep.subr.mxu0 0.0
  %2683 = vmatpush2.xpose.msra.mxu0 0.0
  %2684 = vmatprep.mubr.f32.mxu0 0.0
  %2685 = vmatmul.mubr.f32.gmra.mxu0 %v2615
  %v2686 = vpop.f32.mrf.mxu0
  %v2687 = vadd.f32 0.0, %v2686
  %v2688 = vpop.f32.mrf.mxu0
  %2689 = vmatprep.mubr.f32.mxu0 0.0
  %2690 = vmatmul.mubr.f32.gmra.mxu0 %v2618
  %v2691 = vpop.f32.mrf.mxu0
  %v2692 = vadd.f32 0.0, %v2691
  %v2693 = vpop.f32.mrf.mxu0
  %2694 = vdwg.mxu0
  %v2696 = vsel %vm45, %v344, 0
  %v2699 = vsel %vm45, %v349, 0
  %2701 = vmatprep.subr.mxu0 0.0
  %2702 = vmatpush1.xpose.msra.mxu0 0.0
  %2703 = vmatprep.subr.mxu0 0.0
  %2704 = vmatpush1.xpose.msra.mxu0 0.0
  %2705 = vmatprep.subr.mxu0 0.0
  %2706 = vmatpush1.xpose.msra.mxu0 0.0
  %2707 = vmatprep.subr.mxu0 0.0
  %2708 = vmatpush1.xpose.msra.mxu0 0.0
  %2709 = vmatprep.subr.mxu0 0.0
  %2710 = vmatpush1.xpose.msra.mxu0 0.0
  %2711 = vmatprep.subr.mxu0 0.0
  %2712 = vmatpush1.xpose.msra.mxu0 0.0
  %2713 = vmatprep.subr.mxu0 0.0
  %2714 = vmatpush1.xpose.msra.mxu0 0.0
  %2715 = vmatprep.subr.mxu0 0.0
  %2716 = vmatpush1.xpose.msra.mxu0 0.0
  %2717 = vmatprep.subr.mxu0 0.0
  %2718 = vmatpush1.xpose.msra.mxu0 0.0
  %2719 = vmatprep.subr.mxu0 0.0
  %2720 = vmatpush1.xpose.msra.mxu0 0.0
  %2721 = vmatprep.subr.mxu0 0.0
  %2722 = vmatpush1.xpose.msra.mxu0 0.0
  %2723 = vmatprep.subr.mxu0 0.0
  %2724 = vmatpush1.xpose.msra.mxu0 0.0
  %2725 = vmatprep.subr.mxu0 0.0
  %2726 = vmatpush1.xpose.msra.mxu0 0.0
  %2727 = vmatprep.subr.mxu0 0.0
  %2728 = vmatpush1.xpose.msra.mxu0 0.0
  %2729 = vmatprep.subr.mxu0 0.0
  %2730 = vmatpush1.xpose.msra.mxu0 %v50
  %2731 = vmatprep.subr.mxu0 0.0
  %2732 = vmatpush1.xpose.msra.mxu0 %v47
  %2733 = vmatprep.subr.mxu0 0.0
  %2734 = vmatpush2.xpose.msra.mxu0 0.0
  %2735 = vmatprep.subr.mxu0 0.0
  %2736 = vmatpush2.xpose.msra.mxu0 0.0
  %2737 = vmatprep.subr.mxu0 0.0
  %2738 = vmatpush2.xpose.msra.mxu0 0.0
  %2739 = vmatprep.subr.mxu0 0.0
  %2740 = vmatpush2.xpose.msra.mxu0 0.0
  %2741 = vmatprep.subr.mxu0 0.0
  %2742 = vmatpush2.xpose.msra.mxu0 0.0
  %2743 = vmatprep.subr.mxu0 0.0
  %2744 = vmatpush2.xpose.msra.mxu0 0.0
  %2745 = vmatprep.subr.mxu0 0.0
  %2746 = vmatpush2.xpose.msra.mxu0 0.0
  %2747 = vmatprep.subr.mxu0 0.0
  %2748 = vmatpush2.xpose.msra.mxu0 0.0
  %2749 = vmatprep.subr.mxu0 0.0
  %2750 = vmatpush2.xpose.msra.mxu0 0.0
  %2751 = vmatprep.subr.mxu0 0.0
  %2752 = vmatpush2.xpose.msra.mxu0 0.0
  %2753 = vmatprep.subr.mxu0 0.0
  %2754 = vmatpush2.xpose.msra.mxu0 0.0
  %2755 = vmatprep.subr.mxu0 0.0
  %2756 = vmatpush2.xpose.msra.mxu0 0.0
  %2757 = vmatprep.subr.mxu0 0.0
  %2758 = vmatpush2.xpose.msra.mxu0 0.0
  %2759 = vmatprep.subr.mxu0 0.0
  %2760 = vmatpush2.xpose.msra.mxu0 0.0
  %2761 = vmatprep.subr.mxu0 0.0
  %2762 = vmatpush2.xpose.msra.mxu0 0.0
  %2763 = vmatprep.subr.mxu0 0.0
  %2764 = vmatpush2.xpose.msra.mxu0 0.0
  %2765 = vmatprep.mubr.f32.mxu0 0.0
  %2766 = vmatmul.mubr.f32.gmra.mxu0 %v2696
  %v2767 = vpop.f32.mrf.mxu0
  %v2768 = vadd.f32 0.0, %v2767
  %v2769 = vpop.f32.mrf.mxu0
  %2770 = vmatprep.mubr.f32.mxu0 0.0
  %2771 = vmatmul.mubr.f32.gmra.mxu0 %v2699
  %v2772 = vpop.f32.mrf.mxu0
  %v2773 = vadd.f32 0.0, %v2772
  %v2774 = vpop.f32.mrf.mxu0
  %2775 = vdwg.mxu0
  %v2777 = vsel %vm45, %v419, 0
  %v2780 = vsel %vm45, %v424, 0
  %2782 = vmatprep.subr.mxu0 0.0
  %2783 = vmatpush1.xpose.msra.mxu0 0.0
  %2784 = vmatprep.subr.mxu0 0.0
  %2785 = vmatpush1.xpose.msra.mxu0 0.0
  %2786 = vmatprep.subr.mxu0 0.0
  %2787 = vmatpush1.xpose.msra.mxu0 0.0
  %2788 = vmatprep.subr.mxu0 0.0
  %2789 = vmatpush1.xpose.msra.mxu0 0.0
  %2790 = vmatprep.subr.mxu0 0.0
  %2791 = vmatpush1.xpose.msra.mxu0 0.0
  %2792 = vmatprep.subr.mxu0 0.0
  %2793 = vmatpush1.xpose.msra.mxu0 0.0
  %2794 = vmatprep.subr.mxu0 0.0
  %2795 = vmatpush1.xpose.msra.mxu0 0.0
  %2796 = vmatprep.subr.mxu0 0.0
  %2797 = vmatpush1.xpose.msra.mxu0 0.0
  %2798 = vmatprep.subr.mxu0 0.0
  %2799 = vmatpush1.xpose.msra.mxu0 0.0
  %2800 = vmatprep.subr.mxu0 0.0
  %2801 = vmatpush1.xpose.msra.mxu0 0.0
  %2802 = vmatprep.subr.mxu0 0.0
  %2803 = vmatpush1.xpose.msra.mxu0 0.0
  %2804 = vmatprep.subr.mxu0 0.0
  %2805 = vmatpush1.xpose.msra.mxu0 0.0
  %2806 = vmatprep.subr.mxu0 0.0
  %2807 = vmatpush1.xpose.msra.mxu0 0.0
  %2808 = vmatprep.subr.mxu0 0.0
  %2809 = vmatpush1.xpose.msra.mxu0 0.0
  %2810 = vmatprep.subr.mxu0 0.0
  %2811 = vmatpush1.xpose.msra.mxu0 %v50
  %2812 = vmatprep.subr.mxu0 0.0
  %2813 = vmatpush1.xpose.msra.mxu0 %v47
  %2814 = vmatprep.subr.mxu0 0.0
  %2815 = vmatpush2.xpose.msra.mxu0 0.0
  %2816 = vmatprep.subr.mxu0 0.0
  %2817 = vmatpush2.xpose.msra.mxu0 0.0
  %2818 = vmatprep.subr.mxu0 0.0
  %2819 = vmatpush2.xpose.msra.mxu0 0.0
  %2820 = vmatprep.subr.mxu0 0.0
  %2821 = vmatpush2.xpose.msra.mxu0 0.0
  %2822 = vmatprep.subr.mxu0 0.0
  %2823 = vmatpush2.xpose.msra.mxu0 0.0
  %2824 = vmatprep.subr.mxu0 0.0
  %2825 = vmatpush2.xpose.msra.mxu0 0.0
  %2826 = vmatprep.subr.mxu0 0.0
  %2827 = vmatpush2.xpose.msra.mxu0 0.0
  %2828 = vmatprep.subr.mxu0 0.0
  %2829 = vmatpush2.xpose.msra.mxu0 0.0
  %2830 = vmatprep.subr.mxu0 0.0
  %2831 = vmatpush2.xpose.msra.mxu0 0.0
  %2832 = vmatprep.subr.mxu0 0.0
  %2833 = vmatpush2.xpose.msra.mxu0 0.0
  %2834 = vmatprep.subr.mxu0 0.0
  %2835 = vmatpush2.xpose.msra.mxu0 0.0
  %2836 = vmatprep.subr.mxu0 0.0
  %2837 = vmatpush2.xpose.msra.mxu0 0.0
  %2838 = vmatprep.subr.mxu0 0.0
  %2839 = vmatpush2.xpose.msra.mxu0 0.0
  %2840 = vmatprep.subr.mxu0 0.0
  %2841 = vmatpush2.xpose.msra.mxu0 0.0
  %2842 = vmatprep.subr.mxu0 0.0
  %2843 = vmatpush2.xpose.msra.mxu0 0.0
  %2844 = vmatprep.subr.mxu0 0.0
  %2845 = vmatpush2.xpose.msra.mxu0 0.0
  %2846 = vmatprep.mubr.f32.mxu0 0.0
  %2847 = vmatmul.mubr.f32.gmra.mxu0 %v2777
  %v2848 = vpop.f32.mrf.mxu0
  %v2849 = vadd.f32 0.0, %v2848
  %v2850 = vpop.f32.mrf.mxu0
  %2851 = vmatprep.mubr.f32.mxu0 0.0
  %2852 = vmatmul.mubr.f32.gmra.mxu0 %v2780
  %v2853 = vpop.f32.mrf.mxu0
  %v2854 = vadd.f32 0.0, %v2853
  %v2855 = vpop.f32.mrf.mxu0
  %2856 = vdwg.mxu0
  %v2858 = vsel %vm45, %v494, 0
  %v2861 = vsel %vm45, %v499, 0
  %2863 = vmatprep.subr.mxu0 0.0
  %2864 = vmatpush1.xpose.msra.mxu0 0.0
  %2865 = vmatprep.subr.mxu0 0.0
  %2866 = vmatpush1.xpose.msra.mxu0 0.0
  %2867 = vmatprep.subr.mxu0 0.0
  %2868 = vmatpush1.xpose.msra.mxu0 0.0
  %2869 = vmatprep.subr.mxu0 0.0
  %2870 = vmatpush1.xpose.msra.mxu0 0.0
  %2871 = vmatprep.subr.mxu0 0.0
  %2872 = vmatpush1.xpose.msra.mxu0 0.0
  %2873 = vmatprep.subr.mxu0 0.0
  %2874 = vmatpush1.xpose.msra.mxu0 0.0
  %2875 = vmatprep.subr.mxu0 0.0
  %2876 = vmatpush1.xpose.msra.mxu0 0.0
  %2877 = vmatprep.subr.mxu0 0.0
  %2878 = vmatpush1.xpose.msra.mxu0 0.0
  %2879 = vmatprep.subr.mxu0 0.0
  %2880 = vmatpush1.xpose.msra.mxu0 0.0
  %2881 = vmatprep.subr.mxu0 0.0
  %2882 = vmatpush1.xpose.msra.mxu0 0.0
  %2883 = vmatprep.subr.mxu0 0.0
  %2884 = vmatpush1.xpose.msra.mxu0 0.0
  %2885 = vmatprep.subr.mxu0 0.0
  %2886 = vmatpush1.xpose.msra.mxu0 0.0
  %2887 = vmatprep.subr.mxu0 0.0
  %2888 = vmatpush1.xpose.msra.mxu0 0.0
  %2889 = vmatprep.subr.mxu0 0.0
  %2890 = vmatpush1.xpose.msra.mxu0 0.0
  %2891 = vmatprep.subr.mxu0 0.0
  %2892 = vmatpush1.xpose.msra.mxu0 %v50
  %2893 = vmatprep.subr.mxu0 0.0
  %2894 = vmatpush1.xpose.msra.mxu0 %v47
  %2895 = vmatprep.subr.mxu0 0.0
  %2896 = vmatpush2.xpose.msra.mxu0 0.0
  %2897 = vmatprep.subr.mxu0 0.0
  %2898 = vmatpush2.xpose.msra.mxu0 0.0
  %2899 = vmatprep.subr.mxu0 0.0
  %2900 = vmatpush2.xpose.msra.mxu0 0.0
  %2901 = vmatprep.subr.mxu0 0.0
  %2902 = vmatpush2.xpose.msra.mxu0 0.0
  %2903 = vmatprep.subr.mxu0 0.0
  %2904 = vmatpush2.xpose.msra.mxu0 0.0
  %2905 = vmatprep.subr.mxu0 0.0
  %2906 = vmatpush2.xpose.msra.mxu0 0.0
  %2907 = vmatprep.subr.mxu0 0.0
  %2908 = vmatpush2.xpose.msra.mxu0 0.0
  %2909 = vmatprep.subr.mxu0 0.0
  %2910 = vmatpush2.xpose.msra.mxu0 0.0
  %2911 = vmatprep.subr.mxu0 0.0
  %2912 = vmatpush2.xpose.msra.mxu0 0.0
  %2913 = vmatprep.subr.mxu0 0.0
  %2914 = vmatpush2.xpose.msra.mxu0 0.0
  %2915 = vmatprep.subr.mxu0 0.0
  %2916 = vmatpush2.xpose.msra.mxu0 0.0
  %2917 = vmatprep.subr.mxu0 0.0
  %2918 = vmatpush2.xpose.msra.mxu0 0.0
  %2919 = vmatprep.subr.mxu0 0.0
  %2920 = vmatpush2.xpose.msra.mxu0 0.0
  %2921 = vmatprep.subr.mxu0 0.0
  %2922 = vmatpush2.xpose.msra.mxu0 0.0
  %2923 = vmatprep.subr.mxu0 0.0
  %2924 = vmatpush2.xpose.msra.mxu0 0.0
  %2925 = vmatprep.subr.mxu0 0.0
  %2926 = vmatpush2.xpose.msra.mxu0 0.0
  %2927 = vmatprep.mubr.f32.mxu0 0.0
  %2928 = vmatmul.mubr.f32.gmra.mxu0 %v2858
  %v2929 = vpop.f32.mrf.mxu0
  %v2930 = vadd.f32 0.0, %v2929
  %v2931 = vpop.f32.mrf.mxu0
  %2932 = vmatprep.mubr.f32.mxu0 0.0
  %2933 = vmatmul.mubr.f32.gmra.mxu0 %v2861
  %v2934 = vpop.f32.mrf.mxu0
  %v2935 = vadd.f32 0.0, %v2934
  %v2936 = vpop.f32.mrf.mxu0
  %2937 = vdwg.mxu0
  %v2939 = vsel %vm45, %v569, 0
  %v2942 = vsel %vm45, %v574, 0
  %2944 = vmatprep.subr.mxu0 0.0
  %2945 = vmatpush1.xpose.msra.mxu0 0.0
  %2946 = vmatprep.subr.mxu0 0.0
  %2947 = vmatpush1.xpose.msra.mxu0 0.0
  %2948 = vmatprep.subr.mxu0 0.0
  %2949 = vmatpush1.xpose.msra.mxu0 0.0
  %2950 = vmatprep.subr.mxu0 0.0
  %2951 = vmatpush1.xpose.msra.mxu0 0.0
  %2952 = vmatprep.subr.mxu0 0.0
  %2953 = vmatpush1.xpose.msra.mxu0 0.0
  %2954 = vmatprep.subr.mxu0 0.0
  %2955 = vmatpush1.xpose.msra.mxu0 0.0
  %2956 = vmatprep.subr.mxu0 0.0
  %2957 = vmatpush1.xpose.msra.mxu0 0.0
  %2958 = vmatprep.subr.mxu0 0.0
  %2959 = vmatpush1.xpose.msra.mxu0 0.0
  %2960 = vmatprep.subr.mxu0 0.0
  %2961 = vmatpush1.xpose.msra.mxu0 0.0
  %2962 = vmatprep.subr.mxu0 0.0
  %2963 = vmatpush1.xpose.msra.mxu0 0.0
  %2964 = vmatprep.subr.mxu0 0.0
  %2965 = vmatpush1.xpose.msra.mxu0 0.0
  %2966 = vmatprep.subr.mxu0 0.0
  %2967 = vmatpush1.xpose.msra.mxu0 0.0
  %2968 = vmatprep.subr.mxu0 0.0
  %2969 = vmatpush1.xpose.msra.mxu0 0.0
  %2970 = vmatprep.subr.mxu0 0.0
  %2971 = vmatpush1.xpose.msra.mxu0 0.0
  %2972 = vmatprep.subr.mxu0 0.0
  %2973 = vmatpush1.xpose.msra.mxu0 %v50
  %2974 = vmatprep.subr.mxu0 0.0
  %2975 = vmatpush1.xpose.msra.mxu0 %v47
  %2976 = vmatprep.subr.mxu0 0.0
  %2977 = vmatpush2.xpose.msra.mxu0 0.0
  %2978 = vmatprep.subr.mxu0 0.0
  %2979 = vmatpush2.xpose.msra.mxu0 0.0
  %2980 = vmatprep.subr.mxu0 0.0
  %2981 = vmatpush2.xpose.msra.mxu0 0.0
  %2982 = vmatprep.subr.mxu0 0.0
  %2983 = vmatpush2.xpose.msra.mxu0 0.0
  %2984 = vmatprep.subr.mxu0 0.0
  %2985 = vmatpush2.xpose.msra.mxu0 0.0
  %2986 = vmatprep.subr.mxu0 0.0
  %2987 = vmatpush2.xpose.msra.mxu0 0.0
  %2988 = vmatprep.subr.mxu0 0.0
  %2989 = vmatpush2.xpose.msra.mxu0 0.0
  %2990 = vmatprep.subr.mxu0 0.0
  %2991 = vmatpush2.xpose.msra.mxu0 0.0
  %2992 = vmatprep.subr.mxu0 0.0
  %2993 = vmatpush2.xpose.msra.mxu0 0.0
  %2994 = vmatprep.subr.mxu0 0.0
  %2995 = vmatpush2.xpose.msra.mxu0 0.0
  %2996 = vmatprep.subr.mxu0 0.0
  %2997 = vmatpush2.xpose.msra.mxu0 0.0
  %2998 = vmatprep.subr.mxu0 0.0
  %2999 = vmatpush2.xpose.msra.mxu0 0.0
  %3000 = vmatprep.subr.mxu0 0.0
  %3001 = vmatpush2.xpose.msra.mxu0 0.0
  %3002 = vmatprep.subr.mxu0 0.0
  %3003 = vmatpush2.xpose.msra.mxu0 0.0
  %3004 = vmatprep.subr.mxu0 0.0
  %3005 = vmatpush2.xpose.msra.mxu0 0.0
  %3006 = vmatprep.subr.mxu0 0.0
  %3007 = vmatpush2.xpose.msra.mxu0 0.0
  %3008 = vmatprep.mubr.f32.mxu0 0.0
  %3009 = vmatmul.mubr.f32.gmra.mxu0 %v2939
  %v3010 = vpop.f32.mrf.mxu0
  %v3011 = vadd.f32 0.0, %v3010
  %v3012 = vpop.f32.mrf.mxu0
  %3013 = vmatprep.mubr.f32.mxu0 0.0
  %3014 = vmatmul.mubr.f32.gmra.mxu0 %v2942
  %v3015 = vpop.f32.mrf.mxu0
  %v3016 = vadd.f32 0.0, %v3015
  %v3017 = vpop.f32.mrf.mxu0
  %3018 = vdwg.mxu0
  %v3020 = vsel %vm45, %v644, 0
  %v3023 = vsel %vm45, %v649, 0
  %3025 = vmatprep.subr.mxu0 0.0
  %3026 = vmatpush1.xpose.msra.mxu0 0.0
  %3027 = vmatprep.subr.mxu0 0.0
  %3028 = vmatpush1.xpose.msra.mxu0 0.0
  %3029 = vmatprep.subr.mxu0 0.0
  %3030 = vmatpush1.xpose.msra.mxu0 0.0
  %3031 = vmatprep.subr.mxu0 0.0
  %3032 = vmatpush1.xpose.msra.mxu0 0.0
  %3033 = vmatprep.subr.mxu0 0.0
  %3034 = vmatpush1.xpose.msra.mxu0 0.0
  %3035 = vmatprep.subr.mxu0 0.0
  %3036 = vmatpush1.xpose.msra.mxu0 0.0
  %3037 = vmatprep.subr.mxu0 0.0
  %3038 = vmatpush1.xpose.msra.mxu0 0.0
  %3039 = vmatprep.subr.mxu0 0.0
  %3040 = vmatpush1.xpose.msra.mxu0 0.0
  %3041 = vmatprep.subr.mxu0 0.0
  %3042 = vmatpush1.xpose.msra.mxu0 0.0
  %3043 = vmatprep.subr.mxu0 0.0
  %3044 = vmatpush1.xpose.msra.mxu0 0.0
  %3045 = vmatprep.subr.mxu0 0.0
  %3046 = vmatpush1.xpose.msra.mxu0 0.0
  %3047 = vmatprep.subr.mxu0 0.0
  %3048 = vmatpush1.xpose.msra.mxu0 0.0
  %3049 = vmatprep.subr.mxu0 0.0
  %3050 = vmatpush1.xpose.msra.mxu0 0.0
  %3051 = vmatprep.subr.mxu0 0.0
  %3052 = vmatpush1.xpose.msra.mxu0 0.0
  %3053 = vmatprep.subr.mxu0 0.0
  %3054 = vmatpush1.xpose.msra.mxu0 %v50
  %3055 = vmatprep.subr.mxu0 0.0
  %3056 = vmatpush1.xpose.msra.mxu0 %v47
  %3057 = vmatprep.subr.mxu0 0.0
  %3058 = vmatpush2.xpose.msra.mxu0 0.0
  %3059 = vmatprep.subr.mxu0 0.0
  %3060 = vmatpush2.xpose.msra.mxu0 0.0
  %3061 = vmatprep.subr.mxu0 0.0
  %3062 = vmatpush2.xpose.msra.mxu0 0.0
  %3063 = vmatprep.subr.mxu0 0.0
  %3064 = vmatpush2.xpose.msra.mxu0 0.0
  %3065 = vmatprep.subr.mxu0 0.0
  %3066 = vmatpush2.xpose.msra.mxu0 0.0
  %3067 = vmatprep.subr.mxu0 0.0
  %3068 = vmatpush2.xpose.msra.mxu0 0.0
  %3069 = vmatprep.subr.mxu0 0.0
  %3070 = vmatpush2.xpose.msra.mxu0 0.0
  %3071 = vmatprep.subr.mxu0 0.0
  %3072 = vmatpush2.xpose.msra.mxu0 0.0
  %3073 = vmatprep.subr.mxu0 0.0
  %3074 = vmatpush2.xpose.msra.mxu0 0.0
  %3075 = vmatprep.subr.mxu0 0.0
  %3076 = vmatpush2.xpose.msra.mxu0 0.0
  %3077 = vmatprep.subr.mxu0 0.0
  %3078 = vmatpush2.xpose.msra.mxu0 0.0
  %3079 = vmatprep.subr.mxu0 0.0
  %3080 = vmatpush2.xpose.msra.mxu0 0.0
  %3081 = vmatprep.subr.mxu0 0.0
  %3082 = vmatpush2.xpose.msra.mxu0 0.0
  %3083 = vmatprep.subr.mxu0 0.0
  %3084 = vmatpush2.xpose.msra.mxu0 0.0
  %3085 = vmatprep.subr.mxu0 0.0
  %3086 = vmatpush2.xpose.msra.mxu0 0.0
  %3087 = vmatprep.subr.mxu0 0.0
  %3088 = vmatpush2.xpose.msra.mxu0 0.0
  %3089 = vmatprep.mubr.f32.mxu0 0.0
  %3090 = vmatmul.mubr.f32.gmra.mxu0 %v3020
  %v3091 = vpop.f32.mrf.mxu0
  %v3092 = vadd.f32 0.0, %v3091
  %v3093 = vpop.f32.mrf.mxu0
  %3094 = vmatprep.mubr.f32.mxu0 0.0
  %3095 = vmatmul.mubr.f32.gmra.mxu0 %v3023
  %v3096 = vpop.f32.mrf.mxu0
  %v3097 = vadd.f32 0.0, %v3096
  %v3098 = vpop.f32.mrf.mxu0
  %3099 = vdwg.mxu0
  %v3101 = vsel %vm45, %v719, 0
  %v3104 = vsel %vm45, %v724, 0
  %3106 = vmatprep.subr.mxu0 0.0
  %3107 = vmatpush1.xpose.msra.mxu0 0.0
  %3108 = vmatprep.subr.mxu0 0.0
  %3109 = vmatpush1.xpose.msra.mxu0 0.0
  %3110 = vmatprep.subr.mxu0 0.0
  %3111 = vmatpush1.xpose.msra.mxu0 0.0
  %3112 = vmatprep.subr.mxu0 0.0
  %3113 = vmatpush1.xpose.msra.mxu0 0.0
  %3114 = vmatprep.subr.mxu0 0.0
  %3115 = vmatpush1.xpose.msra.mxu0 0.0
  %3116 = vmatprep.subr.mxu0 0.0
  %3117 = vmatpush1.xpose.msra.mxu0 0.0
  %3118 = vmatprep.subr.mxu0 0.0
  %3119 = vmatpush1.xpose.msra.mxu0 0.0
  %3120 = vmatprep.subr.mxu0 0.0
  %3121 = vmatpush1.xpose.msra.mxu0 0.0
  %3122 = vmatprep.subr.mxu0 0.0
  %3123 = vmatpush1.xpose.msra.mxu0 0.0
  %3124 = vmatprep.subr.mxu0 0.0
  %3125 = vmatpush1.xpose.msra.mxu0 0.0
  %3126 = vmatprep.subr.mxu0 0.0
  %3127 = vmatpush1.xpose.msra.mxu0 0.0
  %3128 = vmatprep.subr.mxu0 0.0
  %3129 = vmatpush1.xpose.msra.mxu0 0.0
  %3130 = vmatprep.subr.mxu0 0.0
  %3131 = vmatpush1.xpose.msra.mxu0 0.0
  %3132 = vmatprep.subr.mxu0 0.0
  %3133 = vmatpush1.xpose.msra.mxu0 0.0
  %3134 = vmatprep.subr.mxu0 0.0
  %3135 = vmatpush1.xpose.msra.mxu0 %v50
  %3136 = vmatprep.subr.mxu0 0.0
  %3137 = vmatpush1.xpose.msra.mxu0 %v47
  %3138 = vmatprep.subr.mxu0 0.0
  %3139 = vmatpush2.xpose.msra.mxu0 0.0
  %3140 = vmatprep.subr.mxu0 0.0
  %3141 = vmatpush2.xpose.msra.mxu0 0.0
  %3142 = vmatprep.subr.mxu0 0.0
  %3143 = vmatpush2.xpose.msra.mxu0 0.0
  %3144 = vmatprep.subr.mxu0 0.0
  %3145 = vmatpush2.xpose.msra.mxu0 0.0
  %3146 = vmatprep.subr.mxu0 0.0
  %3147 = vmatpush2.xpose.msra.mxu0 0.0
  %3148 = vmatprep.subr.mxu0 0.0
  %3149 = vmatpush2.xpose.msra.mxu0 0.0
  %3150 = vmatprep.subr.mxu0 0.0
  %3151 = vmatpush2.xpose.msra.mxu0 0.0
  %3152 = vmatprep.subr.mxu0 0.0
  %3153 = vmatpush2.xpose.msra.mxu0 0.0
  %3154 = vmatprep.subr.mxu0 0.0
  %3155 = vmatpush2.xpose.msra.mxu0 0.0
  %3156 = vmatprep.subr.mxu0 0.0
  %3157 = vmatpush2.xpose.msra.mxu0 0.0
  %3158 = vmatprep.subr.mxu0 0.0
  %3159 = vmatpush2.xpose.msra.mxu0 0.0
  %3160 = vmatprep.subr.mxu0 0.0
  %3161 = vmatpush2.xpose.msra.mxu0 0.0
  %3162 = vmatprep.subr.mxu0 0.0
  %3163 = vmatpush2.xpose.msra.mxu0 0.0
  %3164 = vmatprep.subr.mxu0 0.0
  %3165 = vmatpush2.xpose.msra.mxu0 0.0
  %3166 = vmatprep.subr.mxu0 0.0
  %3167 = vmatpush2.xpose.msra.mxu0 0.0
  %3168 = vmatprep.subr.mxu0 0.0
  %3169 = vmatpush2.xpose.msra.mxu0 0.0
  %3170 = vmatprep.mubr.f32.mxu0 0.0
  %3171 = vmatmul.mubr.f32.gmra.mxu0 %v3101
  %v3172 = vpop.f32.mrf.mxu0
  %v3173 = vadd.f32 0.0, %v3172
  %v3174 = vpop.f32.mrf.mxu0
  %3175 = vmatprep.mubr.f32.mxu0 0.0
  %3176 = vmatmul.mubr.f32.gmra.mxu0 %v3104
  %v3177 = vpop.f32.mrf.mxu0
  %v3178 = vadd.f32 0.0, %v3177
  %v3179 = vpop.f32.mrf.mxu0
  %3180 = vdwg.mxu0
  %v3182 = vsel %vm45, %v794, 0
  %v3185 = vsel %vm45, %v799, 0
  %3187 = vmatprep.subr.mxu0 0.0
  %3188 = vmatpush1.xpose.msra.mxu0 0.0
  %3189 = vmatprep.subr.mxu0 0.0
  %3190 = vmatpush1.xpose.msra.mxu0 0.0
  %3191 = vmatprep.subr.mxu0 0.0
  %3192 = vmatpush1.xpose.msra.mxu0 0.0
  %3193 = vmatprep.subr.mxu0 0.0
  %3194 = vmatpush1.xpose.msra.mxu0 0.0
  %3195 = vmatprep.subr.mxu0 0.0
  %3196 = vmatpush1.xpose.msra.mxu0 0.0
  %3197 = vmatprep.subr.mxu0 0.0
  %3198 = vmatpush1.xpose.msra.mxu0 0.0
  %3199 = vmatprep.subr.mxu0 0.0
  %3200 = vmatpush1.xpose.msra.mxu0 0.0
  %3201 = vmatprep.subr.mxu0 0.0
  %3202 = vmatpush1.xpose.msra.mxu0 0.0
  %3203 = vmatprep.subr.mxu0 0.0
  %3204 = vmatpush1.xpose.msra.mxu0 0.0
  %3205 = vmatprep.subr.mxu0 0.0
  %3206 = vmatpush1.xpose.msra.mxu0 0.0
  %3207 = vmatprep.subr.mxu0 0.0
  %3208 = vmatpush1.xpose.msra.mxu0 0.0
  %3209 = vmatprep.subr.mxu0 0.0
  %3210 = vmatpush1.xpose.msra.mxu0 0.0
  %3211 = vmatprep.subr.mxu0 0.0
  %3212 = vmatpush1.xpose.msra.mxu0 0.0
  %3213 = vmatprep.subr.mxu0 0.0
  %3214 = vmatpush1.xpose.msra.mxu0 0.0
  %3215 = vmatprep.subr.mxu0 0.0
  %3216 = vmatpush1.xpose.msra.mxu0 %v50
  %3217 = vmatprep.subr.mxu0 0.0
  %3218 = vmatpush1.xpose.msra.mxu0 %v47
  %3219 = vmatprep.subr.mxu0 0.0
  %3220 = vmatpush2.xpose.msra.mxu0 0.0
  %3221 = vmatprep.subr.mxu0 0.0
  %3222 = vmatpush2.xpose.msra.mxu0 0.0
  %3223 = vmatprep.subr.mxu0 0.0
  %3224 = vmatpush2.xpose.msra.mxu0 0.0
  %3225 = vmatprep.subr.mxu0 0.0
  %3226 = vmatpush2.xpose.msra.mxu0 0.0
  %3227 = vmatprep.subr.mxu0 0.0
  %3228 = vmatpush2.xpose.msra.mxu0 0.0
  %3229 = vmatprep.subr.mxu0 0.0
  %3230 = vmatpush2.xpose.msra.mxu0 0.0
  %3231 = vmatprep.subr.mxu0 0.0
  %3232 = vmatpush2.xpose.msra.mxu0 0.0
  %3233 = vmatprep.subr.mxu0 0.0
  %3234 = vmatpush2.xpose.msra.mxu0 0.0
  %3235 = vmatprep.subr.mxu0 0.0
  %3236 = vmatpush2.xpose.msra.mxu0 0.0
  %3237 = vmatprep.subr.mxu0 0.0
  %3238 = vmatpush2.xpose.msra.mxu0 0.0
  %3239 = vmatprep.subr.mxu0 0.0
  %3240 = vmatpush2.xpose.msra.mxu0 0.0
  %3241 = vmatprep.subr.mxu0 0.0
  %3242 = vmatpush2.xpose.msra.mxu0 0.0
  %3243 = vmatprep.subr.mxu0 0.0
  %3244 = vmatpush2.xpose.msra.mxu0 0.0
  %3245 = vmatprep.subr.mxu0 0.0
  %3246 = vmatpush2.xpose.msra.mxu0 0.0
  %3247 = vmatprep.subr.mxu0 0.0
  %3248 = vmatpush2.xpose.msra.mxu0 0.0
  %3249 = vmatprep.subr.mxu0 0.0
  %3250 = vmatpush2.xpose.msra.mxu0 0.0
  %3251 = vmatprep.mubr.f32.mxu0 0.0
  %3252 = vmatmul.mubr.f32.gmra.mxu0 %v3182
  %v3253 = vpop.f32.mrf.mxu0
  %v3254 = vadd.f32 0.0, %v3253
  %v3255 = vpop.f32.mrf.mxu0
  %3256 = vmatprep.mubr.f32.mxu0 0.0
  %3257 = vmatmul.mubr.f32.gmra.mxu0 %v3185
  %v3258 = vpop.f32.mrf.mxu0
  %v3259 = vadd.f32 0.0, %v3258
  %v3260 = vpop.f32.mrf.mxu0
  %3261 = vdwg.mxu0
  %v3263 = vsel %vm45, %v869, 0
  %v3266 = vsel %vm45, %v874, 0
  %3268 = vmatprep.subr.mxu0 0.0
  %3269 = vmatpush1.xpose.msra.mxu0 0.0
  %3270 = vmatprep.subr.mxu0 0.0
  %3271 = vmatpush1.xpose.msra.mxu0 0.0
  %3272 = vmatprep.subr.mxu0 0.0
  %3273 = vmatpush1.xpose.msra.mxu0 0.0
  %3274 = vmatprep.subr.mxu0 0.0
  %3275 = vmatpush1.xpose.msra.mxu0 0.0
  %3276 = vmatprep.subr.mxu0 0.0
  %3277 = vmatpush1.xpose.msra.mxu0 0.0
  %3278 = vmatprep.subr.mxu0 0.0
  %3279 = vmatpush1.xpose.msra.mxu0 0.0
  %3280 = vmatprep.subr.mxu0 0.0
  %3281 = vmatpush1.xpose.msra.mxu0 0.0
  %3282 = vmatprep.subr.mxu0 0.0
  %3283 = vmatpush1.xpose.msra.mxu0 0.0
  %3284 = vmatprep.subr.mxu0 0.0
  %3285 = vmatpush1.xpose.msra.mxu0 0.0
  %3286 = vmatprep.subr.mxu0 0.0
  %3287 = vmatpush1.xpose.msra.mxu0 0.0
  %3288 = vmatprep.subr.mxu0 0.0
  %3289 = vmatpush1.xpose.msra.mxu0 0.0
  %3290 = vmatprep.subr.mxu0 0.0
  %3291 = vmatpush1.xpose.msra.mxu0 0.0
  %3292 = vmatprep.subr.mxu0 0.0
  %3293 = vmatpush1.xpose.msra.mxu0 0.0
  %3294 = vmatprep.subr.mxu0 0.0
  %3295 = vmatpush1.xpose.msra.mxu0 0.0
  %3296 = vmatprep.subr.mxu0 0.0
  %3297 = vmatpush1.xpose.msra.mxu0 %v50
  %3298 = vmatprep.subr.mxu0 0.0
  %3299 = vmatpush1.xpose.msra.mxu0 %v47
  %3300 = vmatprep.subr.mxu0 0.0
  %3301 = vmatpush2.xpose.msra.mxu0 0.0
  %3302 = vmatprep.subr.mxu0 0.0
  %3303 = vmatpush2.xpose.msra.mxu0 0.0
  %3304 = vmatprep.subr.mxu0 0.0
  %3305 = vmatpush2.xpose.msra.mxu0 0.0
  %3306 = vmatprep.subr.mxu0 0.0
  %3307 = vmatpush2.xpose.msra.mxu0 0.0
  %3308 = vmatprep.subr.mxu0 0.0
  %3309 = vmatpush2.xpose.msra.mxu0 0.0
  %3310 = vmatprep.subr.mxu0 0.0
  %3311 = vmatpush2.xpose.msra.mxu0 0.0
  %3312 = vmatprep.subr.mxu0 0.0
  %3313 = vmatpush2.xpose.msra.mxu0 0.0
  %3314 = vmatprep.subr.mxu0 0.0
  %3315 = vmatpush2.xpose.msra.mxu0 0.0
  %3316 = vmatprep.subr.mxu0 0.0
  %3317 = vmatpush2.xpose.msra.mxu0 0.0
  %3318 = vmatprep.subr.mxu0 0.0
  %3319 = vmatpush2.xpose.msra.mxu0 0.0
  %3320 = vmatprep.subr.mxu0 0.0
  %3321 = vmatpush2.xpose.msra.mxu0 0.0
  %3322 = vmatprep.subr.mxu0 0.0
  %3323 = vmatpush2.xpose.msra.mxu0 0.0
  %3324 = vmatprep.subr.mxu0 0.0
  %3325 = vmatpush2.xpose.msra.mxu0 0.0
  %3326 = vmatprep.subr.mxu0 0.0
  %3327 = vmatpush2.xpose.msra.mxu0 0.0
  %3328 = vmatprep.subr.mxu0 0.0
  %3329 = vmatpush2.xpose.msra.mxu0 0.0
  %3330 = vmatprep.subr.mxu0 0.0
  %3331 = vmatpush2.xpose.msra.mxu0 0.0
  %3332 = vmatprep.mubr.f32.mxu0 0.0
  %3333 = vmatmul.mubr.f32.gmra.mxu0 %v3263
  %v3334 = vpop.f32.mrf.mxu0
  %v3335 = vadd.f32 0.0, %v3334
  %v3336 = vpop.f32.mrf.mxu0
  %3337 = vmatprep.mubr.f32.mxu0 0.0
  %3338 = vmatmul.mubr.f32.gmra.mxu0 %v3266
  %v3339 = vpop.f32.mrf.mxu0
  %v3340 = vadd.f32 0.0, %v3339
  %v3341 = vpop.f32.mrf.mxu0
  %3342 = vdwg.mxu0
  %v3344 = vsel %vm45, %v944, 0
  %v3347 = vsel %vm45, %v949, 0
  %3349 = vmatprep.subr.mxu0 0.0
  %3350 = vmatpush1.xpose.msra.mxu0 0.0
  %3351 = vmatprep.subr.mxu0 0.0
  %3352 = vmatpush1.xpose.msra.mxu0 0.0
  %3353 = vmatprep.subr.mxu0 0.0
  %3354 = vmatpush1.xpose.msra.mxu0 0.0
  %3355 = vmatprep.subr.mxu0 0.0
  %3356 = vmatpush1.xpose.msra.mxu0 0.0
  %3357 = vmatprep.subr.mxu0 0.0
  %3358 = vmatpush1.xpose.msra.mxu0 0.0
  %3359 = vmatprep.subr.mxu0 0.0
  %3360 = vmatpush1.xpose.msra.mxu0 0.0
  %3361 = vmatprep.subr.mxu0 0.0
  %3362 = vmatpush1.xpose.msra.mxu0 0.0
  %3363 = vmatprep.subr.mxu0 0.0
  %3364 = vmatpush1.xpose.msra.mxu0 0.0
  %3365 = vmatprep.subr.mxu0 0.0
  %3366 = vmatpush1.xpose.msra.mxu0 0.0
  %3367 = vmatprep.subr.mxu0 0.0
  %3368 = vmatpush1.xpose.msra.mxu0 0.0
  %3369 = vmatprep.subr.mxu0 0.0
  %3370 = vmatpush1.xpose.msra.mxu0 0.0
  %3371 = vmatprep.subr.mxu0 0.0
  %3372 = vmatpush1.xpose.msra.mxu0 0.0
  %3373 = vmatprep.subr.mxu0 0.0
  %3374 = vmatpush1.xpose.msra.mxu0 0.0
  %3375 = vmatprep.subr.mxu0 0.0
  %3376 = vmatpush1.xpose.msra.mxu0 0.0
  %3377 = vmatprep.subr.mxu0 0.0
  %3378 = vmatpush1.xpose.msra.mxu0 %v50
  %3379 = vmatprep.subr.mxu0 0.0
  %3380 = vmatpush1.xpose.msra.mxu0 %v47
  %3381 = vmatprep.subr.mxu0 0.0
  %3382 = vmatpush2.xpose.msra.mxu0 0.0
  %3383 = vmatprep.subr.mxu0 0.0
  %3384 = vmatpush2.xpose.msra.mxu0 0.0
  %3385 = vmatprep.subr.mxu0 0.0
  %3386 = vmatpush2.xpose.msra.mxu0 0.0
  %3387 = vmatprep.subr.mxu0 0.0
  %3388 = vmatpush2.xpose.msra.mxu0 0.0
  %3389 = vmatprep.subr.mxu0 0.0
  %3390 = vmatpush2.xpose.msra.mxu0 0.0
  %3391 = vmatprep.subr.mxu0 0.0
  %3392 = vmatpush2.xpose.msra.mxu0 0.0
  %3393 = vmatprep.subr.mxu0 0.0
  %3394 = vmatpush2.xpose.msra.mxu0 0.0
  %3395 = vmatprep.subr.mxu0 0.0
  %3396 = vmatpush2.xpose.msra.mxu0 0.0
  %3397 = vmatprep.subr.mxu0 0.0
  %3398 = vmatpush2.xpose.msra.mxu0 0.0
  %3399 = vmatprep.subr.mxu0 0.0
  %3400 = vmatpush2.xpose.msra.mxu0 0.0
  %3401 = vmatprep.subr.mxu0 0.0
  %3402 = vmatpush2.xpose.msra.mxu0 0.0
  %3403 = vmatprep.subr.mxu0 0.0
  %3404 = vmatpush2.xpose.msra.mxu0 0.0
  %3405 = vmatprep.subr.mxu0 0.0
  %3406 = vmatpush2.xpose.msra.mxu0 0.0
  %3407 = vmatprep.subr.mxu0 0.0
  %3408 = vmatpush2.xpose.msra.mxu0 0.0
  %3409 = vmatprep.subr.mxu0 0.0
  %3410 = vmatpush2.xpose.msra.mxu0 0.0
  %3411 = vmatprep.subr.mxu0 0.0
  %3412 = vmatpush2.xpose.msra.mxu0 0.0
  %3413 = vmatprep.mubr.f32.mxu0 0.0
  %3414 = vmatmul.mubr.f32.gmra.mxu0 %v3344
  %v3415 = vpop.f32.mrf.mxu0
  %v3416 = vadd.f32 0.0, %v3415
  %v3417 = vpop.f32.mrf.mxu0
  %3418 = vmatprep.mubr.f32.mxu0 0.0
  %3419 = vmatmul.mubr.f32.gmra.mxu0 %v3347
  %v3420 = vpop.f32.mrf.mxu0
  %v3421 = vadd.f32 0.0, %v3420
  %v3422 = vpop.f32.mrf.mxu0
  %3423 = vdwg.mxu0
  %v3425 = vsel %vm45, %v1019, 0
  %v3428 = vsel %vm45, %v1024, 0
  %3430 = vmatprep.subr.mxu0 0.0
  %3431 = vmatpush1.xpose.msra.mxu0 0.0
  %3432 = vmatprep.subr.mxu0 0.0
  %3433 = vmatpush1.xpose.msra.mxu0 0.0
  %3434 = vmatprep.subr.mxu0 0.0
  %3435 = vmatpush1.xpose.msra.mxu0 0.0
  %3436 = vmatprep.subr.mxu0 0.0
  %3437 = vmatpush1.xpose.msra.mxu0 0.0
  %3438 = vmatprep.subr.mxu0 0.0
  %3439 = vmatpush1.xpose.msra.mxu0 0.0
  %3440 = vmatprep.subr.mxu0 0.0
  %3441 = vmatpush1.xpose.msra.mxu0 0.0
  %3442 = vmatprep.subr.mxu0 0.0
  %3443 = vmatpush1.xpose.msra.mxu0 0.0
  %3444 = vmatprep.subr.mxu0 0.0
  %3445 = vmatpush1.xpose.msra.mxu0 0.0
  %3446 = vmatprep.subr.mxu0 0.0
  %3447 = vmatpush1.xpose.msra.mxu0 0.0
  %3448 = vmatprep.subr.mxu0 0.0
  %3449 = vmatpush1.xpose.msra.mxu0 0.0
  %3450 = vmatprep.subr.mxu0 0.0
  %3451 = vmatpush1.xpose.msra.mxu0 0.0
  %3452 = vmatprep.subr.mxu0 0.0
  %3453 = vmatpush1.xpose.msra.mxu0 0.0
  %3454 = vmatprep.subr.mxu0 0.0
  %3455 = vmatpush1.xpose.msra.mxu0 0.0
  %3456 = vmatprep.subr.mxu0 0.0
  %3457 = vmatpush1.xpose.msra.mxu0 0.0
  %3458 = vmatprep.subr.mxu0 0.0
  %3459 = vmatpush1.xpose.msra.mxu0 %v50
  %3460 = vmatprep.subr.mxu0 0.0
  %3461 = vmatpush1.xpose.msra.mxu0 %v47
  %3462 = vmatprep.subr.mxu0 0.0
  %3463 = vmatpush2.xpose.msra.mxu0 0.0
  %3464 = vmatprep.subr.mxu0 0.0
  %3465 = vmatpush2.xpose.msra.mxu0 0.0
  %3466 = vmatprep.subr.mxu0 0.0
  %3467 = vmatpush2.xpose.msra.mxu0 0.0
  %3468 = vmatprep.subr.mxu0 0.0
  %3469 = vmatpush2.xpose.msra.mxu0 0.0
  %3470 = vmatprep.subr.mxu0 0.0
  %3471 = vmatpush2.xpose.msra.mxu0 0.0
  %3472 = vmatprep.subr.mxu0 0.0
  %3473 = vmatpush2.xpose.msra.mxu0 0.0
  %3474 = vmatprep.subr.mxu0 0.0
  %3475 = vmatpush2.xpose.msra.mxu0 0.0
  %3476 = vmatprep.subr.mxu0 0.0
  %3477 = vmatpush2.xpose.msra.mxu0 0.0
  %3478 = vmatprep.subr.mxu0 0.0
  %3479 = vmatpush2.xpose.msra.mxu0 0.0
  %3480 = vmatprep.subr.mxu0 0.0
  %3481 = vmatpush2.xpose.msra.mxu0 0.0
  %3482 = vmatprep.subr.mxu0 0.0
  %3483 = vmatpush2.xpose.msra.mxu0 0.0
  %3484 = vmatprep.subr.mxu0 0.0
  %3485 = vmatpush2.xpose.msra.mxu0 0.0
  %3486 = vmatprep.subr.mxu0 0.0
  %3487 = vmatpush2.xpose.msra.mxu0 0.0
  %3488 = vmatprep.subr.mxu0 0.0
  %3489 = vmatpush2.xpose.msra.mxu0 0.0
  %3490 = vmatprep.subr.mxu0 0.0
  %3491 = vmatpush2.xpose.msra.mxu0 0.0
  %3492 = vmatprep.subr.mxu0 0.0
  %3493 = vmatpush2.xpose.msra.mxu0 0.0
  %3494 = vmatprep.mubr.f32.mxu0 0.0
  %3495 = vmatmul.mubr.f32.gmra.mxu0 %v3425
  %v3496 = vpop.f32.mrf.mxu0
  %v3497 = vadd.f32 0.0, %v3496
  %v3498 = vpop.f32.mrf.mxu0
  %3499 = vmatprep.mubr.f32.mxu0 0.0
  %3500 = vmatmul.mubr.f32.gmra.mxu0 %v3428
  %v3501 = vpop.f32.mrf.mxu0
  %v3502 = vadd.f32 0.0, %v3501
  %v3503 = vpop.f32.mrf.mxu0
  %3504 = vdwg.mxu0
  %v3506 = vsel %vm45, %v1094, 0
  %v3509 = vsel %vm45, %v1099, 0
  %3511 = vmatprep.subr.mxu0 0.0
  %3512 = vmatpush1.xpose.msra.mxu0 0.0
  %3513 = vmatprep.subr.mxu0 0.0
  %3514 = vmatpush1.xpose.msra.mxu0 0.0
  %3515 = vmatprep.subr.mxu0 0.0
  %3516 = vmatpush1.xpose.msra.mxu0 0.0
  %3517 = vmatprep.subr.mxu0 0.0
  %3518 = vmatpush1.xpose.msra.mxu0 0.0
  %3519 = vmatprep.subr.mxu0 0.0
  %3520 = vmatpush1.xpose.msra.mxu0 0.0
  %3521 = vmatprep.subr.mxu0 0.0
  %3522 = vmatpush1.xpose.msra.mxu0 0.0
  %3523 = vmatprep.subr.mxu0 0.0
  %3524 = vmatpush1.xpose.msra.mxu0 0.0
  %3525 = vmatprep.subr.mxu0 0.0
  %3526 = vmatpush1.xpose.msra.mxu0 0.0
  %3527 = vmatprep.subr.mxu0 0.0
  %3528 = vmatpush1.xpose.msra.mxu0 0.0
  %3529 = vmatprep.subr.mxu0 0.0
  %3530 = vmatpush1.xpose.msra.mxu0 0.0
  %3531 = vmatprep.subr.mxu0 0.0
  %3532 = vmatpush1.xpose.msra.mxu0 0.0
  %3533 = vmatprep.subr.mxu0 0.0
  %3534 = vmatpush1.xpose.msra.mxu0 0.0
  %3535 = vmatprep.subr.mxu0 0.0
  %3536 = vmatpush1.xpose.msra.mxu0 0.0
  %3537 = vmatprep.subr.mxu0 0.0
  %3538 = vmatpush1.xpose.msra.mxu0 0.0
  %3539 = vmatprep.subr.mxu0 0.0
  %3540 = vmatpush1.xpose.msra.mxu0 %v50
  %3541 = vmatprep.subr.mxu0 0.0
  %3542 = vmatpush1.xpose.msra.mxu0 %v47
  %3543 = vmatprep.subr.mxu0 0.0
  %3544 = vmatpush2.xpose.msra.mxu0 0.0
  %3545 = vmatprep.subr.mxu0 0.0
  %3546 = vmatpush2.xpose.msra.mxu0 0.0
  %3547 = vmatprep.subr.mxu0 0.0
  %3548 = vmatpush2.xpose.msra.mxu0 0.0
  %3549 = vmatprep.subr.mxu0 0.0
  %3550 = vmatpush2.xpose.msra.mxu0 0.0
  %3551 = vmatprep.subr.mxu0 0.0
  %3552 = vmatpush2.xpose.msra.mxu0 0.0
  %3553 = vmatprep.subr.mxu0 0.0
  %3554 = vmatpush2.xpose.msra.mxu0 0.0
  %3555 = vmatprep.subr.mxu0 0.0
  %3556 = vmatpush2.xpose.msra.mxu0 0.0
  %3557 = vmatprep.subr.mxu0 0.0
  %3558 = vmatpush2.xpose.msra.mxu0 0.0
  %3559 = vmatprep.subr.mxu0 0.0
  %3560 = vmatpush2.xpose.msra.mxu0 0.0
  %3561 = vmatprep.subr.mxu0 0.0
  %3562 = vmatpush2.xpose.msra.mxu0 0.0
  %3563 = vmatprep.subr.mxu0 0.0
  %3564 = vmatpush2.xpose.msra.mxu0 0.0
  %3565 = vmatprep.subr.mxu0 0.0
  %3566 = vmatpush2.xpose.msra.mxu0 0.0
  %3567 = vmatprep.subr.mxu0 0.0
  %3568 = vmatpush2.xpose.msra.mxu0 0.0
  %3569 = vmatprep.subr.mxu0 0.0
  %3570 = vmatpush2.xpose.msra.mxu0 0.0
  %3571 = vmatprep.subr.mxu0 0.0
  %3572 = vmatpush2.xpose.msra.mxu0 0.0
  %3573 = vmatprep.subr.mxu0 0.0
  %3574 = vmatpush2.xpose.msra.mxu0 0.0
  %3575 = vmatprep.mubr.f32.mxu0 0.0
  %3576 = vmatmul.mubr.f32.gmra.mxu0 %v3506
  %v3577 = vpop.f32.mrf.mxu0
  %v3578 = vadd.f32 0.0, %v3577
  %v3579 = vpop.f32.mrf.mxu0
  %3580 = vmatprep.mubr.f32.mxu0 0.0
  %3581 = vmatmul.mubr.f32.gmra.mxu0 %v3509
  %v3582 = vpop.f32.mrf.mxu0
  %v3583 = vadd.f32 0.0, %v3582
  %v3584 = vpop.f32.mrf.mxu0
  %3585 = vdwg.mxu0
  %v3587 = vsel %vm45, %v1169, 0
  %v3590 = vsel %vm45, %v1174, 0
  %3592 = vmatprep.subr.mxu0 0.0
  %3593 = vmatpush1.xpose.msra.mxu0 0.0
  %3594 = vmatprep.subr.mxu0 0.0
  %3595 = vmatpush1.xpose.msra.mxu0 0.0
  %3596 = vmatprep.subr.mxu0 0.0
  %3597 = vmatpush1.xpose.msra.mxu0 0.0
  %3598 = vmatprep.subr.mxu0 0.0
  %3599 = vmatpush1.xpose.msra.mxu0 0.0
  %3600 = vmatprep.subr.mxu0 0.0
  %3601 = vmatpush1.xpose.msra.mxu0 0.0
  %3602 = vmatprep.subr.mxu0 0.0
  %3603 = vmatpush1.xpose.msra.mxu0 0.0
  %3604 = vmatprep.subr.mxu0 0.0
  %3605 = vmatpush1.xpose.msra.mxu0 0.0
  %3606 = vmatprep.subr.mxu0 0.0
  %3607 = vmatpush1.xpose.msra.mxu0 0.0
  %3608 = vmatprep.subr.mxu0 0.0
  %3609 = vmatpush1.xpose.msra.mxu0 0.0
  %3610 = vmatprep.subr.mxu0 0.0
  %3611 = vmatpush1.xpose.msra.mxu0 0.0
  %3612 = vmatprep.subr.mxu0 0.0
  %3613 = vmatpush1.xpose.msra.mxu0 0.0
  %3614 = vmatprep.subr.mxu0 0.0
  %3615 = vmatpush1.xpose.msra.mxu0 0.0
  %3616 = vmatprep.subr.mxu0 0.0
  %3617 = vmatpush1.xpose.msra.mxu0 0.0
  %3618 = vmatprep.subr.mxu0 0.0
  %3619 = vmatpush1.xpose.msra.mxu0 0.0
  %3620 = vmatprep.subr.mxu0 0.0
  %3621 = vmatpush1.xpose.msra.mxu0 %v50
  %3622 = vmatprep.subr.mxu0 0.0
  %3623 = vmatpush1.xpose.msra.mxu0 %v47
  %3624 = vmatprep.subr.mxu0 0.0
  %3625 = vmatpush2.xpose.msra.mxu0 0.0
  %3626 = vmatprep.subr.mxu0 0.0
  %3627 = vmatpush2.xpose.msra.mxu0 0.0
  %3628 = vmatprep.subr.mxu0 0.0
  %3629 = vmatpush2.xpose.msra.mxu0 0.0
  %3630 = vmatprep.subr.mxu0 0.0
  %3631 = vmatpush2.xpose.msra.mxu0 0.0
  %3632 = vmatprep.subr.mxu0 0.0
  %3633 = vmatpush2.xpose.msra.mxu0 0.0
  %3634 = vmatprep.subr.mxu0 0.0
  %3635 = vmatpush2.xpose.msra.mxu0 0.0
  %3636 = vmatprep.subr.mxu0 0.0
  %3637 = vmatpush2.xpose.msra.mxu0 0.0
  %3638 = vmatprep.subr.mxu0 0.0
  %3639 = vmatpush2.xpose.msra.mxu0 0.0
  %3640 = vmatprep.subr.mxu0 0.0
  %3641 = vmatpush2.xpose.msra.mxu0 0.0
  %3642 = vmatprep.subr.mxu0 0.0
  %3643 = vmatpush2.xpose.msra.mxu0 0.0
  %3644 = vmatprep.subr.mxu0 0.0
  %3645 = vmatpush2.xpose.msra.mxu0 0.0
  %3646 = vmatprep.subr.mxu0 0.0
  %3647 = vmatpush2.xpose.msra.mxu0 0.0
  %3648 = vmatprep.subr.mxu0 0.0
  %3649 = vmatpush2.xpose.msra.mxu0 0.0
  %3650 = vmatprep.subr.mxu0 0.0
  %3651 = vmatpush2.xpose.msra.mxu0 0.0
  %3652 = vmatprep.subr.mxu0 0.0
  %3653 = vmatpush2.xpose.msra.mxu0 0.0
  %3654 = vmatprep.subr.mxu0 0.0
  %3655 = vmatpush2.xpose.msra.mxu0 0.0
  %3656 = vmatprep.mubr.f32.mxu0 0.0
  %3657 = vmatmul.mubr.f32.gmra.mxu0 %v3587
  %v3658 = vpop.f32.mrf.mxu0
  %v3659 = vadd.f32 0.0, %v3658
  %v3660 = vpop.f32.mrf.mxu0
  %3661 = vmatprep.mubr.f32.mxu0 0.0
  %3662 = vmatmul.mubr.f32.gmra.mxu0 %v3590
  %v3663 = vpop.f32.mrf.mxu0
  %v3664 = vadd.f32 0.0, %v3663
  %v3665 = vpop.f32.mrf.mxu0
  %3666 = vdwg.mxu0
  %v3668 = vsel %vm45, %v1244, 0
  %v3671 = vsel %vm45, %v1249, 0
  %3673 = vmatprep.subr.mxu0 0.0
  %3674 = vmatpush1.xpose.msra.mxu0 0.0
  %3675 = vmatprep.subr.mxu0 0.0
  %3676 = vmatpush1.xpose.msra.mxu0 0.0
  %3677 = vmatprep.subr.mxu0 0.0
  %3678 = vmatpush1.xpose.msra.mxu0 0.0
  %3679 = vmatprep.subr.mxu0 0.0
  %3680 = vmatpush1.xpose.msra.mxu0 0.0
  %3681 = vmatprep.subr.mxu0 0.0
  %3682 = vmatpush1.xpose.msra.mxu0 0.0
  %3683 = vmatprep.subr.mxu0 0.0
  %3684 = vmatpush1.xpose.msra.mxu0 0.0
  %3685 = vmatprep.subr.mxu0 0.0
  %3686 = vmatpush1.xpose.msra.mxu0 0.0
  %3687 = vmatprep.subr.mxu0 0.0
  %3688 = vmatpush1.xpose.msra.mxu0 0.0
  %3689 = vmatprep.subr.mxu0 0.0
  %3690 = vmatpush1.xpose.msra.mxu0 0.0
  %3691 = vmatprep.subr.mxu0 0.0
  %3692 = vmatpush1.xpose.msra.mxu0 0.0
  %3693 = vmatprep.subr.mxu0 0.0
  %3694 = vmatpush1.xpose.msra.mxu0 0.0
  %3695 = vmatprep.subr.mxu0 0.0
  %3696 = vmatpush1.xpose.msra.mxu0 0.0
  %3697 = vmatprep.subr.mxu0 0.0
  %3698 = vmatpush1.xpose.msra.mxu0 0.0
  %3699 = vmatprep.subr.mxu0 0.0
  %3700 = vmatpush1.xpose.msra.mxu0 0.0
  %3701 = vmatprep.subr.mxu0 0.0
  %3702 = vmatpush1.xpose.msra.mxu0 %v50
  %3703 = vmatprep.subr.mxu0 0.0
  %3704 = vmatpush1.xpose.msra.mxu0 %v47
  %3705 = vmatprep.subr.mxu0 0.0
  %3706 = vmatpush2.xpose.msra.mxu0 0.0
  %3707 = vmatprep.subr.mxu0 0.0
  %3708 = vmatpush2.xpose.msra.mxu0 0.0
  %3709 = vmatprep.subr.mxu0 0.0
  %3710 = vmatpush2.xpose.msra.mxu0 0.0
  %3711 = vmatprep.subr.mxu0 0.0
  %3712 = vmatpush2.xpose.msra.mxu0 0.0
  %3713 = vmatprep.subr.mxu0 0.0
  %3714 = vmatpush2.xpose.msra.mxu0 0.0
  %3715 = vmatprep.subr.mxu0 0.0
  %3716 = vmatpush2.xpose.msra.mxu0 0.0
  %3717 = vmatprep.subr.mxu0 0.0
  %3718 = vmatpush2.xpose.msra.mxu0 0.0
  %3719 = vmatprep.subr.mxu0 0.0
  %3720 = vmatpush2.xpose.msra.mxu0 0.0
  %3721 = vmatprep.subr.mxu0 0.0
  %3722 = vmatpush2.xpose.msra.mxu0 0.0
  %3723 = vmatprep.subr.mxu0 0.0
  %3724 = vmatpush2.xpose.msra.mxu0 0.0
  %3725 = vmatprep.subr.mxu0 0.0
  %3726 = vmatpush2.xpose.msra.mxu0 0.0
  %3727 = vmatprep.subr.mxu0 0.0
  %3728 = vmatpush2.xpose.msra.mxu0 0.0
  %3729 = vmatprep.subr.mxu0 0.0
  %3730 = vmatpush2.xpose.msra.mxu0 0.0
  %3731 = vmatprep.subr.mxu0 0.0
  %3732 = vmatpush2.xpose.msra.mxu0 0.0
  %3733 = vmatprep.subr.mxu0 0.0
  %3734 = vmatpush2.xpose.msra.mxu0 0.0
  %3735 = vmatprep.subr.mxu0 0.0
  %3736 = vmatpush2.xpose.msra.mxu0 0.0
  %3737 = vmatprep.mubr.f32.mxu0 0.0
  %3738 = vmatmul.mubr.f32.gmra.mxu0 %v3668
  %v3739 = vpop.f32.mrf.mxu0
  %v3740 = vadd.f32 0.0, %v3739
  %v3741 = vpop.f32.mrf.mxu0
  %3742 = vmatprep.mubr.f32.mxu0 0.0
  %3743 = vmatmul.mubr.f32.gmra.mxu0 %v3671
  %v3744 = vpop.f32.mrf.mxu0
  %v3745 = vadd.f32 0.0, %v3744
  %v3746 = vpop.f32.mrf.mxu0
  %3747 = vdwg.mxu0
  %v3749 = vsel %vm45, %v1319, 0
  %v3752 = vsel %vm45, %v1324, 0
  %3754 = vmatprep.subr.mxu0 0.0
  %3755 = vmatpush1.xpose.msra.mxu0 0.0
  %3756 = vmatprep.subr.mxu0 0.0
  %3757 = vmatpush1.xpose.msra.mxu0 0.0
  %3758 = vmatprep.subr.mxu0 0.0
  %3759 = vmatpush1.xpose.msra.mxu0 0.0
  %3760 = vmatprep.subr.mxu0 0.0
  %3761 = vmatpush1.xpose.msra.mxu0 0.0
  %3762 = vmatprep.subr.mxu0 0.0
  %3763 = vmatpush1.xpose.msra.mxu0 0.0
  %3764 = vmatprep.subr.mxu0 0.0
  %3765 = vmatpush1.xpose.msra.mxu0 0.0
  %3766 = vmatprep.subr.mxu0 0.0
  %3767 = vmatpush1.xpose.msra.mxu0 0.0
  %3768 = vmatprep.subr.mxu0 0.0
  %3769 = vmatpush1.xpose.msra.mxu0 0.0
  %3770 = vmatprep.subr.mxu0 0.0
  %3771 = vmatpush1.xpose.msra.mxu0 0.0
  %3772 = vmatprep.subr.mxu0 0.0
  %3773 = vmatpush1.xpose.msra.mxu0 0.0
  %3774 = vmatprep.subr.mxu0 0.0
  %3775 = vmatpush1.xpose.msra.mxu0 0.0
  %3776 = vmatprep.subr.mxu0 0.0
  %3777 = vmatpush1.xpose.msra.mxu0 0.0
  %3778 = vmatprep.subr.mxu0 0.0
  %3779 = vmatpush1.xpose.msra.mxu0 0.0
  %3780 = vmatprep.subr.mxu0 0.0
  %3781 = vmatpush1.xpose.msra.mxu0 0.0
  %3782 = vmatprep.subr.mxu0 0.0
  %3783 = vmatpush1.xpose.msra.mxu0 %v50
  %3784 = vmatprep.subr.mxu0 0.0
  %3785 = vmatpush1.xpose.msra.mxu0 %v47
  %3786 = vmatprep.subr.mxu0 0.0
  %3787 = vmatpush2.xpose.msra.mxu0 0.0
  %3788 = vmatprep.subr.mxu0 0.0
  %3789 = vmatpush2.xpose.msra.mxu0 0.0
  %3790 = vmatprep.subr.mxu0 0.0
  %3791 = vmatpush2.xpose.msra.mxu0 0.0
  %3792 = vmatprep.subr.mxu0 0.0
  %3793 = vmatpush2.xpose.msra.mxu0 0.0
  %3794 = vmatprep.subr.mxu0 0.0
  %3795 = vmatpush2.xpose.msra.mxu0 0.0
  %3796 = vmatprep.subr.mxu0 0.0
  %3797 = vmatpush2.xpose.msra.mxu0 0.0
  %3798 = vmatprep.subr.mxu0 0.0
  %3799 = vmatpush2.xpose.msra.mxu0 0.0
  %3800 = vmatprep.subr.mxu0 0.0
  %3801 = vmatpush2.xpose.msra.mxu0 0.0
  %3802 = vmatprep.subr.mxu0 0.0
  %3803 = vmatpush2.xpose.msra.mxu0 0.0
  %3804 = vmatprep.subr.mxu0 0.0
  %3805 = vmatpush2.xpose.msra.mxu0 0.0
  %3806 = vmatprep.subr.mxu0 0.0
  %3807 = vmatpush2.xpose.msra.mxu0 0.0
  %3808 = vmatprep.subr.mxu0 0.0
  %3809 = vmatpush2.xpose.msra.mxu0 0.0
  %3810 = vmatprep.subr.mxu0 0.0
  %3811 = vmatpush2.xpose.msra.mxu0 0.0
  %3812 = vmatprep.subr.mxu0 0.0
  %3813 = vmatpush2.xpose.msra.mxu0 0.0
  %3814 = vmatprep.subr.mxu0 0.0
  %3815 = vmatpush2.xpose.msra.mxu0 0.0
  %3816 = vmatprep.subr.mxu0 0.0
  %3817 = vmatpush2.xpose.msra.mxu0 0.0
  %3818 = vmatprep.mubr.f32.mxu0 0.0
  %3819 = vmatmul.mubr.f32.gmra.mxu0 %v3749
  %v3820 = vpop.f32.mrf.mxu0
  %v3821 = vadd.f32 0.0, %v3820
  %v3822 = vpop.f32.mrf.mxu0
  %3823 = vmatprep.mubr.f32.mxu0 0.0
  %3824 = vmatmul.mubr.f32.gmra.mxu0 %v3752
  %v3825 = vpop.f32.mrf.mxu0
  %v3826 = vadd.f32 0.0, %v3825
  %v3827 = vpop.f32.mrf.mxu0
  %3828 = vdwg.mxu0
  %v3830 = vsel %vm45, %v1394, 0
  %v3833 = vsel %vm45, %v1399, 0
  %3835 = vmatprep.subr.mxu0 0.0
  %3836 = vmatpush1.xpose.msra.mxu0 0.0
  %3837 = vmatprep.subr.mxu0 0.0
  %3838 = vmatpush1.xpose.msra.mxu0 0.0
  %3839 = vmatprep.subr.mxu0 0.0
  %3840 = vmatpush1.xpose.msra.mxu0 0.0
  %3841 = vmatprep.subr.mxu0 0.0
  %3842 = vmatpush1.xpose.msra.mxu0 0.0
  %3843 = vmatprep.subr.mxu0 0.0
  %3844 = vmatpush1.xpose.msra.mxu0 0.0
  %3845 = vmatprep.subr.mxu0 0.0
  %3846 = vmatpush1.xpose.msra.mxu0 0.0
  %3847 = vmatprep.subr.mxu0 0.0
  %3848 = vmatpush1.xpose.msra.mxu0 0.0
  %3849 = vmatprep.subr.mxu0 0.0
  %3850 = vmatpush1.xpose.msra.mxu0 0.0
  %3851 = vmatprep.subr.mxu0 0.0
  %3852 = vmatpush1.xpose.msra.mxu0 0.0
  %3853 = vmatprep.subr.mxu0 0.0
  %3854 = vmatpush1.xpose.msra.mxu0 0.0
  %3855 = vmatprep.subr.mxu0 0.0
  %3856 = vmatpush1.xpose.msra.mxu0 0.0
  %3857 = vmatprep.subr.mxu0 0.0
  %3858 = vmatpush1.xpose.msra.mxu0 0.0
  %3859 = vmatprep.subr.mxu0 0.0
  %3860 = vmatpush1.xpose.msra.mxu0 0.0
  %3861 = vmatprep.subr.mxu0 0.0
  %3862 = vmatpush1.xpose.msra.mxu0 0.0
  %3863 = vmatprep.subr.mxu0 0.0
  %3864 = vmatpush1.xpose.msra.mxu0 %v50
  %3865 = vmatprep.subr.mxu0 0.0
  %3866 = vmatpush1.xpose.msra.mxu0 %v47
  %3867 = vmatprep.subr.mxu0 0.0
  %3868 = vmatpush2.xpose.msra.mxu0 0.0
  %3869 = vmatprep.subr.mxu0 0.0
  %3870 = vmatpush2.xpose.msra.mxu0 0.0
  %3871 = vmatprep.subr.mxu0 0.0
  %3872 = vmatpush2.xpose.msra.mxu0 0.0
  %3873 = vmatprep.subr.mxu0 0.0
  %3874 = vmatpush2.xpose.msra.mxu0 0.0
  %3875 = vmatprep.subr.mxu0 0.0
  %3876 = vmatpush2.xpose.msra.mxu0 0.0
  %3877 = vmatprep.subr.mxu0 0.0
  %3878 = vmatpush2.xpose.msra.mxu0 0.0
  %3879 = vmatprep.subr.mxu0 0.0
  %3880 = vmatpush2.xpose.msra.mxu0 0.0
  %3881 = vmatprep.subr.mxu0 0.0
  %3882 = vmatpush2.xpose.msra.mxu0 0.0
  %3883 = vmatprep.subr.mxu0 0.0
  %3884 = vmatpush2.xpose.msra.mxu0 0.0
  %3885 = vmatprep.subr.mxu0 0.0
  %3886 = vmatpush2.xpose.msra.mxu0 0.0
  %3887 = vmatprep.subr.mxu0 0.0
  %3888 = vmatpush2.xpose.msra.mxu0 0.0
  %3889 = vmatprep.subr.mxu0 0.0
  %3890 = vmatpush2.xpose.msra.mxu0 0.0
  %3891 = vmatprep.subr.mxu0 0.0
  %3892 = vmatpush2.xpose.msra.mxu0 0.0
  %3893 = vmatprep.subr.mxu0 0.0
  %3894 = vmatpush2.xpose.msra.mxu0 0.0
  %3895 = vmatprep.subr.mxu0 0.0
  %3896 = vmatpush2.xpose.msra.mxu0 0.0
  %3897 = vmatprep.subr.mxu0 0.0
  %3898 = vmatpush2.xpose.msra.mxu0 0.0
  %3899 = vmatprep.mubr.f32.mxu0 0.0
  %3900 = vmatmul.mubr.f32.gmra.mxu0 %v3830
  %v3901 = vpop.f32.mrf.mxu0
  %v3902 = vadd.f32 0.0, %v3901
  %v3903 = vpop.f32.mrf.mxu0
  %3904 = vmatprep.mubr.f32.mxu0 0.0
  %3905 = vmatmul.mubr.f32.gmra.mxu0 %v3833
  %v3906 = vpop.f32.mrf.mxu0
  %v3907 = vadd.f32 0.0, %v3906
  %v3908 = vpop.f32.mrf.mxu0
  %3909 = vdwg.mxu0
  %v3911 = vsel %vm45, %v1469, 0
  %v3914 = vsel %vm45, %v1474, 0
  %3916 = vmatprep.subr.mxu0 0.0
  %3917 = vmatpush1.xpose.msra.mxu0 0.0
  %3918 = vmatprep.subr.mxu0 0.0
  %3919 = vmatpush1.xpose.msra.mxu0 0.0
  %3920 = vmatprep.subr.mxu0 0.0
  %3921 = vmatpush1.xpose.msra.mxu0 0.0
  %3922 = vmatprep.subr.mxu0 0.0
  %3923 = vmatpush1.xpose.msra.mxu0 0.0
  %3924 = vmatprep.subr.mxu0 0.0
  %3925 = vmatpush1.xpose.msra.mxu0 0.0
  %3926 = vmatprep.subr.mxu0 0.0
  %3927 = vmatpush1.xpose.msra.mxu0 0.0
  %3928 = vmatprep.subr.mxu0 0.0
  %3929 = vmatpush1.xpose.msra.mxu0 0.0
  %3930 = vmatprep.subr.mxu0 0.0
  %3931 = vmatpush1.xpose.msra.mxu0 0.0
  %3932 = vmatprep.subr.mxu0 0.0
  %3933 = vmatpush1.xpose.msra.mxu0 0.0
  %3934 = vmatprep.subr.mxu0 0.0
  %3935 = vmatpush1.xpose.msra.mxu0 0.0
  %3936 = vmatprep.subr.mxu0 0.0
  %3937 = vmatpush1.xpose.msra.mxu0 0.0
  %3938 = vmatprep.subr.mxu0 0.0
  %3939 = vmatpush1.xpose.msra.mxu0 0.0
  %3940 = vmatprep.subr.mxu0 0.0
  %3941 = vmatpush1.xpose.msra.mxu0 0.0
  %3942 = vmatprep.subr.mxu0 0.0
  %3943 = vmatpush1.xpose.msra.mxu0 0.0
  %3944 = vmatprep.subr.mxu0 0.0
  %3945 = vmatpush1.xpose.msra.mxu0 %v50
  %3946 = vmatprep.subr.mxu0 0.0
  %3947 = vmatpush1.xpose.msra.mxu0 %v47
  %3948 = vmatprep.subr.mxu0 0.0
  %3949 = vmatpush2.xpose.msra.mxu0 0.0
  %3950 = vmatprep.subr.mxu0 0.0
  %3951 = vmatpush2.xpose.msra.mxu0 0.0
  %3952 = vmatprep.subr.mxu0 0.0
  %3953 = vmatpush2.xpose.msra.mxu0 0.0
  %3954 = vmatprep.subr.mxu0 0.0
  %3955 = vmatpush2.xpose.msra.mxu0 0.0
  %3956 = vmatprep.subr.mxu0 0.0
  %3957 = vmatpush2.xpose.msra.mxu0 0.0
  %3958 = vmatprep.subr.mxu0 0.0
  %3959 = vmatpush2.xpose.msra.mxu0 0.0
  %3960 = vmatprep.subr.mxu0 0.0
  %3961 = vmatpush2.xpose.msra.mxu0 0.0
  %3962 = vmatprep.subr.mxu0 0.0
  %3963 = vmatpush2.xpose.msra.mxu0 0.0
  %3964 = vmatprep.subr.mxu0 0.0
  %3965 = vmatpush2.xpose.msra.mxu0 0.0
  %3966 = vmatprep.subr.mxu0 0.0
  %3967 = vmatpush2.xpose.msra.mxu0 0.0
  %3968 = vmatprep.subr.mxu0 0.0
  %3969 = vmatpush2.xpose.msra.mxu0 0.0
  %3970 = vmatprep.subr.mxu0 0.0
  %3971 = vmatpush2.xpose.msra.mxu0 0.0
  %3972 = vmatprep.subr.mxu0 0.0
  %3973 = vmatpush2.xpose.msra.mxu0 0.0
  %3974 = vmatprep.subr.mxu0 0.0
  %3975 = vmatpush2.xpose.msra.mxu0 0.0
  %3976 = vmatprep.subr.mxu0 0.0
  %3977 = vmatpush2.xpose.msra.mxu0 0.0
  %3978 = vmatprep.subr.mxu0 0.0
  %3979 = vmatpush2.xpose.msra.mxu0 0.0
  %3980 = vmatprep.mubr.f32.mxu0 0.0
  %3981 = vmatmul.mubr.f32.gmra.mxu0 %v3911
  %v3982 = vpop.f32.mrf.mxu0
  %v3983 = vadd.f32 0.0, %v3982
  %v3984 = vpop.f32.mrf.mxu0
  %3985 = vmatprep.mubr.f32.mxu0 0.0
  %3986 = vmatmul.mubr.f32.gmra.mxu0 %v3914
  %v3987 = vpop.f32.mrf.mxu0
  %v3988 = vadd.f32 0.0, %v3987
  %v3989 = vpop.f32.mrf.mxu0
  %3990 = vdwg.mxu0
  %v3992 = vsel %vm45, %v1544, 0
  %v3995 = vsel %vm45, %v1549, 0
  %3997 = vmatprep.subr.mxu0 0.0
  %3998 = vmatpush1.xpose.msra.mxu0 0.0
  %3999 = vmatprep.subr.mxu0 0.0
  %4000 = vmatpush1.xpose.msra.mxu0 0.0
  %4001 = vmatprep.subr.mxu0 0.0
  %4002 = vmatpush1.xpose.msra.mxu0 0.0
  %4003 = vmatprep.subr.mxu0 0.0
  %4004 = vmatpush1.xpose.msra.mxu0 0.0
  %4005 = vmatprep.subr.mxu0 0.0
  %4006 = vmatpush1.xpose.msra.mxu0 0.0
  %4007 = vmatprep.subr.mxu0 0.0
  %4008 = vmatpush1.xpose.msra.mxu0 0.0
  %4009 = vmatprep.subr.mxu0 0.0
  %4010 = vmatpush1.xpose.msra.mxu0 0.0
  %4011 = vmatprep.subr.mxu0 0.0
  %4012 = vmatpush1.xpose.msra.mxu0 0.0
  %4013 = vmatprep.subr.mxu0 0.0
  %4014 = vmatpush1.xpose.msra.mxu0 0.0
  %4015 = vmatprep.subr.mxu0 0.0
  %4016 = vmatpush1.xpose.msra.mxu0 0.0
  %4017 = vmatprep.subr.mxu0 0.0
  %4018 = vmatpush1.xpose.msra.mxu0 0.0
  %4019 = vmatprep.subr.mxu0 0.0
  %4020 = vmatpush1.xpose.msra.mxu0 0.0
  %4021 = vmatprep.subr.mxu0 0.0
  %4022 = vmatpush1.xpose.msra.mxu0 0.0
  %4023 = vmatprep.subr.mxu0 0.0
  %4024 = vmatpush1.xpose.msra.mxu0 0.0
  %4025 = vmatprep.subr.mxu0 0.0
  %4026 = vmatpush1.xpose.msra.mxu0 %v50
  %4027 = vmatprep.subr.mxu0 0.0
  %4028 = vmatpush1.xpose.msra.mxu0 %v47
  %4029 = vmatprep.subr.mxu0 0.0
  %4030 = vmatpush2.xpose.msra.mxu0 0.0
  %4031 = vmatprep.subr.mxu0 0.0
  %4032 = vmatpush2.xpose.msra.mxu0 0.0
  %4033 = vmatprep.subr.mxu0 0.0
  %4034 = vmatpush2.xpose.msra.mxu0 0.0
  %4035 = vmatprep.subr.mxu0 0.0
  %4036 = vmatpush2.xpose.msra.mxu0 0.0
  %4037 = vmatprep.subr.mxu0 0.0
  %4038 = vmatpush2.xpose.msra.mxu0 0.0
  %4039 = vmatprep.subr.mxu0 0.0
  %4040 = vmatpush2.xpose.msra.mxu0 0.0
  %4041 = vmatprep.subr.mxu0 0.0
  %4042 = vmatpush2.xpose.msra.mxu0 0.0
  %4043 = vmatprep.subr.mxu0 0.0
  %4044 = vmatpush2.xpose.msra.mxu0 0.0
  %4045 = vmatprep.subr.mxu0 0.0
  %4046 = vmatpush2.xpose.msra.mxu0 0.0
  %4047 = vmatprep.subr.mxu0 0.0
  %4048 = vmatpush2.xpose.msra.mxu0 0.0
  %4049 = vmatprep.subr.mxu0 0.0
  %4050 = vmatpush2.xpose.msra.mxu0 0.0
  %4051 = vmatprep.subr.mxu0 0.0
  %4052 = vmatpush2.xpose.msra.mxu0 0.0
  %4053 = vmatprep.subr.mxu0 0.0
  %4054 = vmatpush2.xpose.msra.mxu0 0.0
  %4055 = vmatprep.subr.mxu0 0.0
  %4056 = vmatpush2.xpose.msra.mxu0 0.0
  %4057 = vmatprep.subr.mxu0 0.0
  %4058 = vmatpush2.xpose.msra.mxu0 0.0
  %4059 = vmatprep.subr.mxu0 0.0
  %4060 = vmatpush2.xpose.msra.mxu0 0.0
  %4061 = vmatprep.mubr.f32.mxu0 0.0
  %4062 = vmatmul.mubr.f32.gmra.mxu0 %v3992
  %v4063 = vpop.f32.mrf.mxu0
  %v4064 = vadd.f32 0.0, %v4063
  %v4065 = vpop.f32.mrf.mxu0
  %4066 = vmatprep.mubr.f32.mxu0 0.0
  %4067 = vmatmul.mubr.f32.gmra.mxu0 %v3995
  %v4068 = vpop.f32.mrf.mxu0
  %v4069 = vadd.f32 0.0, %v4068
  %v4070 = vpop.f32.mrf.mxu0
  %4071 = vdwg.mxu0
  %v4073 = vsel %vm45, %v1619, 0
  %v4076 = vsel %vm45, %v1624, 0
  %4078 = vmatprep.subr.mxu0 0.0
  %4079 = vmatpush1.xpose.msra.mxu0 0.0
  %4080 = vmatprep.subr.mxu0 0.0
  %4081 = vmatpush1.xpose.msra.mxu0 0.0
  %4082 = vmatprep.subr.mxu0 0.0
  %4083 = vmatpush1.xpose.msra.mxu0 0.0
  %4084 = vmatprep.subr.mxu0 0.0
  %4085 = vmatpush1.xpose.msra.mxu0 0.0
  %4086 = vmatprep.subr.mxu0 0.0
  %4087 = vmatpush1.xpose.msra.mxu0 0.0
  %4088 = vmatprep.subr.mxu0 0.0
  %4089 = vmatpush1.xpose.msra.mxu0 0.0
  %4090 = vmatprep.subr.mxu0 0.0
  %4091 = vmatpush1.xpose.msra.mxu0 0.0
  %4092 = vmatprep.subr.mxu0 0.0
  %4093 = vmatpush1.xpose.msra.mxu0 0.0
  %4094 = vmatprep.subr.mxu0 0.0
  %4095 = vmatpush1.xpose.msra.mxu0 0.0
  %4096 = vmatprep.subr.mxu0 0.0
  %4097 = vmatpush1.xpose.msra.mxu0 0.0
  %4098 = vmatprep.subr.mxu0 0.0
  %4099 = vmatpush1.xpose.msra.mxu0 0.0
  %4100 = vmatprep.subr.mxu0 0.0
  %4101 = vmatpush1.xpose.msra.mxu0 0.0
  %4102 = vmatprep.subr.mxu0 0.0
  %4103 = vmatpush1.xpose.msra.mxu0 0.0
  %4104 = vmatprep.subr.mxu0 0.0
  %4105 = vmatpush1.xpose.msra.mxu0 0.0
  %4106 = vmatprep.subr.mxu0 0.0
  %4107 = vmatpush1.xpose.msra.mxu0 %v50
  %4108 = vmatprep.subr.mxu0 0.0
  %4109 = vmatpush1.xpose.msra.mxu0 %v47
  %4110 = vmatprep.subr.mxu0 0.0
  %4111 = vmatpush2.xpose.msra.mxu0 0.0
  %4112 = vmatprep.subr.mxu0 0.0
  %4113 = vmatpush2.xpose.msra.mxu0 0.0
  %4114 = vmatprep.subr.mxu0 0.0
  %4115 = vmatpush2.xpose.msra.mxu0 0.0
  %4116 = vmatprep.subr.mxu0 0.0
  %4117 = vmatpush2.xpose.msra.mxu0 0.0
  %4118 = vmatprep.subr.mxu0 0.0
  %4119 = vmatpush2.xpose.msra.mxu0 0.0
  %4120 = vmatprep.subr.mxu0 0.0
  %4121 = vmatpush2.xpose.msra.mxu0 0.0
  %4122 = vmatprep.subr.mxu0 0.0
  %4123 = vmatpush2.xpose.msra.mxu0 0.0
  %4124 = vmatprep.subr.mxu0 0.0
  %4125 = vmatpush2.xpose.msra.mxu0 0.0
  %4126 = vmatprep.subr.mxu0 0.0
  %4127 = vmatpush2.xpose.msra.mxu0 0.0
  %4128 = vmatprep.subr.mxu0 0.0
  %4129 = vmatpush2.xpose.msra.mxu0 0.0
  %4130 = vmatprep.subr.mxu0 0.0
  %4131 = vmatpush2.xpose.msra.mxu0 0.0
  %4132 = vmatprep.subr.mxu0 0.0
  %4133 = vmatpush2.xpose.msra.mxu0 0.0
  %4134 = vmatprep.subr.mxu0 0.0
  %4135 = vmatpush2.xpose.msra.mxu0 0.0
  %4136 = vmatprep.subr.mxu0 0.0
  %4137 = vmatpush2.xpose.msra.mxu0 0.0
  %4138 = vmatprep.subr.mxu0 0.0
  %4139 = vmatpush2.xpose.msra.mxu0 0.0
  %4140 = vmatprep.subr.mxu0 0.0
  %4141 = vmatpush2.xpose.msra.mxu0 0.0
  %4142 = vmatprep.mubr.f32.mxu0 0.0
  %4143 = vmatmul.mubr.f32.gmra.mxu0 %v4073
  %v4144 = vpop.f32.mrf.mxu0
  %v4145 = vadd.f32 0.0, %v4144
  %v4146 = vpop.f32.mrf.mxu0
  %4147 = vmatprep.mubr.f32.mxu0 0.0
  %4148 = vmatmul.mubr.f32.gmra.mxu0 %v4076
  %v4149 = vpop.f32.mrf.mxu0
  %v4150 = vadd.f32 0.0, %v4149
  %v4151 = vpop.f32.mrf.mxu0
  %4152 = vdwg.mxu0
  %v4154 = vsel %vm45, %v1694, 0
  %v4157 = vsel %vm45, %v1699, 0
  %4159 = vmatprep.subr.mxu0 0.0
  %4160 = vmatpush1.xpose.msra.mxu0 0.0
  %4161 = vmatprep.subr.mxu0 0.0
  %4162 = vmatpush1.xpose.msra.mxu0 0.0
  %4163 = vmatprep.subr.mxu0 0.0
  %4164 = vmatpush1.xpose.msra.mxu0 0.0
  %4165 = vmatprep.subr.mxu0 0.0
  %4166 = vmatpush1.xpose.msra.mxu0 0.0
  %4167 = vmatprep.subr.mxu0 0.0
  %4168 = vmatpush1.xpose.msra.mxu0 0.0
  %4169 = vmatprep.subr.mxu0 0.0
  %4170 = vmatpush1.xpose.msra.mxu0 0.0
  %4171 = vmatprep.subr.mxu0 0.0
  %4172 = vmatpush1.xpose.msra.mxu0 0.0
  %4173 = vmatprep.subr.mxu0 0.0
  %4174 = vmatpush1.xpose.msra.mxu0 0.0
  %4175 = vmatprep.subr.mxu0 0.0
  %4176 = vmatpush1.xpose.msra.mxu0 0.0
  %4177 = vmatprep.subr.mxu0 0.0
  %4178 = vmatpush1.xpose.msra.mxu0 0.0
  %4179 = vmatprep.subr.mxu0 0.0
  %4180 = vmatpush1.xpose.msra.mxu0 0.0
  %4181 = vmatprep.subr.mxu0 0.0
  %4182 = vmatpush1.xpose.msra.mxu0 0.0
  %4183 = vmatprep.subr.mxu0 0.0
  %4184 = vmatpush1.xpose.msra.mxu0 0.0
  %4185 = vmatprep.subr.mxu0 0.0
  %4186 = vmatpush1.xpose.msra.mxu0 0.0
  %4187 = vmatprep.subr.mxu0 0.0
  %4188 = vmatpush1.xpose.msra.mxu0 %v50
  %4189 = vmatprep.subr.mxu0 0.0
  %4190 = vmatpush1.xpose.msra.mxu0 %v47
  %4191 = vmatprep.subr.mxu0 0.0
  %4192 = vmatpush2.xpose.msra.mxu0 0.0
  %4193 = vmatprep.subr.mxu0 0.0
  %4194 = vmatpush2.xpose.msra.mxu0 0.0
  %4195 = vmatprep.subr.mxu0 0.0
  %4196 = vmatpush2.xpose.msra.mxu0 0.0
  %4197 = vmatprep.subr.mxu0 0.0
  %4198 = vmatpush2.xpose.msra.mxu0 0.0
  %4199 = vmatprep.subr.mxu0 0.0
  %4200 = vmatpush2.xpose.msra.mxu0 0.0
  %4201 = vmatprep.subr.mxu0 0.0
  %4202 = vmatpush2.xpose.msra.mxu0 0.0
  %4203 = vmatprep.subr.mxu0 0.0
  %4204 = vmatpush2.xpose.msra.mxu0 0.0
  %4205 = vmatprep.subr.mxu0 0.0
  %4206 = vmatpush2.xpose.msra.mxu0 0.0
  %4207 = vmatprep.subr.mxu0 0.0
  %4208 = vmatpush2.xpose.msra.mxu0 0.0
  %4209 = vmatprep.subr.mxu0 0.0
  %4210 = vmatpush2.xpose.msra.mxu0 0.0
  %4211 = vmatprep.subr.mxu0 0.0
  %4212 = vmatpush2.xpose.msra.mxu0 0.0
  %4213 = vmatprep.subr.mxu0 0.0
  %4214 = vmatpush2.xpose.msra.mxu0 0.0
  %4215 = vmatprep.subr.mxu0 0.0
  %4216 = vmatpush2.xpose.msra.mxu0 0.0
  %4217 = vmatprep.subr.mxu0 0.0
  %4218 = vmatpush2.xpose.msra.mxu0 0.0
  %4219 = vmatprep.subr.mxu0 0.0
  %4220 = vmatpush2.xpose.msra.mxu0 0.0
  %4221 = vmatprep.subr.mxu0 0.0
  %4222 = vmatpush2.xpose.msra.mxu0 0.0
  %4223 = vmatprep.mubr.f32.mxu0 0.0
  %4224 = vmatmul.mubr.f32.gmra.mxu0 %v4154
  %v4225 = vpop.f32.mrf.mxu0
  %v4226 = vadd.f32 0.0, %v4225
  %v4227 = vpop.f32.mrf.mxu0
  %4228 = vmatprep.mubr.f32.mxu0 0.0
  %4229 = vmatmul.mubr.f32.gmra.mxu0 %v4157
  %v4230 = vpop.f32.mrf.mxu0
  %v4231 = vadd.f32 0.0, %v4230
  %v4232 = vpop.f32.mrf.mxu0
  %4233 = vdwg.mxu0
  %v4235 = vsel %vm45, %v1769, 0
  %v4238 = vsel %vm45, %v1774, 0
  %4240 = vmatprep.subr.mxu0 0.0
  %4241 = vmatpush1.xpose.msra.mxu0 0.0
  %4242 = vmatprep.subr.mxu0 0.0
  %4243 = vmatpush1.xpose.msra.mxu0 0.0
  %4244 = vmatprep.subr.mxu0 0.0
  %4245 = vmatpush1.xpose.msra.mxu0 0.0
  %4246 = vmatprep.subr.mxu0 0.0
  %4247 = vmatpush1.xpose.msra.mxu0 0.0
  %4248 = vmatprep.subr.mxu0 0.0
  %4249 = vmatpush1.xpose.msra.mxu0 0.0
  %4250 = vmatprep.subr.mxu0 0.0
  %4251 = vmatpush1.xpose.msra.mxu0 0.0
  %4252 = vmatprep.subr.mxu0 0.0
  %4253 = vmatpush1.xpose.msra.mxu0 0.0
  %4254 = vmatprep.subr.mxu0 0.0
  %4255 = vmatpush1.xpose.msra.mxu0 0.0
  %4256 = vmatprep.subr.mxu0 0.0
  %4257 = vmatpush1.xpose.msra.mxu0 0.0
  %4258 = vmatprep.subr.mxu0 0.0
  %4259 = vmatpush1.xpose.msra.mxu0 0.0
  %4260 = vmatprep.subr.mxu0 0.0
  %4261 = vmatpush1.xpose.msra.mxu0 0.0
  %4262 = vmatprep.subr.mxu0 0.0
  %4263 = vmatpush1.xpose.msra.mxu0 0.0
  %4264 = vmatprep.subr.mxu0 0.0
  %4265 = vmatpush1.xpose.msra.mxu0 0.0
  %4266 = vmatprep.subr.mxu0 0.0
  %4267 = vmatpush1.xpose.msra.mxu0 0.0
  %4268 = vmatprep.subr.mxu0 0.0
  %4269 = vmatpush1.xpose.msra.mxu0 %v50
  %4270 = vmatprep.subr.mxu0 0.0
  %4271 = vmatpush1.xpose.msra.mxu0 %v47
  %4272 = vmatprep.subr.mxu0 0.0
  %4273 = vmatpush2.xpose.msra.mxu0 0.0
  %4274 = vmatprep.subr.mxu0 0.0
  %4275 = vmatpush2.xpose.msra.mxu0 0.0
  %4276 = vmatprep.subr.mxu0 0.0
  %4277 = vmatpush2.xpose.msra.mxu0 0.0
  %4278 = vmatprep.subr.mxu0 0.0
  %4279 = vmatpush2.xpose.msra.mxu0 0.0
  %4280 = vmatprep.subr.mxu0 0.0
  %4281 = vmatpush2.xpose.msra.mxu0 0.0
  %4282 = vmatprep.subr.mxu0 0.0
  %4283 = vmatpush2.xpose.msra.mxu0 0.0
  %4284 = vmatprep.subr.mxu0 0.0
  %4285 = vmatpush2.xpose.msra.mxu0 0.0
  %4286 = vmatprep.subr.mxu0 0.0
  %4287 = vmatpush2.xpose.msra.mxu0 0.0
  %4288 = vmatprep.subr.mxu0 0.0
  %4289 = vmatpush2.xpose.msra.mxu0 0.0
  %4290 = vmatprep.subr.mxu0 0.0
  %4291 = vmatpush2.xpose.msra.mxu0 0.0
  %4292 = vmatprep.subr.mxu0 0.0
  %4293 = vmatpush2.xpose.msra.mxu0 0.0
  %4294 = vmatprep.subr.mxu0 0.0
  %4295 = vmatpush2.xpose.msra.mxu0 0.0
  %4296 = vmatprep.subr.mxu0 0.0
  %4297 = vmatpush2.xpose.msra.mxu0 0.0
  %4298 = vmatprep.subr.mxu0 0.0
  %4299 = vmatpush2.xpose.msra.mxu0 0.0
  %4300 = vmatprep.subr.mxu0 0.0
  %4301 = vmatpush2.xpose.msra.mxu0 0.0
  %4302 = vmatprep.subr.mxu0 0.0
  %4303 = vmatpush2.xpose.msra.mxu0 0.0
  %4304 = vmatprep.mubr.f32.mxu0 0.0
  %4305 = vmatmul.mubr.f32.gmra.mxu0 %v4235
  %v4306 = vpop.f32.mrf.mxu0
  %v4307 = vadd.f32 0.0, %v4306
  %v4308 = vpop.f32.mrf.mxu0
  %4309 = vmatprep.mubr.f32.mxu0 0.0
  %4310 = vmatmul.mubr.f32.gmra.mxu0 %v4238
  %v4311 = vpop.f32.mrf.mxu0
  %v4312 = vadd.f32 0.0, %v4311
  %v4313 = vpop.f32.mrf.mxu0
  %4314 = vdwg.mxu0
  %v4316 = vsel %vm45, %v1844, 0
  %v4319 = vsel %vm45, %v1849, 0
  %4321 = vmatprep.subr.mxu0 0.0
  %4322 = vmatpush1.xpose.msra.mxu0 0.0
  %4323 = vmatprep.subr.mxu0 0.0
  %4324 = vmatpush1.xpose.msra.mxu0 0.0
  %4325 = vmatprep.subr.mxu0 0.0
  %4326 = vmatpush1.xpose.msra.mxu0 0.0
  %4327 = vmatprep.subr.mxu0 0.0
  %4328 = vmatpush1.xpose.msra.mxu0 0.0
  %4329 = vmatprep.subr.mxu0 0.0
  %4330 = vmatpush1.xpose.msra.mxu0 0.0
  %4331 = vmatprep.subr.mxu0 0.0
  %4332 = vmatpush1.xpose.msra.mxu0 0.0
  %4333 = vmatprep.subr.mxu0 0.0
  %4334 = vmatpush1.xpose.msra.mxu0 0.0
  %4335 = vmatprep.subr.mxu0 0.0
  %4336 = vmatpush1.xpose.msra.mxu0 0.0
  %4337 = vmatprep.subr.mxu0 0.0
  %4338 = vmatpush1.xpose.msra.mxu0 0.0
  %4339 = vmatprep.subr.mxu0 0.0
  %4340 = vmatpush1.xpose.msra.mxu0 0.0
  %4341 = vmatprep.subr.mxu0 0.0
  %4342 = vmatpush1.xpose.msra.mxu0 0.0
  %4343 = vmatprep.subr.mxu0 0.0
  %4344 = vmatpush1.xpose.msra.mxu0 0.0
  %4345 = vmatprep.subr.mxu0 0.0
  %4346 = vmatpush1.xpose.msra.mxu0 0.0
  %4347 = vmatprep.subr.mxu0 0.0
  %4348 = vmatpush1.xpose.msra.mxu0 0.0
  %4349 = vmatprep.subr.mxu0 0.0
  %4350 = vmatpush1.xpose.msra.mxu0 %v50
  %4351 = vmatprep.subr.mxu0 0.0
  %4352 = vmatpush1.xpose.msra.mxu0 %v47
  %4353 = vmatprep.subr.mxu0 0.0
  %4354 = vmatpush2.xpose.msra.mxu0 0.0
  %4355 = vmatprep.subr.mxu0 0.0
  %4356 = vmatpush2.xpose.msra.mxu0 0.0
  %4357 = vmatprep.subr.mxu0 0.0
  %4358 = vmatpush2.xpose.msra.mxu0 0.0
  %4359 = vmatprep.subr.mxu0 0.0
  %4360 = vmatpush2.xpose.msra.mxu0 0.0
  %4361 = vmatprep.subr.mxu0 0.0
  %4362 = vmatpush2.xpose.msra.mxu0 0.0
  %4363 = vmatprep.subr.mxu0 0.0
  %4364 = vmatpush2.xpose.msra.mxu0 0.0
  %4365 = vmatprep.subr.mxu0 0.0
  %4366 = vmatpush2.xpose.msra.mxu0 0.0
  %4367 = vmatprep.subr.mxu0 0.0
  %4368 = vmatpush2.xpose.msra.mxu0 0.0
  %4369 = vmatprep.subr.mxu0 0.0
  %4370 = vmatpush2.xpose.msra.mxu0 0.0
  %4371 = vmatprep.subr.mxu0 0.0
  %4372 = vmatpush2.xpose.msra.mxu0 0.0
  %4373 = vmatprep.subr.mxu0 0.0
  %4374 = vmatpush2.xpose.msra.mxu0 0.0
  %4375 = vmatprep.subr.mxu0 0.0
  %4376 = vmatpush2.xpose.msra.mxu0 0.0
  %4377 = vmatprep.subr.mxu0 0.0
  %4378 = vmatpush2.xpose.msra.mxu0 0.0
  %4379 = vmatprep.subr.mxu0 0.0
  %4380 = vmatpush2.xpose.msra.mxu0 0.0
  %4381 = vmatprep.subr.mxu0 0.0
  %4382 = vmatpush2.xpose.msra.mxu0 0.0
  %4383 = vmatprep.subr.mxu0 0.0
  %4384 = vmatpush2.xpose.msra.mxu0 0.0
  %4385 = vmatprep.mubr.f32.mxu0 0.0
  %4386 = vmatmul.mubr.f32.gmra.mxu0 %v4316
  %v4387 = vpop.f32.mrf.mxu0
  %v4388 = vadd.f32 0.0, %v4387
  %v4389 = vpop.f32.mrf.mxu0
  %4390 = vmatprep.mubr.f32.mxu0 0.0
  %4391 = vmatmul.mubr.f32.gmra.mxu0 %v4319
  %v4392 = vpop.f32.mrf.mxu0
  %v4393 = vadd.f32 0.0, %v4392
  %v4394 = vpop.f32.mrf.mxu0
  %4395 = vdwg.mxu0
  %v4397 = vsel %vm45, %v1919, 0
  %v4400 = vsel %vm45, %v1924, 0
  %4402 = vmatprep.subr.mxu0 0.0
  %4403 = vmatpush1.xpose.msra.mxu0 0.0
  %4404 = vmatprep.subr.mxu0 0.0
  %4405 = vmatpush1.xpose.msra.mxu0 0.0
  %4406 = vmatprep.subr.mxu0 0.0
  %4407 = vmatpush1.xpose.msra.mxu0 0.0
  %4408 = vmatprep.subr.mxu0 0.0
  %4409 = vmatpush1.xpose.msra.mxu0 0.0
  %4410 = vmatprep.subr.mxu0 0.0
  %4411 = vmatpush1.xpose.msra.mxu0 0.0
  %4412 = vmatprep.subr.mxu0 0.0
  %4413 = vmatpush1.xpose.msra.mxu0 0.0
  %4414 = vmatprep.subr.mxu0 0.0
  %4415 = vmatpush1.xpose.msra.mxu0 0.0
  %4416 = vmatprep.subr.mxu0 0.0
  %4417 = vmatpush1.xpose.msra.mxu0 0.0
  %4418 = vmatprep.subr.mxu0 0.0
  %4419 = vmatpush1.xpose.msra.mxu0 0.0
  %4420 = vmatprep.subr.mxu0 0.0
  %4421 = vmatpush1.xpose.msra.mxu0 0.0
  %4422 = vmatprep.subr.mxu0 0.0
  %4423 = vmatpush1.xpose.msra.mxu0 0.0
  %4424 = vmatprep.subr.mxu0 0.0
  %4425 = vmatpush1.xpose.msra.mxu0 0.0
  %4426 = vmatprep.subr.mxu0 0.0
  %4427 = vmatpush1.xpose.msra.mxu0 0.0
  %4428 = vmatprep.subr.mxu0 0.0
  %4429 = vmatpush1.xpose.msra.mxu0 0.0
  %4430 = vmatprep.subr.mxu0 0.0
  %4431 = vmatpush1.xpose.msra.mxu0 %v50
  %4432 = vmatprep.subr.mxu0 0.0
  %4433 = vmatpush1.xpose.msra.mxu0 %v47
  %4434 = vmatprep.subr.mxu0 0.0
  %4435 = vmatpush2.xpose.msra.mxu0 0.0
  %4436 = vmatprep.subr.mxu0 0.0
  %4437 = vmatpush2.xpose.msra.mxu0 0.0
  %4438 = vmatprep.subr.mxu0 0.0
  %4439 = vmatpush2.xpose.msra.mxu0 0.0
  %4440 = vmatprep.subr.mxu0 0.0
  %4441 = vmatpush2.xpose.msra.mxu0 0.0
  %4442 = vmatprep.subr.mxu0 0.0
  %4443 = vmatpush2.xpose.msra.mxu0 0.0
  %4444 = vmatprep.subr.mxu0 0.0
  %4445 = vmatpush2.xpose.msra.mxu0 0.0
  %4446 = vmatprep.subr.mxu0 0.0
  %4447 = vmatpush2.xpose.msra.mxu0 0.0
  %4448 = vmatprep.subr.mxu0 0.0
  %4449 = vmatpush2.xpose.msra.mxu0 0.0
  %4450 = vmatprep.subr.mxu0 0.0
  %4451 = vmatpush2.xpose.msra.mxu0 0.0
  %4452 = vmatprep.subr.mxu0 0.0
  %4453 = vmatpush2.xpose.msra.mxu0 0.0
  %4454 = vmatprep.subr.mxu0 0.0
  %4455 = vmatpush2.xpose.msra.mxu0 0.0
  %4456 = vmatprep.subr.mxu0 0.0
  %4457 = vmatpush2.xpose.msra.mxu0 0.0
  %4458 = vmatprep.subr.mxu0 0.0
  %4459 = vmatpush2.xpose.msra.mxu0 0.0
  %4460 = vmatprep.subr.mxu0 0.0
  %4461 = vmatpush2.xpose.msra.mxu0 0.0
  %4462 = vmatprep.subr.mxu0 0.0
  %4463 = vmatpush2.xpose.msra.mxu0 0.0
  %4464 = vmatprep.subr.mxu0 0.0
  %4465 = vmatpush2.xpose.msra.mxu0 0.0
  %4466 = vmatprep.mubr.f32.mxu0 0.0
  %4467 = vmatmul.mubr.f32.gmra.mxu0 %v4397
  %v4468 = vpop.f32.mrf.mxu0
  %v4469 = vadd.f32 0.0, %v4468
  %v4470 = vpop.f32.mrf.mxu0
  %4471 = vmatprep.mubr.f32.mxu0 0.0
  %4472 = vmatmul.mubr.f32.gmra.mxu0 %v4400
  %v4473 = vpop.f32.mrf.mxu0
  %v4474 = vadd.f32 0.0, %v4473
  %v4475 = vpop.f32.mrf.mxu0
  %4476 = vdwg.mxu0
  %v4478 = vsel %vm45, %v1994, 0
  %v4481 = vsel %vm45, %v1999, 0
  %4483 = vmatprep.subr.mxu0 0.0
  %4484 = vmatpush1.xpose.msra.mxu0 0.0
  %4485 = vmatprep.subr.mxu0 0.0
  %4486 = vmatpush1.xpose.msra.mxu0 0.0
  %4487 = vmatprep.subr.mxu0 0.0
  %4488 = vmatpush1.xpose.msra.mxu0 0.0
  %4489 = vmatprep.subr.mxu0 0.0
  %4490 = vmatpush1.xpose.msra.mxu0 0.0
  %4491 = vmatprep.subr.mxu0 0.0
  %4492 = vmatpush1.xpose.msra.mxu0 0.0
  %4493 = vmatprep.subr.mxu0 0.0
  %4494 = vmatpush1.xpose.msra.mxu0 0.0
  %4495 = vmatprep.subr.mxu0 0.0
  %4496 = vmatpush1.xpose.msra.mxu0 0.0
  %4497 = vmatprep.subr.mxu0 0.0
  %4498 = vmatpush1.xpose.msra.mxu0 0.0
  %4499 = vmatprep.subr.mxu0 0.0
  %4500 = vmatpush1.xpose.msra.mxu0 0.0
  %4501 = vmatprep.subr.mxu0 0.0
  %4502 = vmatpush1.xpose.msra.mxu0 0.0
  %4503 = vmatprep.subr.mxu0 0.0
  %4504 = vmatpush1.xpose.msra.mxu0 0.0
  %4505 = vmatprep.subr.mxu0 0.0
  %4506 = vmatpush1.xpose.msra.mxu0 0.0
  %4507 = vmatprep.subr.mxu0 0.0
  %4508 = vmatpush1.xpose.msra.mxu0 0.0
  %4509 = vmatprep.subr.mxu0 0.0
  %4510 = vmatpush1.xpose.msra.mxu0 0.0
  %4511 = vmatprep.subr.mxu0 0.0
  %4512 = vmatpush1.xpose.msra.mxu0 %v50
  %4513 = vmatprep.subr.mxu0 0.0
  %4514 = vmatpush1.xpose.msra.mxu0 %v47
  %4515 = vmatprep.subr.mxu0 0.0
  %4516 = vmatpush2.xpose.msra.mxu0 0.0
  %4517 = vmatprep.subr.mxu0 0.0
  %4518 = vmatpush2.xpose.msra.mxu0 0.0
  %4519 = vmatprep.subr.mxu0 0.0
  %4520 = vmatpush2.xpose.msra.mxu0 0.0
  %4521 = vmatprep.subr.mxu0 0.0
  %4522 = vmatpush2.xpose.msra.mxu0 0.0
  %4523 = vmatprep.subr.mxu0 0.0
  %4524 = vmatpush2.xpose.msra.mxu0 0.0
  %4525 = vmatprep.subr.mxu0 0.0
  %4526 = vmatpush2.xpose.msra.mxu0 0.0
  %4527 = vmatprep.subr.mxu0 0.0
  %4528 = vmatpush2.xpose.msra.mxu0 0.0
  %4529 = vmatprep.subr.mxu0 0.0
  %4530 = vmatpush2.xpose.msra.mxu0 0.0
  %4531 = vmatprep.subr.mxu0 0.0
  %4532 = vmatpush2.xpose.msra.mxu0 0.0
  %4533 = vmatprep.subr.mxu0 0.0
  %4534 = vmatpush2.xpose.msra.mxu0 0.0
  %4535 = vmatprep.subr.mxu0 0.0
  %4536 = vmatpush2.xpose.msra.mxu0 0.0
  %4537 = vmatprep.subr.mxu0 0.0
  %4538 = vmatpush2.xpose.msra.mxu0 0.0
  %4539 = vmatprep.subr.mxu0 0.0
  %4540 = vmatpush2.xpose.msra.mxu0 0.0
  %4541 = vmatprep.subr.mxu0 0.0
  %4542 = vmatpush2.xpose.msra.mxu0 0.0
  %4543 = vmatprep.subr.mxu0 0.0
  %4544 = vmatpush2.xpose.msra.mxu0 0.0
  %4545 = vmatprep.subr.mxu0 0.0
  %4546 = vmatpush2.xpose.msra.mxu0 0.0
  %4547 = vmatprep.mubr.f32.mxu0 0.0
  %4548 = vmatmul.mubr.f32.gmra.mxu0 %v4478
  %v4549 = vpop.f32.mrf.mxu0
  %v4550 = vadd.f32 0.0, %v4549
  %v4551 = vpop.f32.mrf.mxu0
  %4552 = vmatprep.mubr.f32.mxu0 0.0
  %4553 = vmatmul.mubr.f32.gmra.mxu0 %v4481
  %v4554 = vpop.f32.mrf.mxu0
  %v4555 = vadd.f32 0.0, %v4554
  %v4556 = vpop.f32.mrf.mxu0
  %4557 = vdwg.mxu0
  %v4559 = vsel %vm45, %v2069, 0
  %v4562 = vsel %vm45, %v2074, 0
  %4564 = vmatprep.subr.mxu0 0.0
  %4565 = vmatpush1.xpose.msra.mxu0 0.0
  %4566 = vmatprep.subr.mxu0 0.0
  %4567 = vmatpush1.xpose.msra.mxu0 0.0
  %4568 = vmatprep.subr.mxu0 0.0
  %4569 = vmatpush1.xpose.msra.mxu0 0.0
  %4570 = vmatprep.subr.mxu0 0.0
  %4571 = vmatpush1.xpose.msra.mxu0 0.0
  %4572 = vmatprep.subr.mxu0 0.0
  %4573 = vmatpush1.xpose.msra.mxu0 0.0
  %4574 = vmatprep.subr.mxu0 0.0
  %4575 = vmatpush1.xpose.msra.mxu0 0.0
  %4576 = vmatprep.subr.mxu0 0.0
  %4577 = vmatpush1.xpose.msra.mxu0 0.0
  %4578 = vmatprep.subr.mxu0 0.0
  %4579 = vmatpush1.xpose.msra.mxu0 0.0
  %4580 = vmatprep.subr.mxu0 0.0
  %4581 = vmatpush1.xpose.msra.mxu0 0.0
  %4582 = vmatprep.subr.mxu0 0.0
  %4583 = vmatpush1.xpose.msra.mxu0 0.0
  %4584 = vmatprep.subr.mxu0 0.0
  %4585 = vmatpush1.xpose.msra.mxu0 0.0
  %4586 = vmatprep.subr.mxu0 0.0
  %4587 = vmatpush1.xpose.msra.mxu0 0.0
  %4588 = vmatprep.subr.mxu0 0.0
  %4589 = vmatpush1.xpose.msra.mxu0 0.0
  %4590 = vmatprep.subr.mxu0 0.0
  %4591 = vmatpush1.xpose.msra.mxu0 0.0
  %4592 = vmatprep.subr.mxu0 0.0
  %4593 = vmatpush1.xpose.msra.mxu0 %v50
  %4594 = vmatprep.subr.mxu0 0.0
  %4595 = vmatpush1.xpose.msra.mxu0 %v47
  %4596 = vmatprep.subr.mxu0 0.0
  %4597 = vmatpush2.xpose.msra.mxu0 0.0
  %4598 = vmatprep.subr.mxu0 0.0
  %4599 = vmatpush2.xpose.msra.mxu0 0.0
  %4600 = vmatprep.subr.mxu0 0.0
  %4601 = vmatpush2.xpose.msra.mxu0 0.0
  %4602 = vmatprep.subr.mxu0 0.0
  %4603 = vmatpush2.xpose.msra.mxu0 0.0
  %4604 = vmatprep.subr.mxu0 0.0
  %4605 = vmatpush2.xpose.msra.mxu0 0.0
  %4606 = vmatprep.subr.mxu0 0.0
  %4607 = vmatpush2.xpose.msra.mxu0 0.0
  %4608 = vmatprep.subr.mxu0 0.0
  %4609 = vmatpush2.xpose.msra.mxu0 0.0
  %4610 = vmatprep.subr.mxu0 0.0
  %4611 = vmatpush2.xpose.msra.mxu0 0.0
  %4612 = vmatprep.subr.mxu0 0.0
  %4613 = vmatpush2.xpose.msra.mxu0 0.0
  %4614 = vmatprep.subr.mxu0 0.0
  %4615 = vmatpush2.xpose.msra.mxu0 0.0
  %4616 = vmatprep.subr.mxu0 0.0
  %4617 = vmatpush2.xpose.msra.mxu0 0.0
  %4618 = vmatprep.subr.mxu0 0.0
  %4619 = vmatpush2.xpose.msra.mxu0 0.0
  %4620 = vmatprep.subr.mxu0 0.0
  %4621 = vmatpush2.xpose.msra.mxu0 0.0
  %4622 = vmatprep.subr.mxu0 0.0
  %4623 = vmatpush2.xpose.msra.mxu0 0.0
  %4624 = vmatprep.subr.mxu0 0.0
  %4625 = vmatpush2.xpose.msra.mxu0 0.0
  %4626 = vmatprep.subr.mxu0 0.0
  %4627 = vmatpush2.xpose.msra.mxu0 0.0
  %4628 = vmatprep.mubr.f32.mxu0 0.0
  %4629 = vmatmul.mubr.f32.gmra.mxu0 %v4559
  %v4630 = vpop.f32.mrf.mxu0
  %v4631 = vadd.f32 0.0, %v4630
  %v4632 = vpop.f32.mrf.mxu0
  %4633 = vmatprep.mubr.f32.mxu0 0.0
  %4634 = vmatmul.mubr.f32.gmra.mxu0 %v4562
  %v4635 = vpop.f32.mrf.mxu0
  %v4636 = vadd.f32 0.0, %v4635
  %v4637 = vpop.f32.mrf.mxu0
  %4638 = vdwg.mxu0
  %v4640 = vsel %vm45, %v2144, 0
  %v4643 = vsel %vm45, %v2149, 0
  %4645 = vmatprep.subr.mxu0 0.0
  %4646 = vmatpush1.xpose.msra.mxu0 0.0
  %4647 = vmatprep.subr.mxu0 0.0
  %4648 = vmatpush1.xpose.msra.mxu0 0.0
  %4649 = vmatprep.subr.mxu0 0.0
  %4650 = vmatpush1.xpose.msra.mxu0 0.0
  %4651 = vmatprep.subr.mxu0 0.0
  %4652 = vmatpush1.xpose.msra.mxu0 0.0
  %4653 = vmatprep.subr.mxu0 0.0
  %4654 = vmatpush1.xpose.msra.mxu0 0.0
  %4655 = vmatprep.subr.mxu0 0.0
  %4656 = vmatpush1.xpose.msra.mxu0 0.0
  %4657 = vmatprep.subr.mxu0 0.0
  %4658 = vmatpush1.xpose.msra.mxu0 0.0
  %4659 = vmatprep.subr.mxu0 0.0
  %4660 = vmatpush1.xpose.msra.mxu0 0.0
  %4661 = vmatprep.subr.mxu0 0.0
  %4662 = vmatpush1.xpose.msra.mxu0 0.0
  %4663 = vmatprep.subr.mxu0 0.0
  %4664 = vmatpush1.xpose.msra.mxu0 0.0
  %4665 = vmatprep.subr.mxu0 0.0
  %4666 = vmatpush1.xpose.msra.mxu0 0.0
  %4667 = vmatprep.subr.mxu0 0.0
  %4668 = vmatpush1.xpose.msra.mxu0 0.0
  %4669 = vmatprep.subr.mxu0 0.0
  %4670 = vmatpush1.xpose.msra.mxu0 0.0
  %4671 = vmatprep.subr.mxu0 0.0
  %4672 = vmatpush1.xpose.msra.mxu0 0.0
  %4673 = vmatprep.subr.mxu0 0.0
  %4674 = vmatpush1.xpose.msra.mxu0 %v50
  %4675 = vmatprep.subr.mxu0 0.0
  %4676 = vmatpush1.xpose.msra.mxu0 %v47
  %4677 = vmatprep.subr.mxu0 0.0
  %4678 = vmatpush2.xpose.msra.mxu0 0.0
  %4679 = vmatprep.subr.mxu0 0.0
  %4680 = vmatpush2.xpose.msra.mxu0 0.0
  %4681 = vmatprep.subr.mxu0 0.0
  %4682 = vmatpush2.xpose.msra.mxu0 0.0
  %4683 = vmatprep.subr.mxu0 0.0
  %4684 = vmatpush2.xpose.msra.mxu0 0.0
  %4685 = vmatprep.subr.mxu0 0.0
  %4686 = vmatpush2.xpose.msra.mxu0 0.0
  %4687 = vmatprep.subr.mxu0 0.0
  %4688 = vmatpush2.xpose.msra.mxu0 0.0
  %4689 = vmatprep.subr.mxu0 0.0
  %4690 = vmatpush2.xpose.msra.mxu0 0.0
  %4691 = vmatprep.subr.mxu0 0.0
  %4692 = vmatpush2.xpose.msra.mxu0 0.0
  %4693 = vmatprep.subr.mxu0 0.0
  %4694 = vmatpush2.xpose.msra.mxu0 0.0
  %4695 = vmatprep.subr.mxu0 0.0
  %4696 = vmatpush2.xpose.msra.mxu0 0.0
  %4697 = vmatprep.subr.mxu0 0.0
  %4698 = vmatpush2.xpose.msra.mxu0 0.0
  %4699 = vmatprep.subr.mxu0 0.0
  %4700 = vmatpush2.xpose.msra.mxu0 0.0
  %4701 = vmatprep.subr.mxu0 0.0
  %4702 = vmatpush2.xpose.msra.mxu0 0.0
  %4703 = vmatprep.subr.mxu0 0.0
  %4704 = vmatpush2.xpose.msra.mxu0 0.0
  %4705 = vmatprep.subr.mxu0 0.0
  %4706 = vmatpush2.xpose.msra.mxu0 0.0
  %4707 = vmatprep.subr.mxu0 0.0
  %4708 = vmatpush2.xpose.msra.mxu0 0.0
  %4709 = vmatprep.mubr.f32.mxu0 0.0
  %4710 = vmatmul.mubr.f32.gmra.mxu0 %v4640
  %v4711 = vpop.f32.mrf.mxu0
  %v4712 = vadd.f32 0.0, %v4711
  %v4713 = vpop.f32.mrf.mxu0
  %4714 = vmatprep.mubr.f32.mxu0 0.0
  %4715 = vmatmul.mubr.f32.gmra.mxu0 %v4643
  %v4716 = vpop.f32.mrf.mxu0
  %v4717 = vadd.f32 0.0, %v4716
  %v4718 = vpop.f32.mrf.mxu0
  %4719 = vdwg.mxu0
  %v4721 = vsel %vm45, %v2219, 0
  %v4724 = vsel %vm45, %v2224, 0
  %4726 = vmatprep.subr.mxu0 0.0
  %4727 = vmatpush1.xpose.msra.mxu0 0.0
  %4728 = vmatprep.subr.mxu0 0.0
  %4729 = vmatpush1.xpose.msra.mxu0 0.0
  %4730 = vmatprep.subr.mxu0 0.0
  %4731 = vmatpush1.xpose.msra.mxu0 0.0
  %4732 = vmatprep.subr.mxu0 0.0
  %4733 = vmatpush1.xpose.msra.mxu0 0.0
  %4734 = vmatprep.subr.mxu0 0.0
  %4735 = vmatpush1.xpose.msra.mxu0 0.0
  %4736 = vmatprep.subr.mxu0 0.0
  %4737 = vmatpush1.xpose.msra.mxu0 0.0
  %4738 = vmatprep.subr.mxu0 0.0
  %4739 = vmatpush1.xpose.msra.mxu0 0.0
  %4740 = vmatprep.subr.mxu0 0.0
  %4741 = vmatpush1.xpose.msra.mxu0 0.0
  %4742 = vmatprep.subr.mxu0 0.0
  %4743 = vmatpush1.xpose.msra.mxu0 0.0
  %4744 = vmatprep.subr.mxu0 0.0
  %4745 = vmatpush1.xpose.msra.mxu0 0.0
  %4746 = vmatprep.subr.mxu0 0.0
  %4747 = vmatpush1.xpose.msra.mxu0 0.0
  %4748 = vmatprep.subr.mxu0 0.0
  %4749 = vmatpush1.xpose.msra.mxu0 0.0
  %4750 = vmatprep.subr.mxu0 0.0
  %4751 = vmatpush1.xpose.msra.mxu0 0.0
  %4752 = vmatprep.subr.mxu0 0.0
  %4753 = vmatpush1.xpose.msra.mxu0 0.0
  %4754 = vmatprep.subr.mxu0 0.0
  %4755 = vmatpush1.xpose.msra.mxu0 %v50
  %4756 = vmatprep.subr.mxu0 0.0
  %4757 = vmatpush1.xpose.msra.mxu0 %v47
  %4758 = vmatprep.subr.mxu0 0.0
  %4759 = vmatpush2.xpose.msra.mxu0 0.0
  %4760 = vmatprep.subr.mxu0 0.0
  %4761 = vmatpush2.xpose.msra.mxu0 0.0
  %4762 = vmatprep.subr.mxu0 0.0
  %4763 = vmatpush2.xpose.msra.mxu0 0.0
  %4764 = vmatprep.subr.mxu0 0.0
  %4765 = vmatpush2.xpose.msra.mxu0 0.0
  %4766 = vmatprep.subr.mxu0 0.0
  %4767 = vmatpush2.xpose.msra.mxu0 0.0
  %4768 = vmatprep.subr.mxu0 0.0
  %4769 = vmatpush2.xpose.msra.mxu0 0.0
  %4770 = vmatprep.subr.mxu0 0.0
  %4771 = vmatpush2.xpose.msra.mxu0 0.0
  %4772 = vmatprep.subr.mxu0 0.0
  %4773 = vmatpush2.xpose.msra.mxu0 0.0
  %4774 = vmatprep.subr.mxu0 0.0
  %4775 = vmatpush2.xpose.msra.mxu0 0.0
  %4776 = vmatprep.subr.mxu0 0.0
  %4777 = vmatpush2.xpose.msra.mxu0 0.0
  %4778 = vmatprep.subr.mxu0 0.0
  %4779 = vmatpush2.xpose.msra.mxu0 0.0
  %4780 = vmatprep.subr.mxu0 0.0
  %4781 = vmatpush2.xpose.msra.mxu0 0.0
  %4782 = vmatprep.subr.mxu0 0.0
  %4783 = vmatpush2.xpose.msra.mxu0 0.0
  %4784 = vmatprep.subr.mxu0 0.0
  %4785 = vmatpush2.xpose.msra.mxu0 0.0
  %4786 = vmatprep.subr.mxu0 0.0
  %4787 = vmatpush2.xpose.msra.mxu0 0.0
  %4788 = vmatprep.subr.mxu0 0.0
  %4789 = vmatpush2.xpose.msra.mxu0 0.0
  %4790 = vmatprep.mubr.f32.mxu0 0.0
  %4791 = vmatmul.mubr.f32.gmra.mxu0 %v4721
  %v4792 = vpop.f32.mrf.mxu0
  %v4793 = vadd.f32 0.0, %v4792
  %v4794 = vpop.f32.mrf.mxu0
  %4795 = vmatprep.mubr.f32.mxu0 0.0
  %4796 = vmatmul.mubr.f32.gmra.mxu0 %v4724
  %v4797 = vpop.f32.mrf.mxu0
  %v4798 = vadd.f32 0.0, %v4797
  %v4799 = vpop.f32.mrf.mxu0
  %4800 = vdwg.mxu0
  %v4802 = vsel %vm45, %v2294, 0
  %v4805 = vsel %vm45, %v2299, 0
  %4807 = vmatprep.subr.mxu0 0.0
  %4808 = vmatpush1.xpose.msra.mxu0 0.0
  %4809 = vmatprep.subr.mxu0 0.0
  %4810 = vmatpush1.xpose.msra.mxu0 0.0
  %4811 = vmatprep.subr.mxu0 0.0
  %4812 = vmatpush1.xpose.msra.mxu0 0.0
  %4813 = vmatprep.subr.mxu0 0.0
  %4814 = vmatpush1.xpose.msra.mxu0 0.0
  %4815 = vmatprep.subr.mxu0 0.0
  %4816 = vmatpush1.xpose.msra.mxu0 0.0
  %4817 = vmatprep.subr.mxu0 0.0
  %4818 = vmatpush1.xpose.msra.mxu0 0.0
  %4819 = vmatprep.subr.mxu0 0.0
  %4820 = vmatpush1.xpose.msra.mxu0 0.0
  %4821 = vmatprep.subr.mxu0 0.0
  %4822 = vmatpush1.xpose.msra.mxu0 0.0
  %4823 = vmatprep.subr.mxu0 0.0
  %4824 = vmatpush1.xpose.msra.mxu0 0.0
  %4825 = vmatprep.subr.mxu0 0.0
  %4826 = vmatpush1.xpose.msra.mxu0 0.0
  %4827 = vmatprep.subr.mxu0 0.0
  %4828 = vmatpush1.xpose.msra.mxu0 0.0
  %4829 = vmatprep.subr.mxu0 0.0
  %4830 = vmatpush1.xpose.msra.mxu0 0.0
  %4831 = vmatprep.subr.mxu0 0.0
  %4832 = vmatpush1.xpose.msra.mxu0 0.0
  %4833 = vmatprep.subr.mxu0 0.0
  %4834 = vmatpush1.xpose.msra.mxu0 0.0
  %4835 = vmatprep.subr.mxu0 0.0
  %4836 = vmatpush1.xpose.msra.mxu0 %v50
  %4837 = vmatprep.subr.mxu0 0.0
  %4838 = vmatpush1.xpose.msra.mxu0 %v47
  %4839 = vmatprep.subr.mxu0 0.0
  %4840 = vmatpush2.xpose.msra.mxu0 0.0
  %4841 = vmatprep.subr.mxu0 0.0
  %4842 = vmatpush2.xpose.msra.mxu0 0.0
  %4843 = vmatprep.subr.mxu0 0.0
  %4844 = vmatpush2.xpose.msra.mxu0 0.0
  %4845 = vmatprep.subr.mxu0 0.0
  %4846 = vmatpush2.xpose.msra.mxu0 0.0
  %4847 = vmatprep.subr.mxu0 0.0
  %4848 = vmatpush2.xpose.msra.mxu0 0.0
  %4849 = vmatprep.subr.mxu0 0.0
  %4850 = vmatpush2.xpose.msra.mxu0 0.0
  %4851 = vmatprep.subr.mxu0 0.0
  %4852 = vmatpush2.xpose.msra.mxu0 0.0
  %4853 = vmatprep.subr.mxu0 0.0
  %4854 = vmatpush2.xpose.msra.mxu0 0.0
  %4855 = vmatprep.subr.mxu0 0.0
  %4856 = vmatpush2.xpose.msra.mxu0 0.0
  %4857 = vmatprep.subr.mxu0 0.0
  %4858 = vmatpush2.xpose.msra.mxu0 0.0
  %4859 = vmatprep.subr.mxu0 0.0
  %4860 = vmatpush2.xpose.msra.mxu0 0.0
  %4861 = vmatprep.subr.mxu0 0.0
  %4862 = vmatpush2.xpose.msra.mxu0 0.0
  %4863 = vmatprep.subr.mxu0 0.0
  %4864 = vmatpush2.xpose.msra.mxu0 0.0
  %4865 = vmatprep.subr.mxu0 0.0
  %4866 = vmatpush2.xpose.msra.mxu0 0.0
  %4867 = vmatprep.subr.mxu0 0.0
  %4868 = vmatpush2.xpose.msra.mxu0 0.0
  %4869 = vmatprep.subr.mxu0 0.0
  %4870 = vmatpush2.xpose.msra.mxu0 0.0
  %4871 = vmatprep.mubr.f32.mxu0 0.0
  %4872 = vmatmul.mubr.f32.gmra.mxu0 %v4802
  %v4873 = vpop.f32.mrf.mxu0
  %v4874 = vadd.f32 0.0, %v4873
  %v4875 = vpop.f32.mrf.mxu0
  %4876 = vmatprep.mubr.f32.mxu0 0.0
  %4877 = vmatmul.mubr.f32.gmra.mxu0 %v4805
  %v4878 = vpop.f32.mrf.mxu0
  %v4879 = vadd.f32 0.0, %v4878
  %v4880 = vpop.f32.mrf.mxu0
  %4881 = vdwg.mxu0
  %v4883 = vsel %vm45, %v2369, 0
  %v4886 = vsel %vm45, %v2374, 0
  %4888 = vmatprep.subr.mxu0 0.0
  %4889 = vmatpush1.xpose.msra.mxu0 0.0
  %4890 = vmatprep.subr.mxu0 0.0
  %4891 = vmatpush1.xpose.msra.mxu0 0.0
  %4892 = vmatprep.subr.mxu0 0.0
  %4893 = vmatpush1.xpose.msra.mxu0 0.0
  %4894 = vmatprep.subr.mxu0 0.0
  %4895 = vmatpush1.xpose.msra.mxu0 0.0
  %4896 = vmatprep.subr.mxu0 0.0
  %4897 = vmatpush1.xpose.msra.mxu0 0.0
  %4898 = vmatprep.subr.mxu0 0.0
  %4899 = vmatpush1.xpose.msra.mxu0 0.0
  %4900 = vmatprep.subr.mxu0 0.0
  %4901 = vmatpush1.xpose.msra.mxu0 0.0
  %4902 = vmatprep.subr.mxu0 0.0
  %4903 = vmatpush1.xpose.msra.mxu0 0.0
  %4904 = vmatprep.subr.mxu0 0.0
  %4905 = vmatpush1.xpose.msra.mxu0 0.0
  %4906 = vmatprep.subr.mxu0 0.0
  %4907 = vmatpush1.xpose.msra.mxu0 0.0
  %4908 = vmatprep.subr.mxu0 0.0
  %4909 = vmatpush1.xpose.msra.mxu0 0.0
  %4910 = vmatprep.subr.mxu0 0.0
  %4911 = vmatpush1.xpose.msra.mxu0 0.0
  %4912 = vmatprep.subr.mxu0 0.0
  %4913 = vmatpush1.xpose.msra.mxu0 0.0
  %4914 = vmatprep.subr.mxu0 0.0
  %4915 = vmatpush1.xpose.msra.mxu0 0.0
  %4916 = vmatprep.subr.mxu0 0.0
  %4917 = vmatpush1.xpose.msra.mxu0 %v50
  %4918 = vmatprep.subr.mxu0 0.0
  %4919 = vmatpush1.xpose.msra.mxu0 %v47
  %4920 = vmatprep.subr.mxu0 0.0
  %4921 = vmatpush2.xpose.msra.mxu0 0.0
  %4922 = vmatprep.subr.mxu0 0.0
  %4923 = vmatpush2.xpose.msra.mxu0 0.0
  %4924 = vmatprep.subr.mxu0 0.0
  %4925 = vmatpush2.xpose.msra.mxu0 0.0
  %4926 = vmatprep.subr.mxu0 0.0
  %4927 = vmatpush2.xpose.msra.mxu0 0.0
  %4928 = vmatprep.subr.mxu0 0.0
  %4929 = vmatpush2.xpose.msra.mxu0 0.0
  %4930 = vmatprep.subr.mxu0 0.0
  %4931 = vmatpush2.xpose.msra.mxu0 0.0
  %4932 = vmatprep.subr.mxu0 0.0
  %4933 = vmatpush2.xpose.msra.mxu0 0.0
  %4934 = vmatprep.subr.mxu0 0.0
  %4935 = vmatpush2.xpose.msra.mxu0 0.0
  %4936 = vmatprep.subr.mxu0 0.0
  %4937 = vmatpush2.xpose.msra.mxu0 0.0
  %4938 = vmatprep.subr.mxu0 0.0
  %4939 = vmatpush2.xpose.msra.mxu0 0.0
  %4940 = vmatprep.subr.mxu0 0.0
  %4941 = vmatpush2.xpose.msra.mxu0 0.0
  %4942 = vmatprep.subr.mxu0 0.0
  %4943 = vmatpush2.xpose.msra.mxu0 0.0
  %4944 = vmatprep.subr.mxu0 0.0
  %4945 = vmatpush2.xpose.msra.mxu0 0.0
  %4946 = vmatprep.subr.mxu0 0.0
  %4947 = vmatpush2.xpose.msra.mxu0 0.0
  %4948 = vmatprep.subr.mxu0 0.0
  %4949 = vmatpush2.xpose.msra.mxu0 0.0
  %4950 = vmatprep.subr.mxu0 0.0
  %4951 = vmatpush2.xpose.msra.mxu0 0.0
  %4952 = vmatprep.mubr.f32.mxu0 0.0
  %4953 = vmatmul.mubr.f32.gmra.mxu0 %v4883
  %v4954 = vpop.f32.mrf.mxu0
  %v4955 = vadd.f32 0.0, %v4954
  %v4956 = vpop.f32.mrf.mxu0
  %4957 = vmatprep.mubr.f32.mxu0 0.0
  %4958 = vmatmul.mubr.f32.gmra.mxu0 %v4886
  %v4959 = vpop.f32.mrf.mxu0
  %v4960 = vadd.f32 0.0, %v4959
  %v4961 = vpop.f32.mrf.mxu0
  %4962 = vdwg.mxu0
  %v4964 = vsel %vm45, %v2444, 0
  %v4967 = vsel %vm45, %v2449, 0
  %4969 = vmatprep.subr.mxu0 0.0
  %4970 = vmatpush1.xpose.msra.mxu0 0.0
  %4971 = vmatprep.subr.mxu0 0.0
  %4972 = vmatpush1.xpose.msra.mxu0 0.0
  %4973 = vmatprep.subr.mxu0 0.0
  %4974 = vmatpush1.xpose.msra.mxu0 0.0
  %4975 = vmatprep.subr.mxu0 0.0
  %4976 = vmatpush1.xpose.msra.mxu0 0.0
  %4977 = vmatprep.subr.mxu0 0.0
  %4978 = vmatpush1.xpose.msra.mxu0 0.0
  %4979 = vmatprep.subr.mxu0 0.0
  %4980 = vmatpush1.xpose.msra.mxu0 0.0
  %4981 = vmatprep.subr.mxu0 0.0
  %4982 = vmatpush1.xpose.msra.mxu0 0.0
  %4983 = vmatprep.subr.mxu0 0.0
  %4984 = vmatpush1.xpose.msra.mxu0 0.0
  %4985 = vmatprep.subr.mxu0 0.0
  %4986 = vmatpush1.xpose.msra.mxu0 0.0
  %4987 = vmatprep.subr.mxu0 0.0
  %4988 = vmatpush1.xpose.msra.mxu0 0.0
  %4989 = vmatprep.subr.mxu0 0.0
  %4990 = vmatpush1.xpose.msra.mxu0 0.0
  %4991 = vmatprep.subr.mxu0 0.0
  %4992 = vmatpush1.xpose.msra.mxu0 0.0
  %4993 = vmatprep.subr.mxu0 0.0
  %4994 = vmatpush1.xpose.msra.mxu0 0.0
  %4995 = vmatprep.subr.mxu0 0.0
  %4996 = vmatpush1.xpose.msra.mxu0 0.0
  %4997 = vmatprep.subr.mxu0 0.0
  %4998 = vmatpush1.xpose.msra.mxu0 %v50
  %4999 = vmatprep.subr.mxu0 0.0
  %5000 = vmatpush1.xpose.msra.mxu0 %v47
  %5001 = vmatprep.subr.mxu0 0.0
  %5002 = vmatpush2.xpose.msra.mxu0 0.0
  %5003 = vmatprep.subr.mxu0 0.0
  %5004 = vmatpush2.xpose.msra.mxu0 0.0
  %5005 = vmatprep.subr.mxu0 0.0
  %5006 = vmatpush2.xpose.msra.mxu0 0.0
  %5007 = vmatprep.subr.mxu0 0.0
  %5008 = vmatpush2.xpose.msra.mxu0 0.0
  %5009 = vmatprep.subr.mxu0 0.0
  %5010 = vmatpush2.xpose.msra.mxu0 0.0
  %5011 = vmatprep.subr.mxu0 0.0
  %5012 = vmatpush2.xpose.msra.mxu0 0.0
  %5013 = vmatprep.subr.mxu0 0.0
  %5014 = vmatpush2.xpose.msra.mxu0 0.0
  %5015 = vmatprep.subr.mxu0 0.0
  %5016 = vmatpush2.xpose.msra.mxu0 0.0
  %5017 = vmatprep.subr.mxu0 0.0
  %5018 = vmatpush2.xpose.msra.mxu0 0.0
  %5019 = vmatprep.subr.mxu0 0.0
  %5020 = vmatpush2.xpose.msra.mxu0 0.0
  %5021 = vmatprep.subr.mxu0 0.0
  %5022 = vmatpush2.xpose.msra.mxu0 0.0
  %5023 = vmatprep.subr.mxu0 0.0
  %5024 = vmatpush2.xpose.msra.mxu0 0.0
  %5025 = vmatprep.subr.mxu0 0.0
  %5026 = vmatpush2.xpose.msra.mxu0 0.0
  %5027 = vmatprep.subr.mxu0 0.0
  %5028 = vmatpush2.xpose.msra.mxu0 0.0
  %5029 = vmatprep.subr.mxu0 0.0
  %5030 = vmatpush2.xpose.msra.mxu0 0.0
  %5031 = vmatprep.subr.mxu0 0.0
  %5032 = vmatpush2.xpose.msra.mxu0 0.0
  %5033 = vmatprep.mubr.f32.mxu0 0.0
  %5034 = vmatmul.mubr.f32.gmra.mxu0 %v4964
  %v5035 = vpop.f32.mrf.mxu0
  %v5036 = vadd.f32 0.0, %v5035
  %v5037 = vpop.f32.mrf.mxu0
  %5038 = vmatprep.mubr.f32.mxu0 0.0
  %5039 = vmatmul.mubr.f32.gmra.mxu0 %v4967
  %v5040 = vpop.f32.mrf.mxu0
  %v5041 = vadd.f32 0.0, %v5040
  %v5042 = vpop.f32.mrf.mxu0
  %5043 = vdwg.mxu0
  %v5044 = vcombine.low %v2525, %v2687
  %v5045 = vcombine.high %v2525, %v2687
  %v5047 = vunpack.c.l.s4 1983009808
  %v5048 = vunpack.c.0.s8 %v5047
  %v5049 = vlaneseq
  %v5050 = vshrl.u32 %v5049, 7
  %v5051 = vsub.s32 %v5048, %v5050
  %v5052 = vrot.slane %v5044, %v5051
  %v5054 = vunpack.c.l.s4 1983009808
  %v5055 = vunpack.c.0.s8 %v5054
  %v5056 = vlaneseq
  %v5057 = vshrl.u32 %v5056, 7
  %v5058 = vsub.s32 %v5055, %v5057
  %v5059 = vrot.slane %v5045, %v5058
  %v5060 = vcombine.low %v2606, %v2768
  %v5061 = vcombine.high %v2606, %v2768
  %v5063 = vunpack.c.l.s4 1983009808
  %v5064 = vunpack.c.0.s8 %v5063
  %v5065 = vlaneseq
  %v5066 = vshrl.u32 %v5065, 7
  %v5067 = vsub.s32 %v5064, %v5066
  %v5068 = vrot.slane %v5060, %v5067
  %v5070 = vunpack.c.l.s4 1983009808
  %v5071 = vunpack.c.0.s8 %v5070
  %v5072 = vlaneseq
  %v5073 = vshrl.u32 %v5072, 7
  %v5074 = vsub.s32 %v5071, %v5073
  %v5075 = vrot.slane %v5061, %v5074
  %v5076 = vcombine.low %v2849, %v3011
  %v5077 = vcombine.high %v2849, %v3011
  %v5079 = vunpack.c.l.s4 1983009808
  %v5080 = vunpack.c.0.s8 %v5079
  %v5081 = vlaneseq
  %v5082 = vshrl.u32 %v5081, 7
  %v5083 = vsub.s32 %v5080, %v5082
  %v5084 = vrot.slane %v5076, %v5083
  %v5086 = vunpack.c.l.s4 1983009808
  %v5087 = vunpack.c.0.s8 %v5086
  %v5088 = vlaneseq
  %v5089 = vshrl.u32 %v5088, 7
  %v5090 = vsub.s32 %v5087, %v5089
  %v5091 = vrot.slane %v5077, %v5090
  %v5092 = vcombine.low %v2930, %v3092
  %v5093 = vcombine.high %v2930, %v3092
  %v5095 = vunpack.c.l.s4 1983009808
  %v5096 = vunpack.c.0.s8 %v5095
  %v5097 = vlaneseq
  %v5098 = vshrl.u32 %v5097, 7
  %v5099 = vsub.s32 %v5096, %v5098
  %v5100 = vrot.slane %v5092, %v5099
  %v5102 = vunpack.c.l.s4 1983009808
  %v5103 = vunpack.c.0.s8 %v5102
  %v5104 = vlaneseq
  %v5105 = vshrl.u32 %v5104, 7
  %v5106 = vsub.s32 %v5103, %v5105
  %v5107 = vrot.slane %v5093, %v5106
  %v5108 = vcombine.low %v5052, %v5068
  %v5109 = vcombine.high %v5052, %v5068
  %v5111 = vunpack.c.l.s4 1934713408
  %v5112 = vunpack.c.0.s8 %v5111
  %v5113 = vlaneseq
  %v5114 = vshrl.u32 %v5113, 7
  %v5115 = vsub.s32 %v5112, %v5114
  %v5116 = vrot.slane %v5108, %v5115
  %v5118 = vunpack.c.l.s4 1934713408
  %v5119 = vunpack.c.0.s8 %v5118
  %v5120 = vlaneseq
  %v5121 = vshrl.u32 %v5120, 7
  %v5122 = vsub.s32 %v5119, %v5121
  %v5123 = vrot.slane %v5109, %v5122
  %v5124 = vcombine.low %v5059, %v5075
  %v5125 = vcombine.high %v5059, %v5075
  %v5127 = vunpack.c.l.s4 1934713408
  %v5128 = vunpack.c.0.s8 %v5127
  %v5129 = vlaneseq
  %v5130 = vshrl.u32 %v5129, 7
  %v5131 = vsub.s32 %v5128, %v5130
  %v5132 = vrot.slane %v5124, %v5131
  %v5134 = vunpack.c.l.s4 1934713408
  %v5135 = vunpack.c.0.s8 %v5134
  %v5136 = vlaneseq
  %v5137 = vshrl.u32 %v5136, 7
  %v5138 = vsub.s32 %v5135, %v5137
  %v5139 = vrot.slane %v5125, %v5138
  %v5140 = vcombine.low %v5084, %v5100
  %v5141 = vcombine.high %v5084, %v5100
  %v5143 = vunpack.c.l.s4 1934713408
  %v5144 = vunpack.c.0.s8 %v5143
  %v5145 = vlaneseq
  %v5146 = vshrl.u32 %v5145, 7
  %v5147 = vsub.s32 %v5144, %v5146
  %v5148 = vrot.slane %v5140, %v5147
  %v5150 = vunpack.c.l.s4 1934713408
  %v5151 = vunpack.c.0.s8 %v5150
  %v5152 = vlaneseq
  %v5153 = vshrl.u32 %v5152, 7
  %v5154 = vsub.s32 %v5151, %v5153
  %v5155 = vrot.slane %v5141, %v5154
  %v5156 = vcombine.low %v5091, %v5107
  %v5157 = vcombine.high %v5091, %v5107
  %v5159 = vunpack.c.l.s4 1934713408
  %v5160 = vunpack.c.0.s8 %v5159
  %v5161 = vlaneseq
  %v5162 = vshrl.u32 %v5161, 7
  %v5163 = vsub.s32 %v5160, %v5162
  %v5164 = vrot.slane %v5156, %v5163
  %v5166 = vunpack.c.l.s4 1934713408
  %v5167 = vunpack.c.0.s8 %v5166
  %v5168 = vlaneseq
  %v5169 = vshrl.u32 %v5168, 7
  %v5170 = vsub.s32 %v5167, %v5169
  %v5171 = vrot.slane %v5157, %v5170
  %v5172 = vcombine.low %v5116, %v5148
  %v5173 = vcombine.high %v5116, %v5148
  %v5174 = vcombine.low %v5123, %v5155
  %v5175 = vcombine.high %v5123, %v5155
  %v5176 = vcombine.low %v5132, %v5164
  %v5177 = vcombine.high %v5132, %v5164
  %v5178 = vcombine.low %v5139, %v5171
  %v5179 = vcombine.high %v5139, %v5171
  %v5180 = vcombine.low %v3173, %v3335
  %v5181 = vcombine.high %v3173, %v3335
  %v5183 = vunpack.c.l.s4 1983009808
  %v5184 = vunpack.c.0.s8 %v5183
  %v5185 = vlaneseq
  %v5186 = vshrl.u32 %v5185, 7
  %v5187 = vsub.s32 %v5184, %v5186
  %v5188 = vrot.slane %v5180, %v5187
  %v5190 = vunpack.c.l.s4 1983009808
  %v5191 = vunpack.c.0.s8 %v5190
  %v5192 = vlaneseq
  %v5193 = vshrl.u32 %v5192, 7
  %v5194 = vsub.s32 %v5191, %v5193
  %v5195 = vrot.slane %v5181, %v5194
  %v5196 = vcombine.low %v3254, %v3416
  %v5197 = vcombine.high %v3254, %v3416
  %v5199 = vunpack.c.l.s4 1983009808
  %v5200 = vunpack.c.0.s8 %v5199
  %v5201 = vlaneseq
  %v5202 = vshrl.u32 %v5201, 7
  %v5203 = vsub.s32 %v5200, %v5202
  %v5204 = vrot.slane %v5196, %v5203
  %v5206 = vunpack.c.l.s4 1983009808
  %v5207 = vunpack.c.0.s8 %v5206
  %v5208 = vlaneseq
  %v5209 = vshrl.u32 %v5208, 7
  %v5210 = vsub.s32 %v5207, %v5209
  %v5211 = vrot.slane %v5197, %v5210
  %v5212 = vcombine.low %v3497, %v3659
  %v5213 = vcombine.high %v3497, %v3659
  %v5215 = vunpack.c.l.s4 1983009808
  %v5216 = vunpack.c.0.s8 %v5215
  %v5217 = vlaneseq
  %v5218 = vshrl.u32 %v5217, 7
  %v5219 = vsub.s32 %v5216, %v5218
  %v5220 = vrot.slane %v5212, %v5219
  %v5222 = vunpack.c.l.s4 1983009808
  %v5223 = vunpack.c.0.s8 %v5222
  %v5224 = vlaneseq
  %v5225 = vshrl.u32 %v5224, 7
  %v5226 = vsub.s32 %v5223, %v5225
  %v5227 = vrot.slane %v5213, %v5226
  %v5228 = vcombine.low %v3578, %v3740
  %v5229 = vcombine.high %v3578, %v3740
  %v5231 = vunpack.c.l.s4 1983009808
  %v5232 = vunpack.c.0.s8 %v5231
  %v5233 = vlaneseq
  %v5234 = vshrl.u32 %v5233, 7
  %v5235 = vsub.s32 %v5232, %v5234
  %v5236 = vrot.slane %v5228, %v5235
  %v5238 = vunpack.c.l.s4 1983009808
  %v5239 = vunpack.c.0.s8 %v5238
  %v5240 = vlaneseq
  %v5241 = vshrl.u32 %v5240, 7
  %v5242 = vsub.s32 %v5239, %v5241
  %v5243 = vrot.slane %v5229, %v5242
  %v5244 = vcombine.low %v5188, %v5204
  %v5245 = vcombine.high %v5188, %v5204
  %v5247 = vunpack.c.l.s4 1934713408
  %v5248 = vunpack.c.0.s8 %v5247
  %v5249 = vlaneseq
  %v5250 = vshrl.u32 %v5249, 7
  %v5251 = vsub.s32 %v5248, %v5250
  %v5252 = vrot.slane %v5244, %v5251
  %v5254 = vunpack.c.l.s4 1934713408
  %v5255 = vunpack.c.0.s8 %v5254
  %v5256 = vlaneseq
  %v5257 = vshrl.u32 %v5256, 7
  %v5258 = vsub.s32 %v5255, %v5257
  %v5259 = vrot.slane %v5245, %v5258
  %v5260 = vcombine.low %v5195, %v5211
  %v5261 = vcombine.high %v5195, %v5211
  %v5263 = vunpack.c.l.s4 1934713408
  %v5264 = vunpack.c.0.s8 %v5263
  %v5265 = vlaneseq
  %v5266 = vshrl.u32 %v5265, 7
  %v5267 = vsub.s32 %v5264, %v5266
  %v5268 = vrot.slane %v5260, %v5267
  %v5270 = vunpack.c.l.s4 1934713408
  %v5271 = vunpack.c.0.s8 %v5270
  %v5272 = vlaneseq
  %v5273 = vshrl.u32 %v5272, 7
  %v5274 = vsub.s32 %v5271, %v5273
  %v5275 = vrot.slane %v5261, %v5274
  %v5276 = vcombine.low %v5220, %v5236
  %v5277 = vcombine.high %v5220, %v5236
  %v5279 = vunpack.c.l.s4 1934713408
  %v5280 = vunpack.c.0.s8 %v5279
  %v5281 = vlaneseq
  %v5282 = vshrl.u32 %v5281, 7
  %v5283 = vsub.s32 %v5280, %v5282
  %v5284 = vrot.slane %v5276, %v5283
  %v5286 = vunpack.c.l.s4 1934713408
  %v5287 = vunpack.c.0.s8 %v5286
  %v5288 = vlaneseq
  %v5289 = vshrl.u32 %v5288, 7
  %v5290 = vsub.s32 %v5287, %v5289
  %v5291 = vrot.slane %v5277, %v5290
  %v5292 = vcombine.low %v5227, %v5243
  %v5293 = vcombine.high %v5227, %v5243
  %v5295 = vunpack.c.l.s4 1934713408
  %v5296 = vunpack.c.0.s8 %v5295
  %v5297 = vlaneseq
  %v5298 = vshrl.u32 %v5297, 7
  %v5299 = vsub.s32 %v5296, %v5298
  %v5300 = vrot.slane %v5292, %v5299
  %v5302 = vunpack.c.l.s4 1934713408
  %v5303 = vunpack.c.0.s8 %v5302
  %v5304 = vlaneseq
  %v5305 = vshrl.u32 %v5304, 7
  %v5306 = vsub.s32 %v5303, %v5305
  %v5307 = vrot.slane %v5293, %v5306
  %v5308 = vcombine.low %v5252, %v5284
  %v5309 = vcombine.high %v5252, %v5284
  %v5310 = vcombine.low %v5259, %v5291
  %v5311 = vcombine.high %v5259, %v5291
  %v5312 = vcombine.low %v5268, %v5300
  %v5313 = vcombine.high %v5268, %v5300
  %v5314 = vcombine.low %v5275, %v5307
  %v5315 = vcombine.high %v5275, %v5307
  %v5316 = vcombine.low %v3821, %v3983
  %v5317 = vcombine.high %v3821, %v3983
  %v5319 = vunpack.c.l.s4 1983009808
  %v5320 = vunpack.c.0.s8 %v5319
  %v5321 = vlaneseq
  %v5322 = vshrl.u32 %v5321, 7
  %v5323 = vsub.s32 %v5320, %v5322
  %v5324 = vrot.slane %v5316, %v5323
  %v5326 = vunpack.c.l.s4 1983009808
  %v5327 = vunpack.c.0.s8 %v5326
  %v5328 = vlaneseq
  %v5329 = vshrl.u32 %v5328, 7
  %v5330 = vsub.s32 %v5327, %v5329
  %v5331 = vrot.slane %v5317, %v5330
  %v5332 = vcombine.low %v3902, %v4064
  %v5333 = vcombine.high %v3902, %v4064
  %v5335 = vunpack.c.l.s4 1983009808
  %v5336 = vunpack.c.0.s8 %v5335
  %v5337 = vlaneseq
  %v5338 = vshrl.u32 %v5337, 7
  %v5339 = vsub.s32 %v5336, %v5338
  %v5340 = vrot.slane %v5332, %v5339
  %v5342 = vunpack.c.l.s4 1983009808
  %v5343 = vunpack.c.0.s8 %v5342
  %v5344 = vlaneseq
  %v5345 = vshrl.u32 %v5344, 7
  %v5346 = vsub.s32 %v5343, %v5345
  %v5347 = vrot.slane %v5333, %v5346
  %v5348 = vcombine.low %v4145, %v4307
  %v5349 = vcombine.high %v4145, %v4307
  %v5351 = vunpack.c.l.s4 1983009808
  %v5352 = vunpack.c.0.s8 %v5351
  %v5353 = vlaneseq
  %v5354 = vshrl.u32 %v5353, 7
  %v5355 = vsub.s32 %v5352, %v5354
  %v5356 = vrot.slane %v5348, %v5355
  %v5358 = vunpack.c.l.s4 1983009808
  %v5359 = vunpack.c.0.s8 %v5358
  %v5360 = vlaneseq
  %v5361 = vshrl.u32 %v5360, 7
  %v5362 = vsub.s32 %v5359, %v5361
  %v5363 = vrot.slane %v5349, %v5362
  %v5364 = vcombine.low %v4226, %v4388
  %v5365 = vcombine.high %v4226, %v4388
  %v5367 = vunpack.c.l.s4 1983009808
  %v5368 = vunpack.c.0.s8 %v5367
  %v5369 = vlaneseq
  %v5370 = vshrl.u32 %v5369, 7
  %v5371 = vsub.s32 %v5368, %v5370
  %v5372 = vrot.slane %v5364, %v5371
  %v5374 = vunpack.c.l.s4 1983009808
  %v5375 = vunpack.c.0.s8 %v5374
  %v5376 = vlaneseq
  %v5377 = vshrl.u32 %v5376, 7
  %v5378 = vsub.s32 %v5375, %v5377
  %v5379 = vrot.slane %v5365, %v5378
  %v5380 = vcombine.low %v5324, %v5340
  %v5381 = vcombine.high %v5324, %v5340
  %v5383 = vunpack.c.l.s4 1934713408
  %v5384 = vunpack.c.0.s8 %v5383
  %v5385 = vlaneseq
  %v5386 = vshrl.u32 %v5385, 7
  %v5387 = vsub.s32 %v5384, %v5386
  %v5388 = vrot.slane %v5380, %v5387
  %v5390 = vunpack.c.l.s4 1934713408
  %v5391 = vunpack.c.0.s8 %v5390
  %v5392 = vlaneseq
  %v5393 = vshrl.u32 %v5392, 7
  %v5394 = vsub.s32 %v5391, %v5393
  %v5395 = vrot.slane %v5381, %v5394
  %v5396 = vcombine.low %v5331, %v5347
  %v5397 = vcombine.high %v5331, %v5347
  %v5399 = vunpack.c.l.s4 1934713408
  %v5400 = vunpack.c.0.s8 %v5399
  %v5401 = vlaneseq
  %v5402 = vshrl.u32 %v5401, 7
  %v5403 = vsub.s32 %v5400, %v5402
  %v5404 = vrot.slane %v5396, %v5403
  %v5406 = vunpack.c.l.s4 1934713408
  %v5407 = vunpack.c.0.s8 %v5406
  %v5408 = vlaneseq
  %v5409 = vshrl.u32 %v5408, 7
  %v5410 = vsub.s32 %v5407, %v5409
  %v5411 = vrot.slane %v5397, %v5410
  %v5412 = vcombine.low %v5356, %v5372
  %v5413 = vcombine.high %v5356, %v5372
  %v5415 = vunpack.c.l.s4 1934713408
  %v5416 = vunpack.c.0.s8 %v5415
  %v5417 = vlaneseq
  %v5418 = vshrl.u32 %v5417, 7
  %v5419 = vsub.s32 %v5416, %v5418
  %v5420 = vrot.slane %v5412, %v5419
  %v5422 = vunpack.c.l.s4 1934713408
  %v5423 = vunpack.c.0.s8 %v5422
  %v5424 = vlaneseq
  %v5425 = vshrl.u32 %v5424, 7
  %v5426 = vsub.s32 %v5423, %v5425
  %v5427 = vrot.slane %v5413, %v5426
  %v5428 = vcombine.low %v5363, %v5379
  %v5429 = vcombine.high %v5363, %v5379
  %v5431 = vunpack.c.l.s4 1934713408
  %v5432 = vunpack.c.0.s8 %v5431
  %v5433 = vlaneseq
  %v5434 = vshrl.u32 %v5433, 7
  %v5435 = vsub.s32 %v5432, %v5434
  %v5436 = vrot.slane %v5428, %v5435
  %v5438 = vunpack.c.l.s4 1934713408
  %v5439 = vunpack.c.0.s8 %v5438
  %v5440 = vlaneseq
  %v5441 = vshrl.u32 %v5440, 7
  %v5442 = vsub.s32 %v5439, %v5441
  %v5443 = vrot.slane %v5429, %v5442
  %v5444 = vcombine.low %v5388, %v5420
  %v5445 = vcombine.high %v5388, %v5420
  %v5446 = vcombine.low %v5395, %v5427
  %v5447 = vcombine.high %v5395, %v5427
  %v5448 = vcombine.low %v5404, %v5436
  %v5449 = vcombine.high %v5404, %v5436
  %v5450 = vcombine.low %v5411, %v5443
  %v5451 = vcombine.high %v5411, %v5443
  %v5452 = vcombine.low %v4469, %v4631
  %v5453 = vcombine.high %v4469, %v4631
  %v5455 = vunpack.c.l.s4 1983009808
  %v5456 = vunpack.c.0.s8 %v5455
  %v5457 = vlaneseq
  %v5458 = vshrl.u32 %v5457, 7
  %v5459 = vsub.s32 %v5456, %v5458
  %v5460 = vrot.slane %v5452, %v5459
  %v5462 = vunpack.c.l.s4 1983009808
  %v5463 = vunpack.c.0.s8 %v5462
  %v5464 = vlaneseq
  %v5465 = vshrl.u32 %v5464, 7
  %v5466 = vsub.s32 %v5463, %v5465
  %v5467 = vrot.slane %v5453, %v5466
  %v5468 = vcombine.low %v4550, %v4712
  %v5469 = vcombine.high %v4550, %v4712
  %v5471 = vunpack.c.l.s4 1983009808
  %v5472 = vunpack.c.0.s8 %v5471
  %v5473 = vlaneseq
  %v5474 = vshrl.u32 %v5473, 7
  %v5475 = vsub.s32 %v5472, %v5474
  %v5476 = vrot.slane %v5468, %v5475
  %v5478 = vunpack.c.l.s4 1983009808
  %v5479 = vunpack.c.0.s8 %v5478
  %v5480 = vlaneseq
  %v5481 = vshrl.u32 %v5480, 7
  %v5482 = vsub.s32 %v5479, %v5481
  %v5483 = vrot.slane %v5469, %v5482
  %v5484 = vcombine.low %v4793, %v4955
  %v5485 = vcombine.high %v4793, %v4955
  %v5487 = vunpack.c.l.s4 1983009808
  %v5488 = vunpack.c.0.s8 %v5487
  %v5489 = vlaneseq
  %v5490 = vshrl.u32 %v5489, 7
  %v5491 = vsub.s32 %v5488, %v5490
  %v5492 = vrot.slane %v5484, %v5491
  %v5494 = vunpack.c.l.s4 1983009808
  %v5495 = vunpack.c.0.s8 %v5494
  %v5496 = vlaneseq
  %v5497 = vshrl.u32 %v5496, 7
  %v5498 = vsub.s32 %v5495, %v5497
  %v5499 = vrot.slane %v5485, %v5498
  %v5500 = vcombine.low %v4874, %v5036
  %v5501 = vcombine.high %v4874, %v5036
  %v5503 = vunpack.c.l.s4 1983009808
  %v5504 = vunpack.c.0.s8 %v5503
  %v5505 = vlaneseq
  %v5506 = vshrl.u32 %v5505, 7
  %v5507 = vsub.s32 %v5504, %v5506
  %v5508 = vrot.slane %v5500, %v5507
  %v5510 = vunpack.c.l.s4 1983009808
  %v5511 = vunpack.c.0.s8 %v5510
  %v5512 = vlaneseq
  %v5513 = vshrl.u32 %v5512, 7
  %v5514 = vsub.s32 %v5511, %v5513
  %v5515 = vrot.slane %v5501, %v5514
  %v5516 = vcombine.low %v5460, %v5476
  %v5517 = vcombine.high %v5460, %v5476
  %v5519 = vunpack.c.l.s4 1934713408
  %v5520 = vunpack.c.0.s8 %v5519
  %v5521 = vlaneseq
  %v5522 = vshrl.u32 %v5521, 7
  %v5523 = vsub.s32 %v5520, %v5522
  %v5524 = vrot.slane %v5516, %v5523
  %v5526 = vunpack.c.l.s4 1934713408
  %v5527 = vunpack.c.0.s8 %v5526
  %v5528 = vlaneseq
  %v5529 = vshrl.u32 %v5528, 7
  %v5530 = vsub.s32 %v5527, %v5529
  %v5531 = vrot.slane %v5517, %v5530
  %v5532 = vcombine.low %v5467, %v5483
  %v5533 = vcombine.high %v5467, %v5483
  %v5535 = vunpack.c.l.s4 1934713408
  %v5536 = vunpack.c.0.s8 %v5535
  %v5537 = vlaneseq
  %v5538 = vshrl.u32 %v5537, 7
  %v5539 = vsub.s32 %v5536, %v5538
  %v5540 = vrot.slane %v5532, %v5539
  %v5542 = vunpack.c.l.s4 1934713408
  %v5543 = vunpack.c.0.s8 %v5542
  %v5544 = vlaneseq
  %v5545 = vshrl.u32 %v5544, 7
  %v5546 = vsub.s32 %v5543, %v5545
  %v5547 = vrot.slane %v5533, %v5546
  %v5548 = vcombine.low %v5492, %v5508
  %v5549 = vcombine.high %v5492, %v5508
  %v5551 = vunpack.c.l.s4 1934713408
  %v5552 = vunpack.c.0.s8 %v5551
  %v5553 = vlaneseq
  %v5554 = vshrl.u32 %v5553, 7
  %v5555 = vsub.s32 %v5552, %v5554
  %v5556 = vrot.slane %v5548, %v5555
  %v5558 = vunpack.c.l.s4 1934713408
  %v5559 = vunpack.c.0.s8 %v5558
  %v5560 = vlaneseq
  %v5561 = vshrl.u32 %v5560, 7
  %v5562 = vsub.s32 %v5559, %v5561
  %v5563 = vrot.slane %v5549, %v5562
  %v5564 = vcombine.low %v5499, %v5515
  %v5565 = vcombine.high %v5499, %v5515
  %v5567 = vunpack.c.l.s4 1934713408
  %v5568 = vunpack.c.0.s8 %v5567
  %v5569 = vlaneseq
  %v5570 = vshrl.u32 %v5569, 7
  %v5571 = vsub.s32 %v5568, %v5570
  %v5572 = vrot.slane %v5564, %v5571
  %v5574 = vunpack.c.l.s4 1934713408
  %v5575 = vunpack.c.0.s8 %v5574
  %v5576 = vlaneseq
  %v5577 = vshrl.u32 %v5576, 7
  %v5578 = vsub.s32 %v5575, %v5577
  %v5579 = vrot.slane %v5565, %v5578
  %v5580 = vcombine.low %v5524, %v5556
  %v5581 = vcombine.high %v5524, %v5556
  %v5582 = vcombine.low %v5531, %v5563
  %v5583 = vcombine.high %v5531, %v5563
  %v5584 = vcombine.low %v5540, %v5572
  %v5585 = vcombine.high %v5540, %v5572
  %v5586 = vcombine.low %v5547, %v5579
  %v5587 = vcombine.high %v5547, %v5579
  %v5588 = vcombine.low %v2530, %v2692
  %v5589 = vcombine.high %v2530, %v2692
  %v5591 = vunpack.c.l.s4 1983009808
  %v5592 = vunpack.c.0.s8 %v5591
  %v5593 = vlaneseq
  %v5594 = vshrl.u32 %v5593, 7
  %v5595 = vsub.s32 %v5592, %v5594
  %v5596 = vrot.slane %v5588, %v5595
  %v5598 = vunpack.c.l.s4 1983009808
  %v5599 = vunpack.c.0.s8 %v5598
  %v5600 = vlaneseq
  %v5601 = vshrl.u32 %v5600, 7
  %v5602 = vsub.s32 %v5599, %v5601
  %v5603 = vrot.slane %v5589, %v5602
  %v5604 = vcombine.low %v2611, %v2773
  %v5605 = vcombine.high %v2611, %v2773
  %v5607 = vunpack.c.l.s4 1983009808
  %v5608 = vunpack.c.0.s8 %v5607
  %v5609 = vlaneseq
  %v5610 = vshrl.u32 %v5609, 7
  %v5611 = vsub.s32 %v5608, %v5610
  %v5612 = vrot.slane %v5604, %v5611
  %v5614 = vunpack.c.l.s4 1983009808
  %v5615 = vunpack.c.0.s8 %v5614
  %v5616 = vlaneseq
  %v5617 = vshrl.u32 %v5616, 7
  %v5618 = vsub.s32 %v5615, %v5617
  %v5619 = vrot.slane %v5605, %v5618
  %v5620 = vcombine.low %v2854, %v3016
  %v5621 = vcombine.high %v2854, %v3016
  %v5623 = vunpack.c.l.s4 1983009808
  %v5624 = vunpack.c.0.s8 %v5623
  %v5625 = vlaneseq
  %v5626 = vshrl.u32 %v5625, 7
  %v5627 = vsub.s32 %v5624, %v5626
  %v5628 = vrot.slane %v5620, %v5627
  %v5630 = vunpack.c.l.s4 1983009808
  %v5631 = vunpack.c.0.s8 %v5630
  %v5632 = vlaneseq
  %v5633 = vshrl.u32 %v5632, 7
  %v5634 = vsub.s32 %v5631, %v5633
  %v5635 = vrot.slane %v5621, %v5634
  %v5636 = vcombine.low %v2935, %v3097
  %v5637 = vcombine.high %v2935, %v3097
  %v5639 = vunpack.c.l.s4 1983009808
  %v5640 = vunpack.c.0.s8 %v5639
  %v5641 = vlaneseq
  %v5642 = vshrl.u32 %v5641, 7
  %v5643 = vsub.s32 %v5640, %v5642
  %v5644 = vrot.slane %v5636, %v5643
  %v5646 = vunpack.c.l.s4 1983009808
  %v5647 = vunpack.c.0.s8 %v5646
  %v5648 = vlaneseq
  %v5649 = vshrl.u32 %v5648, 7
  %v5650 = vsub.s32 %v5647, %v5649
  %v5651 = vrot.slane %v5637, %v5650
  %v5652 = vcombine.low %v5596, %v5612
  %v5653 = vcombine.high %v5596, %v5612
  %v5655 = vunpack.c.l.s4 1934713408
  %v5656 = vunpack.c.0.s8 %v5655
  %v5657 = vlaneseq
  %v5658 = vshrl.u32 %v5657, 7
  %v5659 = vsub.s32 %v5656, %v5658
  %v5660 = vrot.slane %v5652, %v5659
  %v5662 = vunpack.c.l.s4 1934713408
  %v5663 = vunpack.c.0.s8 %v5662
  %v5664 = vlaneseq
  %v5665 = vshrl.u32 %v5664, 7
  %v5666 = vsub.s32 %v5663, %v5665
  %v5667 = vrot.slane %v5653, %v5666
  %v5668 = vcombine.low %v5603, %v5619
  %v5669 = vcombine.high %v5603, %v5619
  %v5671 = vunpack.c.l.s4 1934713408
  %v5672 = vunpack.c.0.s8 %v5671
  %v5673 = vlaneseq
  %v5674 = vshrl.u32 %v5673, 7
  %v5675 = vsub.s32 %v5672, %v5674
  %v5676 = vrot.slane %v5668, %v5675
  %v5678 = vunpack.c.l.s4 1934713408
  %v5679 = vunpack.c.0.s8 %v5678
  %v5680 = vlaneseq
  %v5681 = vshrl.u32 %v5680, 7
  %v5682 = vsub.s32 %v5679, %v5681
  %v5683 = vrot.slane %v5669, %v5682
  %v5684 = vcombine.low %v5628, %v5644
  %v5685 = vcombine.high %v5628, %v5644
  %v5687 = vunpack.c.l.s4 1934713408
  %v5688 = vunpack.c.0.s8 %v5687
  %v5689 = vlaneseq
  %v5690 = vshrl.u32 %v5689, 7
  %v5691 = vsub.s32 %v5688, %v5690
  %v5692 = vrot.slane %v5684, %v5691
  %v5694 = vunpack.c.l.s4 1934713408
  %v5695 = vunpack.c.0.s8 %v5694
  %v5696 = vlaneseq
  %v5697 = vshrl.u32 %v5696, 7
  %v5698 = vsub.s32 %v5695, %v5697
  %v5699 = vrot.slane %v5685, %v5698
  %v5700 = vcombine.low %v5635, %v5651
  %v5701 = vcombine.high %v5635, %v5651
  %v5703 = vunpack.c.l.s4 1934713408
  %v5704 = vunpack.c.0.s8 %v5703
  %v5705 = vlaneseq
  %v5706 = vshrl.u32 %v5705, 7
  %v5707 = vsub.s32 %v5704, %v5706
  %v5708 = vrot.slane %v5700, %v5707
  %v5710 = vunpack.c.l.s4 1934713408
  %v5711 = vunpack.c.0.s8 %v5710
  %v5712 = vlaneseq
  %v5713 = vshrl.u32 %v5712, 7
  %v5714 = vsub.s32 %v5711, %v5713
  %v5715 = vrot.slane %v5701, %v5714
  %v5716 = vcombine.low %v5660, %v5692
  %v5717 = vcombine.high %v5660, %v5692
  %v5718 = vcombine.low %v5667, %v5699
  %v5719 = vcombine.high %v5667, %v5699
  %v5720 = vcombine.low %v5676, %v5708
  %v5721 = vcombine.high %v5676, %v5708
  %v5722 = vcombine.low %v5683, %v5715
  %v5723 = vcombine.high %v5683, %v5715
  %v5724 = vcombine.low %v3178, %v3340
  %v5725 = vcombine.high %v3178, %v3340
  %v5727 = vunpack.c.l.s4 1983009808
  %v5728 = vunpack.c.0.s8 %v5727
  %v5729 = vlaneseq
  %v5730 = vshrl.u32 %v5729, 7
  %v5731 = vsub.s32 %v5728, %v5730
  %v5732 = vrot.slane %v5724, %v5731
  %v5734 = vunpack.c.l.s4 1983009808
  %v5735 = vunpack.c.0.s8 %v5734
  %v5736 = vlaneseq
  %v5737 = vshrl.u32 %v5736, 7
  %v5738 = vsub.s32 %v5735, %v5737
  %v5739 = vrot.slane %v5725, %v5738
  %v5740 = vcombine.low %v3259, %v3421
  %v5741 = vcombine.high %v3259, %v3421
  %v5743 = vunpack.c.l.s4 1983009808
  %v5744 = vunpack.c.0.s8 %v5743
  %v5745 = vlaneseq
  %v5746 = vshrl.u32 %v5745, 7
  %v5747 = vsub.s32 %v5744, %v5746
  %v5748 = vrot.slane %v5740, %v5747
  %v5750 = vunpack.c.l.s4 1983009808
  %v5751 = vunpack.c.0.s8 %v5750
  %v5752 = vlaneseq
  %v5753 = vshrl.u32 %v5752, 7
  %v5754 = vsub.s32 %v5751, %v5753
  %v5755 = vrot.slane %v5741, %v5754
  %v5756 = vcombine.low %v3502, %v3664
  %v5757 = vcombine.high %v3502, %v3664
  %v5759 = vunpack.c.l.s4 1983009808
  %v5760 = vunpack.c.0.s8 %v5759
  %v5761 = vlaneseq
  %v5762 = vshrl.u32 %v5761, 7
  %v5763 = vsub.s32 %v5760, %v5762
  %v5764 = vrot.slane %v5756, %v5763
  %v5766 = vunpack.c.l.s4 1983009808
  %v5767 = vunpack.c.0.s8 %v5766
  %v5768 = vlaneseq
  %v5769 = vshrl.u32 %v5768, 7
  %v5770 = vsub.s32 %v5767, %v5769
  %v5771 = vrot.slane %v5757, %v5770
  %v5772 = vcombine.low %v3583, %v3745
  %v5773 = vcombine.high %v3583, %v3745
  %v5775 = vunpack.c.l.s4 1983009808
  %v5776 = vunpack.c.0.s8 %v5775
  %v5777 = vlaneseq
  %v5778 = vshrl.u32 %v5777, 7
  %v5779 = vsub.s32 %v5776, %v5778
  %v5780 = vrot.slane %v5772, %v5779
  %v5782 = vunpack.c.l.s4 1983009808
  %v5783 = vunpack.c.0.s8 %v5782
  %v5784 = vlaneseq
  %v5785 = vshrl.u32 %v5784, 7
  %v5786 = vsub.s32 %v5783, %v5785
  %v5787 = vrot.slane %v5773, %v5786
  %v5788 = vcombine.low %v5732, %v5748
  %v5789 = vcombine.high %v5732, %v5748
  %v5791 = vunpack.c.l.s4 1934713408
  %v5792 = vunpack.c.0.s8 %v5791
  %v5793 = vlaneseq
  %v5794 = vshrl.u32 %v5793, 7
  %v5795 = vsub.s32 %v5792, %v5794
  %v5796 = vrot.slane %v5788, %v5795
  %v5798 = vunpack.c.l.s4 1934713408
  %v5799 = vunpack.c.0.s8 %v5798
  %v5800 = vlaneseq
  %v5801 = vshrl.u32 %v5800, 7
  %v5802 = vsub.s32 %v5799, %v5801
  %v5803 = vrot.slane %v5789, %v5802
  %v5804 = vcombine.low %v5739, %v5755
  %v5805 = vcombine.high %v5739, %v5755
  %v5807 = vunpack.c.l.s4 1934713408
  %v5808 = vunpack.c.0.s8 %v5807
  %v5809 = vlaneseq
  %v5810 = vshrl.u32 %v5809, 7
  %v5811 = vsub.s32 %v5808, %v5810
  %v5812 = vrot.slane %v5804, %v5811
  %v5814 = vunpack.c.l.s4 1934713408
  %v5815 = vunpack.c.0.s8 %v5814
  %v5816 = vlaneseq
  %v5817 = vshrl.u32 %v5816, 7
  %v5818 = vsub.s32 %v5815, %v5817
  %v5819 = vrot.slane %v5805, %v5818
  %v5820 = vcombine.low %v5764, %v5780
  %v5821 = vcombine.high %v5764, %v5780
  %v5823 = vunpack.c.l.s4 1934713408
  %v5824 = vunpack.c.0.s8 %v5823
  %v5825 = vlaneseq
  %v5826 = vshrl.u32 %v5825, 7
  %v5827 = vsub.s32 %v5824, %v5826
  %v5828 = vrot.slane %v5820, %v5827
  %v5830 = vunpack.c.l.s4 1934713408
  %v5831 = vunpack.c.0.s8 %v5830
  %v5832 = vlaneseq
  %v5833 = vshrl.u32 %v5832, 7
  %v5834 = vsub.s32 %v5831, %v5833
  %v5835 = vrot.slane %v5821, %v5834
  %v5836 = vcombine.low %v5771, %v5787
  %v5837 = vcombine.high %v5771, %v5787
  %v5839 = vunpack.c.l.s4 1934713408
  %v5840 = vunpack.c.0.s8 %v5839
  %v5841 = vlaneseq
  %v5842 = vshrl.u32 %v5841, 7
  %v5843 = vsub.s32 %v5840, %v5842
  %v5844 = vrot.slane %v5836, %v5843
  %v5846 = vunpack.c.l.s4 1934713408
  %v5847 = vunpack.c.0.s8 %v5846
  %v5848 = vlaneseq
  %v5849 = vshrl.u32 %v5848, 7
  %v5850 = vsub.s32 %v5847, %v5849
  %v5851 = vrot.slane %v5837, %v5850
  %v5852 = vcombine.low %v5796, %v5828
  %v5853 = vcombine.high %v5796, %v5828
  %v5854 = vcombine.low %v5803, %v5835
  %v5855 = vcombine.high %v5803, %v5835
  %v5856 = vcombine.low %v5812, %v5844
  %v5857 = vcombine.high %v5812, %v5844
  %v5858 = vcombine.low %v5819, %v5851
  %v5859 = vcombine.high %v5819, %v5851
  %v5860 = vcombine.low %v3826, %v3988
  %v5861 = vcombine.high %v3826, %v3988
  %v5863 = vunpack.c.l.s4 1983009808
  %v5864 = vunpack.c.0.s8 %v5863
  %v5865 = vlaneseq
  %v5866 = vshrl.u32 %v5865, 7
  %v5867 = vsub.s32 %v5864, %v5866
  %v5868 = vrot.slane %v5860, %v5867
  %v5870 = vunpack.c.l.s4 1983009808
  %v5871 = vunpack.c.0.s8 %v5870
  %v5872 = vlaneseq
  %v5873 = vshrl.u32 %v5872, 7
  %v5874 = vsub.s32 %v5871, %v5873
  %v5875 = vrot.slane %v5861, %v5874
  %v5876 = vcombine.low %v3907, %v4069
  %v5877 = vcombine.high %v3907, %v4069
  %v5879 = vunpack.c.l.s4 1983009808
  %v5880 = vunpack.c.0.s8 %v5879
  %v5881 = vlaneseq
  %v5882 = vshrl.u32 %v5881, 7
  %v5883 = vsub.s32 %v5880, %v5882
  %v5884 = vrot.slane %v5876, %v5883
  %v5886 = vunpack.c.l.s4 1983009808
  %v5887 = vunpack.c.0.s8 %v5886
  %v5888 = vlaneseq
  %v5889 = vshrl.u32 %v5888, 7
  %v5890 = vsub.s32 %v5887, %v5889
  %v5891 = vrot.slane %v5877, %v5890
  %v5892 = vcombine.low %v4150, %v4312
  %v5893 = vcombine.high %v4150, %v4312
  %v5895 = vunpack.c.l.s4 1983009808
  %v5896 = vunpack.c.0.s8 %v5895
  %v5897 = vlaneseq
  %v5898 = vshrl.u32 %v5897, 7
  %v5899 = vsub.s32 %v5896, %v5898
  %v5900 = vrot.slane %v5892, %v5899
  %v5902 = vunpack.c.l.s4 1983009808
  %v5903 = vunpack.c.0.s8 %v5902
  %v5904 = vlaneseq
  %v5905 = vshrl.u32 %v5904, 7
  %v5906 = vsub.s32 %v5903, %v5905
  %v5907 = vrot.slane %v5893, %v5906
  %v5908 = vcombine.low %v4231, %v4393
  %v5909 = vcombine.high %v4231, %v4393
  %v5911 = vunpack.c.l.s4 1983009808
  %v5912 = vunpack.c.0.s8 %v5911
  %v5913 = vlaneseq
  %v5914 = vshrl.u32 %v5913, 7
  %v5915 = vsub.s32 %v5912, %v5914
  %v5916 = vrot.slane %v5908, %v5915
  %v5918 = vunpack.c.l.s4 1983009808
  %v5919 = vunpack.c.0.s8 %v5918
  %v5920 = vlaneseq
  %v5921 = vshrl.u32 %v5920, 7
  %v5922 = vsub.s32 %v5919, %v5921
  %v5923 = vrot.slane %v5909, %v5922
  %v5924 = vcombine.low %v5868, %v5884
  %v5925 = vcombine.high %v5868, %v5884
  %v5927 = vunpack.c.l.s4 1934713408
  %v5928 = vunpack.c.0.s8 %v5927
  %v5929 = vlaneseq
  %v5930 = vshrl.u32 %v5929, 7
  %v5931 = vsub.s32 %v5928, %v5930
  %v5932 = vrot.slane %v5924, %v5931
  %v5934 = vunpack.c.l.s4 1934713408
  %v5935 = vunpack.c.0.s8 %v5934
  %v5936 = vlaneseq
  %v5937 = vshrl.u32 %v5936, 7
  %v5938 = vsub.s32 %v5935, %v5937
  %v5939 = vrot.slane %v5925, %v5938
  %v5940 = vcombine.low %v5875, %v5891
  %v5941 = vcombine.high %v5875, %v5891
  %v5943 = vunpack.c.l.s4 1934713408
  %v5944 = vunpack.c.0.s8 %v5943
  %v5945 = vlaneseq
  %v5946 = vshrl.u32 %v5945, 7
  %v5947 = vsub.s32 %v5944, %v5946
  %v5948 = vrot.slane %v5940, %v5947
  %v5950 = vunpack.c.l.s4 1934713408
  %v5951 = vunpack.c.0.s8 %v5950
  %v5952 = vlaneseq
  %v5953 = vshrl.u32 %v5952, 7
  %v5954 = vsub.s32 %v5951, %v5953
  %v5955 = vrot.slane %v5941, %v5954
  %v5956 = vcombine.low %v5900, %v5916
  %v5957 = vcombine.high %v5900, %v5916
  %v5959 = vunpack.c.l.s4 1934713408
  %v5960 = vunpack.c.0.s8 %v5959
  %v5961 = vlaneseq
  %v5962 = vshrl.u32 %v5961, 7
  %v5963 = vsub.s32 %v5960, %v5962
  %v5964 = vrot.slane %v5956, %v5963
  %v5966 = vunpack.c.l.s4 1934713408
  %v5967 = vunpack.c.0.s8 %v5966
  %v5968 = vlaneseq
  %v5969 = vshrl.u32 %v5968, 7
  %v5970 = vsub.s32 %v5967, %v5969
  %v5971 = vrot.slane %v5957, %v5970
  %v5972 = vcombine.low %v5907, %v5923
  %v5973 = vcombine.high %v5907, %v5923
  %v5975 = vunpack.c.l.s4 1934713408
  %v5976 = vunpack.c.0.s8 %v5975
  %v5977 = vlaneseq
  %v5978 = vshrl.u32 %v5977, 7
  %v5979 = vsub.s32 %v5976, %v5978
  %v5980 = vrot.slane %v5972, %v5979
  %v5982 = vunpack.c.l.s4 1934713408
  %v5983 = vunpack.c.0.s8 %v5982
  %v5984 = vlaneseq
  %v5985 = vshrl.u32 %v5984, 7
  %v5986 = vsub.s32 %v5983, %v5985
  %v5987 = vrot.slane %v5973, %v5986
  %v5988 = vcombine.low %v5932, %v5964
  %v5989 = vcombine.high %v5932, %v5964
  %v5990 = vcombine.low %v5939, %v5971
  %v5991 = vcombine.high %v5939, %v5971
  %v5992 = vcombine.low %v5948, %v5980
  %v5993 = vcombine.high %v5948, %v5980
  %v5994 = vcombine.low %v5955, %v5987
  %v5995 = vcombine.high %v5955, %v5987
  %v5996 = vcombine.low %v4474, %v4636
  %v5997 = vcombine.high %v4474, %v4636
  %v5999 = vunpack.c.l.s4 1983009808
  %v6000 = vunpack.c.0.s8 %v5999
  %v6001 = vlaneseq
  %v6002 = vshrl.u32 %v6001, 7
  %v6003 = vsub.s32 %v6000, %v6002
  %v6004 = vrot.slane %v5996, %v6003
  %v6006 = vunpack.c.l.s4 1983009808
  %v6007 = vunpack.c.0.s8 %v6006
  %v6008 = vlaneseq
  %v6009 = vshrl.u32 %v6008, 7
  %v6010 = vsub.s32 %v6007, %v6009
  %v6011 = vrot.slane %v5997, %v6010
  %v6012 = vcombine.low %v4555, %v4717
  %v6013 = vcombine.high %v4555, %v4717
  %v6015 = vunpack.c.l.s4 1983009808
  %v6016 = vunpack.c.0.s8 %v6015
  %v6017 = vlaneseq
  %v6018 = vshrl.u32 %v6017, 7
  %v6019 = vsub.s32 %v6016, %v6018
  %v6020 = vrot.slane %v6012, %v6019
  %v6022 = vunpack.c.l.s4 1983009808
  %v6023 = vunpack.c.0.s8 %v6022
  %v6024 = vlaneseq
  %v6025 = vshrl.u32 %v6024, 7
  %v6026 = vsub.s32 %v6023, %v6025
  %v6027 = vrot.slane %v6013, %v6026
  %v6028 = vcombine.low %v4798, %v4960
  %v6029 = vcombine.high %v4798, %v4960
  %v6031 = vunpack.c.l.s4 1983009808
  %v6032 = vunpack.c.0.s8 %v6031
  %v6033 = vlaneseq
  %v6034 = vshrl.u32 %v6033, 7
  %v6035 = vsub.s32 %v6032, %v6034
  %v6036 = vrot.slane %v6028, %v6035
  %v6038 = vunpack.c.l.s4 1983009808
  %v6039 = vunpack.c.0.s8 %v6038
  %v6040 = vlaneseq
  %v6041 = vshrl.u32 %v6040, 7
  %v6042 = vsub.s32 %v6039, %v6041
  %v6043 = vrot.slane %v6029, %v6042
  %v6044 = vcombine.low %v4879, %v5041
  %v6045 = vcombine.high %v4879, %v5041
  %v6047 = vunpack.c.l.s4 1983009808
  %v6048 = vunpack.c.0.s8 %v6047
  %v6049 = vlaneseq
  %v6050 = vshrl.u32 %v6049, 7
  %v6051 = vsub.s32 %v6048, %v6050
  %v6052 = vrot.slane %v6044, %v6051
  %v6054 = vunpack.c.l.s4 1983009808
  %v6055 = vunpack.c.0.s8 %v6054
  %v6056 = vlaneseq
  %v6057 = vshrl.u32 %v6056, 7
  %v6058 = vsub.s32 %v6055, %v6057
  %v6059 = vrot.slane %v6045, %v6058
  %v6060 = vcombine.low %v6004, %v6020
  %v6061 = vcombine.high %v6004, %v6020
  %v6063 = vunpack.c.l.s4 1934713408
  %v6064 = vunpack.c.0.s8 %v6063
  %v6065 = vlaneseq
  %v6066 = vshrl.u32 %v6065, 7
  %v6067 = vsub.s32 %v6064, %v6066
  %v6068 = vrot.slane %v6060, %v6067
  %v6070 = vunpack.c.l.s4 1934713408
  %v6071 = vunpack.c.0.s8 %v6070
  %v6072 = vlaneseq
  %v6073 = vshrl.u32 %v6072, 7
  %v6074 = vsub.s32 %v6071, %v6073
  %v6075 = vrot.slane %v6061, %v6074
  %v6076 = vcombine.low %v6011, %v6027
  %v6077 = vcombine.high %v6011, %v6027
  %v6079 = vunpack.c.l.s4 1934713408
  %v6080 = vunpack.c.0.s8 %v6079
  %v6081 = vlaneseq
  %v6082 = vshrl.u32 %v6081, 7
  %v6083 = vsub.s32 %v6080, %v6082
  %v6084 = vrot.slane %v6076, %v6083
  %v6086 = vunpack.c.l.s4 1934713408
  %v6087 = vunpack.c.0.s8 %v6086
  %v6088 = vlaneseq
  %v6089 = vshrl.u32 %v6088, 7
  %v6090 = vsub.s32 %v6087, %v6089
  %v6091 = vrot.slane %v6077, %v6090
  %v6092 = vcombine.low %v6036, %v6052
  %v6093 = vcombine.high %v6036, %v6052
  %v6095 = vunpack.c.l.s4 1934713408
  %v6096 = vunpack.c.0.s8 %v6095
  %v6097 = vlaneseq
  %v6098 = vshrl.u32 %v6097, 7
  %v6099 = vsub.s32 %v6096, %v6098
  %v6100 = vrot.slane %v6092, %v6099
  %v6102 = vunpack.c.l.s4 1934713408
  %v6103 = vunpack.c.0.s8 %v6102
  %v6104 = vlaneseq
  %v6105 = vshrl.u32 %v6104, 7
  %v6106 = vsub.s32 %v6103, %v6105
  %v6107 = vrot.slane %v6093, %v6106
  %v6108 = vcombine.low %v6043, %v6059
  %v6109 = vcombine.high %v6043, %v6059
  %v6111 = vunpack.c.l.s4 1934713408
  %v6112 = vunpack.c.0.s8 %v6111
  %v6113 = vlaneseq
  %v6114 = vshrl.u32 %v6113, 7
  %v6115 = vsub.s32 %v6112, %v6114
  %v6116 = vrot.slane %v6108, %v6115
  %v6118 = vunpack.c.l.s4 1934713408
  %v6119 = vunpack.c.0.s8 %v6118
  %v6120 = vlaneseq
  %v6121 = vshrl.u32 %v6120, 7
  %v6122 = vsub.s32 %v6119, %v6121
  %v6123 = vrot.slane %v6109, %v6122
  %v6124 = vcombine.low %v6068, %v6100
  %v6125 = vcombine.high %v6068, %v6100
  %v6126 = vcombine.low %v6075, %v6107
  %v6127 = vcombine.high %v6075, %v6107
  %v6128 = vcombine.low %v6084, %v6116
  %v6129 = vcombine.high %v6084, %v6116
  %v6130 = vcombine.low %v6091, %v6123
  %v6131 = vcombine.high %v6091, %v6123
  %6136 = vrot.lane.b32.xlu0 %v5173, 16
  %v6137 = vpop.permute.xlu0 %6136
  %6138 = vrot.lane.b32.xlu0 %v5309, 16
  %v6139 = vpop.permute.xlu0 %6138
  %6140 = vrot.lane.b32.xlu0 %v5445, 16
  %v6141 = vpop.permute.xlu0 %6140
  %6142 = vrot.lane.b32.xlu0 %v5581, 16
  %v6143 = vpop.permute.xlu0 %6142
  %6152 = vrot.lane.b32.xlu0 %v5174, 32
  %v6153 = vpop.permute.xlu0 %6152
  %6154 = vrot.lane.b32.xlu0 %v5310, 32
  %v6155 = vpop.permute.xlu0 %6154
  %6156 = vrot.lane.b32.xlu0 %v5446, 32
  %v6157 = vpop.permute.xlu0 %6156
  %6158 = vrot.lane.b32.xlu0 %v5582, 32
  %v6159 = vpop.permute.xlu0 %6158
  %6168 = vrot.lane.b32.xlu0 %v5175, 48
  %v6169 = vpop.permute.xlu0 %6168
  %6170 = vrot.lane.b32.xlu0 %v5311, 48
  %v6171 = vpop.permute.xlu0 %6170
  %6172 = vrot.lane.b32.xlu0 %v5447, 48
  %v6173 = vpop.permute.xlu0 %6172
  %6174 = vrot.lane.b32.xlu0 %v5583, 48
  %v6175 = vpop.permute.xlu0 %6174
  %6184 = vrot.lane.b32.xlu0 %v5176, 64
  %v6185 = vpop.permute.xlu0 %6184
  %6186 = vrot.lane.b32.xlu0 %v5312, 64
  %v6187 = vpop.permute.xlu0 %6186
  %6188 = vrot.lane.b32.xlu0 %v5448, 64
  %v6189 = vpop.permute.xlu0 %6188
  %6190 = vrot.lane.b32.xlu0 %v5584, 64
  %v6191 = vpop.permute.xlu0 %6190
  %6200 = vrot.lane.b32.xlu0 %v5177, 80
  %v6201 = vpop.permute.xlu0 %6200
  %6202 = vrot.lane.b32.xlu0 %v5313, 80
  %v6203 = vpop.permute.xlu0 %6202
  %6204 = vrot.lane.b32.xlu0 %v5449, 80
  %v6205 = vpop.permute.xlu0 %6204
  %6206 = vrot.lane.b32.xlu0 %v5585, 80
  %v6207 = vpop.permute.xlu0 %6206
  %6216 = vrot.lane.b32.xlu0 %v5178, 96
  %v6217 = vpop.permute.xlu0 %6216
  %6218 = vrot.lane.b32.xlu0 %v5314, 96
  %v6219 = vpop.permute.xlu0 %6218
  %6220 = vrot.lane.b32.xlu0 %v5450, 96
  %v6221 = vpop.permute.xlu0 %6220
  %6222 = vrot.lane.b32.xlu0 %v5586, 96
  %v6223 = vpop.permute.xlu0 %6222
  %6232 = vrot.lane.b32.xlu0 %v5179, 112
  %v6233 = vpop.permute.xlu0 %6232
  %6234 = vrot.lane.b32.xlu0 %v5315, 112
  %v6235 = vpop.permute.xlu0 %6234
  %6236 = vrot.lane.b32.xlu0 %v5451, 112
  %v6237 = vpop.permute.xlu0 %6236
  %6238 = vrot.lane.b32.xlu0 %v5587, 112
  %v6239 = vpop.permute.xlu0 %6238
  %6248 = vrot.lane.b32.xlu0 %v5717, 16
  %v6249 = vpop.permute.xlu0 %6248
  %6250 = vrot.lane.b32.xlu0 %v5853, 16
  %v6251 = vpop.permute.xlu0 %6250
  %6252 = vrot.lane.b32.xlu0 %v5989, 16
  %v6253 = vpop.permute.xlu0 %6252
  %6254 = vrot.lane.b32.xlu0 %v6125, 16
  %v6255 = vpop.permute.xlu0 %6254
  %6264 = vrot.lane.b32.xlu0 %v5718, 32
  %v6265 = vpop.permute.xlu0 %6264
  %6266 = vrot.lane.b32.xlu0 %v5854, 32
  %v6267 = vpop.permute.xlu0 %6266
  %6268 = vrot.lane.b32.xlu0 %v5990, 32
  %v6269 = vpop.permute.xlu0 %6268
  %6270 = vrot.lane.b32.xlu0 %v6126, 32
  %v6271 = vpop.permute.xlu0 %6270
  %6280 = vrot.lane.b32.xlu0 %v5719, 48
  %v6281 = vpop.permute.xlu0 %6280
  %6282 = vrot.lane.b32.xlu0 %v5855, 48
  %v6283 = vpop.permute.xlu0 %6282
  %6284 = vrot.lane.b32.xlu0 %v5991, 48
  %v6285 = vpop.permute.xlu0 %6284
  %6286 = vrot.lane.b32.xlu0 %v6127, 48
  %v6287 = vpop.permute.xlu0 %6286
  %6296 = vrot.lane.b32.xlu0 %v5720, 64
  %v6297 = vpop.permute.xlu0 %6296
  %6298 = vrot.lane.b32.xlu0 %v5856, 64
  %v6299 = vpop.permute.xlu0 %6298
  %6300 = vrot.lane.b32.xlu0 %v5992, 64
  %v6301 = vpop.permute.xlu0 %6300
  %6302 = vrot.lane.b32.xlu0 %v6128, 64
  %v6303 = vpop.permute.xlu0 %6302
  %6312 = vrot.lane.b32.xlu0 %v5721, 80
  %v6313 = vpop.permute.xlu0 %6312
  %6314 = vrot.lane.b32.xlu0 %v5857, 80
  %v6315 = vpop.permute.xlu0 %6314
  %6316 = vrot.lane.b32.xlu0 %v5993, 80
  %v6317 = vpop.permute.xlu0 %6316
  %6318 = vrot.lane.b32.xlu0 %v6129, 80
  %v6319 = vpop.permute.xlu0 %6318
  %6328 = vrot.lane.b32.xlu0 %v5722, 96
  %v6329 = vpop.permute.xlu0 %6328
  %6330 = vrot.lane.b32.xlu0 %v5858, 96
  %v6331 = vpop.permute.xlu0 %6330
  %6332 = vrot.lane.b32.xlu0 %v5994, 96
  %v6333 = vpop.permute.xlu0 %6332
  %6334 = vrot.lane.b32.xlu0 %v6130, 96
  %v6335 = vpop.permute.xlu0 %6334
  %6344 = vrot.lane.b32.xlu0 %v5723, 112
  %v6345 = vpop.permute.xlu0 %6344
  %6346 = vrot.lane.b32.xlu0 %v5859, 112
  %v6347 = vpop.permute.xlu0 %6346
  %6348 = vrot.lane.b32.xlu0 %v5995, 112
  %v6349 = vpop.permute.xlu0 %6348
  %6350 = vrot.lane.b32.xlu0 %v6131, 112
  %v6351 = vpop.permute.xlu0 %6350
  %vm6356 = vcmask 130048
  %v6357 = vsel %vm6356, %v5172, %v6137
  %v6358 = vsel %vm6356, %v5308, %v6139
  %v6359 = vsel %vm6356, %v5444, %v6141
  %v6360 = vsel %vm6356, %v5580, %v6143
  %vm6361 = vcmask 261120
  %v6362 = vsel %vm6361, %v6357, %v6153
  %v6363 = vsel %vm6361, %v6358, %v6155
  %v6364 = vsel %vm6361, %v6359, %v6157
  %v6365 = vsel %vm6361, %v6360, %v6159
  %vm6366 = vcmask 392192
  %v6367 = vsel %vm6366, %v6362, %v6169
  %v6368 = vsel %vm6366, %v6363, %v6171
  %v6369 = vsel %vm6366, %v6364, %v6173
  %v6370 = vsel %vm6366, %v6365, %v6175
  %vm6371 = vcmask 523264
  %v6372 = vsel %vm6371, %v6367, %v6185
  %v6373 = vsel %vm6371, %v6368, %v6187
  %v6374 = vsel %vm6371, %v6369, %v6189
  %v6375 = vsel %vm6371, %v6370, %v6191
  %vm6376 = vcmask 654336
  %v6377 = vsel %vm6376, %v6372, %v6201
  %v6378 = vsel %vm6376, %v6373, %v6203
  %v6379 = vsel %vm6376, %v6374, %v6205
  %v6380 = vsel %vm6376, %v6375, %v6207
  %vm6381 = vcmask 785408
  %v6382 = vsel %vm6381, %v6377, %v6217
  %v6383 = vsel %vm6381, %v6378, %v6219
  %v6384 = vsel %vm6381, %v6379, %v6221
  %v6385 = vsel %vm6381, %v6380, %v6223
  %vm6386 = vcmask 916480
  %v6387 = vsel %vm6386, %v6382, %v6233
  %v6388 = vsel %vm6386, %v6383, %v6235
  %v6389 = vsel %vm6386, %v6384, %v6237
  %v6390 = vsel %vm6386, %v6385, %v6239
  %v6391 = vsel %vm6356, %v5716, %v6249
  %v6392 = vsel %vm6356, %v5852, %v6251
  %v6393 = vsel %vm6356, %v5988, %v6253
  %v6394 = vsel %vm6356, %v6124, %v6255
  %v6395 = vsel %vm6361, %v6391, %v6265
  %v6396 = vsel %vm6361, %v6392, %v6267
  %v6397 = vsel %vm6361, %v6393, %v6269
  %v6398 = vsel %vm6361, %v6394, %v6271
  %v6399 = vsel %vm6366, %v6395, %v6281
  %v6400 = vsel %vm6366, %v6396, %v6283
  %v6401 = vsel %vm6366, %v6397, %v6285
  %v6402 = vsel %vm6366, %v6398, %v6287
  %v6403 = vsel %vm6371, %v6399, %v6297
  %v6404 = vsel %vm6371, %v6400, %v6299
  %v6405 = vsel %vm6371, %v6401, %v6301
  %v6406 = vsel %vm6371, %v6402, %v6303
  %v6407 = vsel %vm6376, %v6403, %v6313
  %v6408 = vsel %vm6376, %v6404, %v6315
  %v6409 = vsel %vm6376, %v6405, %v6317
  %v6410 = vsel %vm6376, %v6406, %v6319
  %v6411 = vsel %vm6381, %v6407, %v6329
  %v6412 = vsel %vm6381, %v6408, %v6331
  %v6413 = vsel %vm6381, %v6409, %v6333
  %v6414 = vsel %vm6381, %v6410, %v6335
  %v6415 = vsel %vm6386, %v6411, %v6345
  %v6416 = vsel %vm6386, %v6412, %v6347
  %v6417 = vsel %vm6386, %v6413, %v6349
  %v6418 = vsel %vm6386, %v6414, %v6351
  %6419 = vxpose.xlu0.b32.start [1/16] %v6387, 128
  %6420 = vxpose.xlu0.b32.cont [2/16] %v6388, 128
  %6421 = vxpose.xlu0.b32.cont [3/16] %v6389, 128
  %6422 = vxpose.xlu0.b32.cont [4/16] %v6390, 128
  %6423 = vxpose.xlu0.b32.cont [5/16] 0.0, 128
  %6424 = vxpose.xlu0.b32.cont [6/16] 0.0, 128
  %6425 = vxpose.xlu0.b32.cont [7/16] 0.0, 128
  %6426 = vxpose.xlu0.b32.cont [8/16] 0.0, 128
  %6427 = vxpose.xlu0.b32.cont [9/16] 0.0, 128
  %6428 = vxpose.xlu0.b32.cont [10/16] 0.0, 128
  %6429 = vxpose.xlu0.b32.cont [11/16] 0.0, 128
  %6430 = vxpose.xlu0.b32.cont [12/16] 0.0, 128
  %6431 = vxpose.xlu0.b32.cont [13/16] 0.0, 128
  %6432 = vxpose.xlu0.b32.cont [14/16] 0.0, 128
  %6433 = vxpose.xlu0.b32.cont [15/16] 0.0, 128
  %6434 = vxpose.xlu0.b32.end [16/16] 0.0, 128
  %v6435 = vpop.trf.xlu0
  %v6436 = vpop.trf.xlu0
  %v6437 = vpop.trf.xlu0
  %v6438 = vpop.trf.xlu0
  %v6439 = vpop.trf.xlu0
  %v6440 = vpop.trf.xlu0
  %v6441 = vpop.trf.xlu0
  %v6442 = vpop.trf.xlu0
  %v6443 = vpop.trf.xlu0
  %v6444 = vpop.trf.xlu0
  %v6445 = vpop.trf.xlu0
  %v6446 = vpop.trf.xlu0
  %v6447 = vpop.trf.xlu0
  %v6448 = vpop.trf.xlu0
  %v6449 = vpop.trf.xlu0
  %v6450 = vpop.trf.xlu0
  %6451 = vxpose.xlu0.b32.start [1/16] %v6415, 128
  %6452 = vxpose.xlu0.b32.cont [2/16] %v6416, 128
  %6453 = vxpose.xlu0.b32.cont [3/16] %v6417, 128
  %6454 = vxpose.xlu0.b32.cont [4/16] %v6418, 128
  %6455 = vxpose.xlu0.b32.cont [5/16] 0.0, 128
  %6456 = vxpose.xlu0.b32.cont [6/16] 0.0, 128
  %6457 = vxpose.xlu0.b32.cont [7/16] 0.0, 128
  %6458 = vxpose.xlu0.b32.cont [8/16] 0.0, 128
  %6459 = vxpose.xlu0.b32.cont [9/16] 0.0, 128
  %6460 = vxpose.xlu0.b32.cont [10/16] 0.0, 128
  %6461 = vxpose.xlu0.b32.cont [11/16] 0.0, 128
  %6462 = vxpose.xlu0.b32.cont [12/16] 0.0, 128
  %6463 = vxpose.xlu0.b32.cont [13/16] 0.0, 128
  %6464 = vxpose.xlu0.b32.cont [14/16] 0.0, 128
  %6465 = vxpose.xlu0.b32.cont [15/16] 0.0, 128
  %6466 = vxpose.xlu0.b32.end [16/16] 0.0, 128
  %v6467 = vpop.trf.xlu0
  %v6468 = vpop.trf.xlu0
  %v6469 = vpop.trf.xlu0
  %v6470 = vpop.trf.xlu0
  %v6471 = vpop.trf.xlu0
  %v6472 = vpop.trf.xlu0
  %v6473 = vpop.trf.xlu0
  %v6474 = vpop.trf.xlu0
  %v6475 = vpop.trf.xlu0
  %v6476 = vpop.trf.xlu0
  %v6477 = vpop.trf.xlu0
  %v6478 = vpop.trf.xlu0
  %v6479 = vpop.trf.xlu0
  %v6480 = vpop.trf.xlu0
  %v6481 = vpop.trf.xlu0
  %v6482 = vpop.trf.xlu0
  %6483 = vst.msk [vmem:[%s2] sm:$0xff] %vm6361, %v6435
  %6484 = vst.msk [vmem:[%s2 + $0x8] sm:$0xff] %vm6361, %v6436
  %6485 = vst.msk [vmem:[%s2 + $0x10] sm:$0xff] %vm6361, %v6437
  %6486 = vst.msk [vmem:[%s2 + $0x18] sm:$0xff] %vm6361, %v6438
  %6487 = vst.msk [vmem:[%s2 + $0x20] sm:$0xff] %vm6361, %v6439
  %6488 = vst.msk [vmem:[%s2 + $0x28] sm:$0xff] %vm6361, %v6440
  %6489 = vst.msk [vmem:[%s2 + $0x30] sm:$0xff] %vm6361, %v6441
  %6490 = vst.msk [vmem:[%s2 + $0x38] sm:$0xff] %vm6361, %v6442
  %6491 = vst.msk [vmem:[%s2 + $0x40] sm:$0xff] %vm6361, %v6443
  %6492 = vst.msk [vmem:[%s2 + $0x48] sm:$0xff] %vm6361, %v6444
  %6493 = vst.msk [vmem:[%s2 + $0x50] sm:$0xff] %vm6361, %v6445
  %6494 = vst.msk [vmem:[%s2 + $0x58] sm:$0xff] %vm6361, %v6446
  %6495 = vst.msk [vmem:[%s2 + $0x60] sm:$0xff] %vm6361, %v6447
  %6496 = vst.msk [vmem:[%s2 + $0x68] sm:$0xff] %vm6361, %v6448
  %6497 = vst.msk [vmem:[%s2 + $0x70] sm:$0xff] %vm6361, %v6449
  %6498 = vst.msk [vmem:[%s2 + $0x78] sm:$0xff] %vm6361, %v6450
  %6499 = vst.msk [vmem:[%s2 + $0x80] sm:$0xff] %vm6361, %v6467
  %6500 = vst.msk [vmem:[%s2 + $0x88] sm:$0xff] %vm6361, %v6468
  %6501 = vst.msk [vmem:[%s2 + $0x90] sm:$0xff] %vm6361, %v6469
  %6502 = vst.msk [vmem:[%s2 + $0x98] sm:$0xff] %vm6361, %v6470
  %6503 = vst.msk [vmem:[%s2 + $0xa0] sm:$0xff] %vm6361, %v6471
  %6504 = vst.msk [vmem:[%s2 + $0xa8] sm:$0xff] %vm6361, %v6472
  %6505 = vst.msk [vmem:[%s2 + $0xb0] sm:$0xff] %vm6361, %v6473
  %6506 = vst.msk [vmem:[%s2 + $0xb8] sm:$0xff] %vm6361, %v6474
  %6507 = vst.msk [vmem:[%s2 + $0xc0] sm:$0xff] %vm6361, %v6475
  %6508 = vst.msk [vmem:[%s2 + $0xc8] sm:$0xff] %vm6361, %v6476
  %6509 = vst.msk [vmem:[%s2 + $0xd0] sm:$0xff] %vm6361, %v6477
  %6510 = vst.msk [vmem:[%s2 + $0xd8] sm:$0xff] %vm6361, %v6478
  %6511 = vst.msk [vmem:[%s2 + $0xe0] sm:$0xff] %vm6361, %v6479
  %6512 = vst.msk [vmem:[%s2 + $0xe8] sm:$0xff] %vm6361, %v6480
  %6513 = vst.msk [vmem:[%s2 + $0xf0] sm:$0xff] %vm6361, %v6481
  %6514 = vst.msk [vmem:[%s2 + $0xf8] sm:$0xff] %vm6361, %v6482
  // Predicated region
  $region10: #{tpu_custom_call.1} parent=0 // pred_check
    _
  $region11: #{tpu_custom_call.1} parent=0 // pred_check_branch
    %6516 = sbr.rel (0) target = $region13
  $region12: #{tpu_custom_call.1} parent=0 // pred_region
    _
  $region13: #{tpu_custom_call.1} parent=0 // pred_fallthru
    _
  // Predicated region
  $region14: #{tpu_custom_call.1} parent=0 // pred_check
    _
  $region15: #{tpu_custom_call.1} parent=0 // pred_check_branch
    %6518 = sbr.rel (0) target = $region17
  $region16: #{tpu_custom_call.1} parent=0 // pred_region
    _
  $region17: #{tpu_custom_call.1} parent=0 // pred_fallthru
    _

</llo_original>
